<compile_context>
chip_gen: v5e
topology: v5e:2x2
jax: 0.10.0
libtpu: 0.0.40
codegen_flags: <defaults>
</compile_context>

<pallas_src>
import functools

import jax
import jax.numpy as jnp
from jax.experimental import pallas as pl
from jax.experimental.pallas import tpu as pltpu


def _round_up(x, m):
    return (x + m - 1) // m * m


# --------------------------------------------------------------------------- #
# Tiled GEMM + bias + optional ReLU  (used for the two strided 4x4 convs)
# --------------------------------------------------------------------------- #

def _gemm_bias_act_kernel(a_ref, w_ref, b_ref, o_ref, acc_ref, *, relu):
    @pl.when(pl.program_id(2) == 0)
    def _():
        acc_ref[...] = jnp.zeros_like(acc_ref)

    acc_ref[...] += jnp.dot(a_ref[...], w_ref[...],
                            preferred_element_type=jnp.float32)

    @pl.when(pl.program_id(2) == pl.num_programs(2) - 1)
    def _():
        out = acc_ref[...] + b_ref[...]
        if relu:
            out = jnp.maximum(out, 0.0)
        o_ref[...] = out.astype(o_ref.dtype)


def _conv2d_gemm(x_nhwc, w_oihw, b, *, stride, pad, relu, c_out_pad):
    """Strided conv as im2col -> tiled Pallas GEMM.

    x_nhwc: (N,H,W,C) bf16.  Returns (N,Ho,Wo,c_out_pad) bf16 with bias+ReLU
    fused in the GEMM epilogue (padded output channels are exactly 0).
    """
    N, H, W, C = x_nhwc.shape
    Co, Ci, kh, kw = w_oihw.shape
    assert Ci == C
    Ho = (H + 2 * pad - kh) // stride + 1
    Wo = (W + 2 * pad - kw) // stride + 1
    M, K = N * Ho * Wo, kh * kw * C
    Np = c_out_pad
    assert Np % 128 == 0

    # Lane-dense K (multiple of 128); TN sized for the MXU.
    Kp = _round_up(K, 128)
    if Kp <= 512:
        TK = Kp
    elif Kp % 512 == 0:
        TK = 512
    elif Kp % 256 == 0:
        TK = 256
    else:
        TK = 128
    TM = min(256, _round_up(M, 8))
    Mp = _round_up(M, TM)
    TN = 256 if Np % 256 == 0 else 128

    # im2col entirely in bf16; M/K padding folded into the same XLA fusion so
    # A is written to HBM once (bf16) and read once by the kernel.
    xp = jnp.pad(x_nhwc, ((0, 0), (pad, pad), (pad, pad), (0, 0)))
    cols = [xp[:, i:i + stride * Ho:stride, j:j + stride * Wo:stride, :]
            for i in range(kh) for j in range(kw)]
    A = jnp.stack(cols, axis=3).reshape(M, K)
    A = jnp.pad(A, ((0, Mp - M), (0, Kp - K))).astype(jnp.bfloat16)

    Wm = w_oihw.transpose(2, 3, 1, 0).reshape(K, Co)
    Wm = jnp.pad(Wm, ((0, Kp - K), (0, Np - Co))).astype(jnp.bfloat16)
    bp = jnp.pad(b, (0, Np - Co)).reshape(1, Np).astype(jnp.float32)

    grid = (Mp // TM, Np // TN, Kp // TK)
    out = pl.pallas_call(
        functools.partial(_gemm_bias_act_kernel, relu=relu),
        out_shape=jax.ShapeDtypeStruct((Mp, Np), jnp.bfloat16),
        grid_spec=pltpu.PrefetchScalarGridSpec(
            num_scalar_prefetch=0,
            grid=grid,
            in_specs=[
                pl.BlockSpec((TM, TK), lambda i, j, k: (i, k)),
                pl.BlockSpec((TK, TN), lambda i, j, k: (k, j)),
                pl.BlockSpec((1, TN), lambda i, j, k: (0, j)),
            ],
            out_specs=pl.BlockSpec((TM, TN), lambda i, j, k: (i, j)),
            scratch_shapes=[pltpu.VMEM((TM, TN), jnp.float32)],
        ),
        compiler_params=pltpu.CompilerParams(
            dimension_semantics=("parallel", "parallel", "arbitrary")),
        cost_estimate=pl.CostEstimate(
            flops=2 * Mp * Np * Kp, transcendentals=0,
            bytes_accessed=2 * (Mp * Kp + Kp * Np + Mp * Np)),
    )(A, Wm, bp)
    return out[:M].reshape(N, Ho, Wo, Np)


# --------------------------------------------------------------------------- #
# Fused conv3 (3x3 s1 p1 + bias) + residual stack (+ final ReLU) kernel
# --------------------------------------------------------------------------- #

def _resstack_kernel(x_ref, w3_ref, b3_ref, w1_ref, w2_ref, o_ref,
                     pbuf, col, hbuf, *, n_layers, H, W, Cp, Rp):
    # Zero ONLY the 1-wide halo border (the interior is fully overwritten
    # before every conv).  Re-done each grid step so it is correct under
    # megacore sharding of the batch axis; cost is O(H+W), not O(H*W).
    zrow = jnp.zeros((1, W + 2, Cp), dtype=pbuf.dtype)
    zcol = jnp.zeros((H + 2, 1, Cp), dtype=pbuf.dtype)
    pbuf[0:1, :, :] = zrow
    pbuf[H + 1:H + 2, :, :] = zrow
    pbuf[:, 0:1, :] = zcol
    pbuf[:, W + 1:W + 2, :] = zcol

    def fill_im2col():
        # Explicit bf16 im2col scratch: one long-K GEMM per conv instead of
        # nine short K=Cp matmuls (amortizes MXU fill/drain + FIFO pops).
        t = 0
        for di in range(3):
            for dj in range(3):
                col[:, t * Cp:(t + 1) * Cp] = (
                    pbuf[di:di + H, dj:dj + W, :].reshape(H * W, Cp))
                t += 1

    # conv3: 3x3, stride 1, pad 1, bias, NO activation.  Input block is bf16.
    pbuf[1:H + 1, 1:W + 1, :] = x_ref[0]
    fill_im2col()
    hbuf[...] = jnp.dot(col[...], w3_ref[...],
                        preferred_element_type=jnp.float32) + b3_ref[...]

    # Residual stack: x = x + conv1x1(relu(conv3x3(relu(x)))).  Weights are
    # shared across layers (nn.ModuleList([layer]*n) aliases one layer).
    @pl.loop(0, n_layers)
    def _(_l):
        pbuf[1:H + 1, 1:W + 1, :] = (
            jnp.maximum(hbuf[...], 0.0).astype(pbuf.dtype).reshape(H, W, Cp))
        fill_im2col()
        t = jnp.maximum(jnp.dot(col[...], w1_ref[...],
                                preferred_element_type=jnp.float32), 0.0)
        hbuf[...] += jnp.dot(t.astype(jnp.bfloat16), w2_ref[...],
                             preferred_element_type=jnp.float32)

    # final F.relu of the ResidualStack
    o_ref[0] = jnp.maximum(hbuf[...], 0.0).reshape(H, W, Cp).astype(o_ref.dtype)


def _residual_stack_fused(h, c3_w, c3_b, r_w1, r_w2, *, n_res_layers,
                          h_dim, res_h_dim):
    N, H, W, Cp = h.shape
    Rp = _round_up(res_h_dim, 128)

    def w3x3_mat(w, o_pad, i_pad):
        o, i = w.shape[0], w.shape[1]
        w = jnp.pad(w, ((0, o_pad - o), (0, i_pad - i), (0, 0), (0, 0)))
        return (w.transpose(2, 3, 1, 0)
                 .reshape(9 * i_pad, o_pad).astype(jnp.bfloat16))

    w3 = w3x3_mat(c3_w, Cp, Cp)                              # (9*Cp, Cp)
    w1 = w3x3_mat(r_w1, Rp, Cp)                              # (9*Cp, Rp)
    w2 = jnp.pad(r_w2, ((0, Cp - h_dim), (0, Rp - res_h_dim), (0, 0), (0, 0)))
    w2 = w2.transpose(2, 3, 1, 0).reshape(Rp, Cp).astype(jnp.bfloat16)
    b3 = jnp.pad(c3_b, (0, Cp - h_dim)).reshape(1, Cp).astype(jnp.float32)

    kern = functools.partial(_resstack_kernel, n_layers=n_res_layers,
                             H=H, W=W, Cp=Cp, Rp=Rp)

    # Rough VMEM budget (bf16 blocks + scratch + live f32 temporaries); raise
    # the scoped limit above v5e's 16 MiB default, stay under v7x physical.
    est = (2 * H * W * Cp * 2 + 2 * H * W * Cp * 4
           + (H + 2) * (W + 2) * Cp * 2 + H * W * 9 * Cp * 2
           + H * W * Cp * 4
           + 2 * 2 * (9 * Cp * Cp + 9 * Cp * Rp + Rp * Cp)
           + 4 * H * W * max(Cp, Rp) * 4)
    vmem_limit = int(min(max(32 * 1024 * 1024, 2 * est), 100 * 1024 * 1024))

    flops = (2 * N * H * W * 9 * Cp * Cp
             + 2 * N * n_res_layers * H * W * (9 * Cp * Rp + Rp * Cp))
    return pl.pallas_call(
        kern,
        out_shape=jax.ShapeDtypeStruct((N, H, W, Cp), jnp.float32),
        grid_spec=pltpu.PrefetchScalarGridSpec(
            num_scalar_prefetch=0,
            grid=(N,),
            in_specs=[
                pl.BlockSpec((1, H, W, Cp), lambda n: (n, 0, 0, 0)),
                pl.BlockSpec((9 * Cp, Cp), lambda n: (0, 0)),
                pl.BlockSpec((1, Cp), lambda n: (0, 0)),
                pl.BlockSpec((9 * Cp, Rp), lambda n: (0, 0)),
                pl.BlockSpec((Rp, Cp), lambda n: (0, 0)),
            ],
            out_specs=pl.BlockSpec((1, H, W, Cp), lambda n: (n, 0, 0, 0)),
            scratch_shapes=[
                pltpu.VMEM((H + 2, W + 2, Cp), jnp.bfloat16),   # halo buffer
                pltpu.VMEM((H * W, 9 * Cp), jnp.bfloat16),      # im2col scratch
                pltpu.VMEM((H * W, Cp), jnp.float32),           # resident trunk
            ],
        ),
        compiler_params=pltpu.CompilerParams(
            dimension_semantics=("parallel",),
            vmem_limit_bytes=vmem_limit),
        cost_estimate=pl.CostEstimate(
            flops=flops, transcendentals=0,
            bytes_accessed=N * H * W * Cp * (2 + 4)),
    )(h, w3, b3, w1, w2)


# --------------------------------------------------------------------------- #
# Encoder forward (Pallas)
# --------------------------------------------------------------------------- #

def init_encoder_params(key, in_dim, h_dim, res_h_dim):
    ks = jax.random.split(key, 8)

    def w(k, shape):
        fan_in = shape[1] * shape[2] * shape[3]
        return jax.random.normal(k, shape, jnp.float32) / jnp.sqrt(float(fan_in))

    def bias(k, n):
        return 0.01 * jax.random.normal(k, (n,), jnp.float32)

    # nn.ModuleList([ResidualLayer(...)] * n) aliases the SAME layer, so the
    # residual weights are shared across all stacked layers.
    return dict(
        c1_w=w(ks[0], (h_dim // 2, in_dim, 4, 4)), c1_b=bias(ks[1], h_dim // 2),
        c2_w=w(ks[2], (h_dim, h_dim // 2, 4, 4)),  c2_b=bias(ks[3], h_dim),
        c3_w=w(ks[4], (h_dim, h_dim, 3, 3)),       c3_b=bias(ks[5], h_dim),
        r_w1=w(ks[6], (res_h_dim, h_dim, 3, 3)),                 # bias=False
        r_w2=w(ks[7], (h_dim, res_h_dim, 1, 1)),                 # bias=False
    )


def encoder_forward(params, x, *, n_res_layers, h_dim, res_h_dim):
    c1 = h_dim // 2
    c1p = _round_up(c1, 128)
    cp = _round_up(h_dim, 128)

    # NCHW -> NHWC once, cast to bf16 once; all later stages stay bf16.
    h = jnp.transpose(x, (0, 2, 3, 1)).astype(jnp.bfloat16)

    # conv 4x4 s2 p1 + ReLU (fused epilogue), lane-dense padded bf16 output
    h = _conv2d_gemm(h, params["c1_w"], params["c1_b"], stride=2, pad=1,
                     relu=True, c_out_pad=c1p)
    # drop lane padding; this slice fuses into the next im2col fusion
    h = h[..., :c1]

    # conv 4x4 s2 p1 + ReLU
    h = _conv2d_gemm(h, params["c2_w"], params["c2_b"], stride=2, pad=1,
                     relu=True, c_out_pad=cp)

    # conv 3x3 s1 p1 (+bias) + entire residual stack + final ReLU, ONE kernel
    h = _residual_stack_fused(h, params["c3_w"], params["c3_b"],
                              params["r_w1"], params["r_w2"],
                              n_res_layers=n_res_layers, h_dim=h_dim,
                              res_h_dim=res_h_dim)

    h = h[..., :h_dim]
    return jnp.transpose(h, (0, 3, 1, 2))        # NHWC -> NCHW


# --------------------------------------------------------------------------- #
# Pure-JAX reference
# --------------------------------------------------------------------------- #

def _conv_ref(x, w, b, stride, pad):
    out = jax.lax.conv_general_dilated(
        x, w, (stride, stride), [(pad, pad), (pad, pad)],
        dimension_numbers=("NCHW", "OIHW", "NCHW"))
    if b is not None:
        out = out + b[None, :, None, None]
    return out


def encoder_ref(params, x, n_res_layers):
    h = jax.nn.relu(_conv_ref(x, params["c1_w"], params["c1_b"], 2, 1))
    h = jax.nn.relu(_conv_ref(h, params["c2_w"], params["c2_b"], 2, 1))
    h = _conv_ref(h, params["c3_w"], params["c3_b"], 1, 1)
    for _ in range(n_res_layers):
        r = _conv_ref(jax.nn.relu(h), params["r_w1"], None, 1, 1)
        r = _conv_ref(jax.nn.relu(r), params["r_w2"], None, 1, 0)
        h = h + r
    return jax.nn.relu(h)


# --------------------------------------------------------------------------- #
# main
# --------------------------------------------------------------------------- #

if __name__ == "__main__":
    in_dim, h_dim, n_res_layers, res_h_dim = 4, 32, 2, 16
    key = jax.random.PRNGKey(0)
    kx, kp = jax.random.split(key)

    x = jax.random.normal(kx, (2, in_dim, 16, 16), jnp.float32)   # NCHW
    params = init_encoder_params(kp, in_dim, h_dim, res_h_dim)

    fwd = jax.jit(functools.partial(encoder_forward, n_res_layers=n_res_layers,
                                    h_dim=h_dim, res_h_dim=res_h_dim))
    out = jax.block_until_ready(fwd(params, x))
    ref = jax.block_until_ready(encoder_ref(params, x, n_res_layers))

    assert out.shape == (2, h_dim, 4, 4), out.shape
    max_err = float(jnp.max(jnp.abs(out - ref)))
    # bf16 activations / MXU inputs with f32 accumulation -> loose tolerance.
    assert jnp.allclose(out, ref, atol=4e-2, rtol=4e-2), max_err

    print("KERNEL_OK")
</pallas_src>

<mosaic_0001>
module attributes {stable_mosaic.version = 11 : i64} {
  func.func @_gemm_bias_act_kernel(%arg0: i32, %arg1: i32, %arg2: i32, %arg3: memref<128x128xbf16, #tpu.memory_space<vmem>>, %arg4: memref<128x128xbf16, #tpu.memory_space<vmem>>, %arg5: memref<1x128xf32, #tpu.memory_space<vmem>>, %arg6: memref<128x128xbf16, #tpu.memory_space<vmem>>, %arg7: memref<128x128xf32, #tpu.memory_space<vmem>>) attributes {dimension_semantics = [#tpu.dimension_semantics<parallel>, #tpu.dimension_semantics<parallel>, #tpu.dimension_semantics<arbitrary>], iteration_bounds = array<i64: 1, 1, 1>, scalar_prefetch = 0 : i64, scratch_operands = 1 : i64, tpu.core_type = #tpu.core_type<tc>, window_params = [{transform_indices = @transform_0, window_bounds = array<i64: 128, 128>}, {transform_indices = @transform_1, window_bounds = array<i64: 128, 128>}, {transform_indices = @transform_2, window_bounds = array<i64: 1, 128>}, {transform_indices = @transform_3, window_bounds = array<i64: 128, 128>}]} {
    %c0_i32 = arith.constant 0 : i32
    %0 = arith.cmpi eq, %arg2, %c0_i32 : i32
    %1 = arith.extui %0 : i1 to i32
    %c0_i32_0 = arith.constant 0 : i32
    %2 = arith.cmpi ne, %1, %c0_i32_0 : i32
    scf.if %2 {
      %cst_10 = arith.constant 0.000000e+00 : f32
      %12 = vector.broadcast %cst_10 : f32 to vector<128x128xf32>
      %c0_11 = arith.constant 0 : index
      %c0_12 = arith.constant 0 : index
      %13 = vector.load %arg7[%c0_11, %c0_12] : memref<128x128xf32, #tpu.memory_space<vmem>>, vector<128x128xf32>
      tpu.vector_store %arg7[%c0_11, %c0_12], %12 {strides = array<i32>} : memref<128x128xf32, #tpu.memory_space<vmem>>, vector<128x128xf32>,
    } else {
    }
    %c0 = arith.constant 0 : index
    %c0_1 = arith.constant 0 : index
    %3 = vector.load %arg7[%c0, %c0_1] : memref<128x128xf32, #tpu.memory_space<vmem>>, vector<128x128xf32>
    %c0_2 = arith.constant 0 : index
    %c0_3 = arith.constant 0 : index
    %4 = vector.load %arg3[%c0_2, %c0_3] : memref<128x128xbf16, #tpu.memory_space<vmem>>, vector<128x128xbf16>
    %c0_4 = arith.constant 0 : index
    %c0_5 = arith.constant 0 : index
    %5 = vector.load %arg4[%c0_4, %c0_5] : memref<128x128xbf16, #tpu.memory_space<vmem>>, vector<128x128xbf16>
    %cst = arith.constant dense<0.000000e+00> : vector<128x128xf32>
    %6 = tpu.matmul %4, %5, %cst {dimension_numbers = #tpu.dot_dimension_numbers<[1], [0], [0], [1], [0, 0, 1, 1], [], []>} : vector<128x128xbf16>, vector<128x128xbf16>, vector<128x128xf32> -> vector<128x128xf32>
    %7 = arith.addf %3, %6 : vector<128x128xf32>
    %c0_6 = arith.constant 0 : index
    %c0_7 = arith.constant 0 : index
    %8 = vector.load %arg7[%c0_6, %c0_7] : memref<128x128xf32, #tpu.memory_space<vmem>>, vector<128x128xf32>
    tpu.vector_store %arg7[%c0_6, %c0_7], %7 {strides = array<i32>} : memref<128x128xf32, #tpu.memory_space<vmem>>, vector<128x128xf32>,
    %c0_i32_8 = arith.constant 0 : i32
    %9 = arith.cmpi eq, %arg2, %c0_i32_8 : i32
    %10 = arith.extui %9 : i1 to i32
    %c0_i32_9 = arith.constant 0 : i32
    %11 = arith.cmpi ne, %10, %c0_i32_9 : i32
    scf.if %11 {
      %c0_10 = arith.constant 0 : index
      %c0_11 = arith.constant 0 : index
      %12 = vector.load %arg7[%c0_10, %c0_11] : memref<128x128xf32, #tpu.memory_space<vmem>>, vector<128x128xf32>
      %c0_12 = arith.constant 0 : index
      %c0_13 = arith.constant 0 : index
      %13 = vector.load %arg5[%c0_12, %c0_13] : memref<1x128xf32, #tpu.memory_space<vmem>>, vector<1x128xf32>
      %14 = vector.broadcast %13 : vector<1x128xf32> to vector<128x128xf32>
      %15 = arith.addf %12, %14 : vector<128x128xf32>
      %cst_14 = arith.constant 0.000000e+00 : f32
      %16 = vector.broadcast %cst_14 : f32 to vector<128x128xf32>
      %17 = arith.maximumf %15, %16 : vector<128x128xf32>
      %18 = arith.truncf %17 : vector<128x128xf32> to vector<128x128xbf16>
      %c0_15 = arith.constant 0 : index
      %c0_16 = arith.constant 0 : index
      %19 = vector.load %arg6[%c0_15, %c0_16] : memref<128x128xbf16, #tpu.memory_space<vmem>>, vector<128x128xbf16>
      tpu.vector_store %arg6[%c0_15, %c0_16], %18 {strides = array<i32>} : memref<128x128xbf16, #tpu.memory_space<vmem>>, vector<128x128xbf16>,
    } else {
    }
    return
  }
  func.func @transform_0(%arg0: i32, %arg1: i32, %arg2: i32) -> (i32, i32) {
    %c0_i32 = arith.constant 0 : i32
    return %arg0, %arg2 : i32, i32
  }
  func.func @transform_1(%arg0: i32, %arg1: i32, %arg2: i32) -> (i32, i32) {
    %c0_i32 = arith.constant 0 : i32
    return %arg2, %arg1 : i32, i32
  }
  func.func @transform_2(%arg0: i32, %arg1: i32, %arg2: i32) -> (i32, i32) {
    %c0_i32 = arith.constant 0 : i32
    %c0_i32_0 = arith.constant 0 : i32
    return %c0_i32, %arg1 : i32, i32
  }
  func.func @transform_3(%arg0: i32, %arg1: i32, %arg2: i32) -> (i32, i32) {
    %c0_i32 = arith.constant 0 : i32
    return %arg0, %arg1 : i32, i32
  }
}

module attributes {stable_mosaic.version = 11 : i64} {
  func.func @_gemm_bias_act_kernel(%arg0: i32, %arg1: i32, %arg2: i32, %arg3: memref<32x256xbf16, #tpu.memory_space<vmem>>, %arg4: memref<256x128xbf16, #tpu.memory_space<vmem>>, %arg5: memref<1x128xf32, #tpu.memory_space<vmem>>, %arg6: memref<32x128xbf16, #tpu.memory_space<vmem>>, %arg7: memref<32x128xf32, #tpu.memory_space<vmem>>) attributes {dimension_semantics = [#tpu.dimension_semantics<parallel>, #tpu.dimension_semantics<parallel>, #tpu.dimension_semantics<arbitrary>], iteration_bounds = array<i64: 1, 1, 1>, scalar_prefetch = 0 : i64, scratch_operands = 1 : i64, tpu.core_type = #tpu.core_type<tc>, window_params = [{transform_indices = @transform_0, window_bounds = array<i64: 32, 256>}, {transform_indices = @transform_1, window_bounds = array<i64: 256, 128>}, {transform_indices = @transform_2, window_bounds = array<i64: 1, 128>}, {transform_indices = @transform_3, window_bounds = array<i64: 32, 128>}]} {
    %c0_i32 = arith.constant 0 : i32
    %0 = arith.cmpi eq, %arg2, %c0_i32 : i32
    %1 = arith.extui %0 : i1 to i32
    %c0_i32_0 = arith.constant 0 : i32
    %2 = arith.cmpi ne, %1, %c0_i32_0 : i32
    scf.if %2 {
      %cst_10 = arith.constant 0.000000e+00 : f32
      %12 = vector.broadcast %cst_10 : f32 to vector<32x128xf32>
      %c0_11 = arith.constant 0 : index
      %c0_12 = arith.constant 0 : index
      %13 = vector.load %arg7[%c0_11, %c0_12] : memref<32x128xf32, #tpu.memory_space<vmem>>, vector<32x128xf32>
      tpu.vector_store %arg7[%c0_11, %c0_12], %12 {strides = array<i32>} : memref<32x128xf32, #tpu.memory_space<vmem>>, vector<32x128xf32>,
    } else {
    }
    %c0 = arith.constant 0 : index
    %c0_1 = arith.constant 0 : index
    %3 = vector.load %arg7[%c0, %c0_1] : memref<32x128xf32, #tpu.memory_space<vmem>>, vector<32x128xf32>
    %c0_2 = arith.constant 0 : index
    %c0_3 = arith.constant 0 : index
    %4 = vector.load %arg3[%c0_2, %c0_3] : memref<32x256xbf16, #tpu.memory_space<vmem>>, vector<32x256xbf16>
    %c0_4 = arith.constant 0 : index
    %c0_5 = arith.constant 0 : index
    %5 = vector.load %arg4[%c0_4, %c0_5] : memref<256x128xbf16, #tpu.memory_space<vmem>>, vector<256x128xbf16>
    %cst = arith.constant dense<0.000000e+00> : vector<32x128xf32>
    %6 = tpu.matmul %4, %5, %cst {dimension_numbers = #tpu.dot_dimension_numbers<[1], [0], [0], [1], [0, 0, 1, 1], [], []>} : vector<32x256xbf16>, vector<256x128xbf16>, vector<32x128xf32> -> vector<32x128xf32>
    %7 = arith.addf %3, %6 : vector<32x128xf32>
    %c0_6 = arith.constant 0 : index
    %c0_7 = arith.constant 0 : index
    %8 = vector.load %arg7[%c0_6, %c0_7] : memref<32x128xf32, #tpu.memory_space<vmem>>, vector<32x128xf32>
    tpu.vector_store %arg7[%c0_6, %c0_7], %7 {strides = array<i32>} : memref<32x128xf32, #tpu.memory_space<vmem>>, vector<32x128xf32>,
    %c0_i32_8 = arith.constant 0 : i32
    %9 = arith.cmpi eq, %arg2, %c0_i32_8 : i32
    %10 = arith.extui %9 : i1 to i32
    %c0_i32_9 = arith.constant 0 : i32
    %11 = arith.cmpi ne, %10, %c0_i32_9 : i32
    scf.if %11 {
      %c0_10 = arith.constant 0 : index
      %c0_11 = arith.constant 0 : index
      %12 = vector.load %arg7[%c0_10, %c0_11] : memref<32x128xf32, #tpu.memory_space<vmem>>, vector<32x128xf32>
      %c0_12 = arith.constant 0 : index
      %c0_13 = arith.constant 0 : index
      %13 = vector.load %arg5[%c0_12, %c0_13] : memref<1x128xf32, #tpu.memory_space<vmem>>, vector<1x128xf32>
      %14 = vector.broadcast %13 : vector<1x128xf32> to vector<32x128xf32>
      %15 = arith.addf %12, %14 : vector<32x128xf32>
      %cst_14 = arith.constant 0.000000e+00 : f32
      %16 = vector.broadcast %cst_14 : f32 to vector<32x128xf32>
      %17 = arith.maximumf %15, %16 : vector<32x128xf32>
      %18 = arith.truncf %17 : vector<32x128xf32> to vector<32x128xbf16>
      %c0_15 = arith.constant 0 : index
      %c0_16 = arith.constant 0 : index
      %19 = vector.load %arg6[%c0_15, %c0_16] : memref<32x128xbf16, #tpu.memory_space<vmem>>, vector<32x128xbf16>
      tpu.vector_store %arg6[%c0_15, %c0_16], %18 {strides = array<i32>} : memref<32x128xbf16, #tpu.memory_space<vmem>>, vector<32x128xbf16>,
    } else {
    }
    return
  }
  func.func @transform_0(%arg0: i32, %arg1: i32, %arg2: i32) -> (i32, i32) {
    %c0_i32 = arith.constant 0 : i32
    return %arg0, %arg2 : i32, i32
  }
  func.func @transform_1(%arg0: i32, %arg1: i32, %arg2: i32) -> (i32, i32) {
    %c0_i32 = arith.constant 0 : i32
    return %arg2, %arg1 : i32, i32
  }
  func.func @transform_2(%arg0: i32, %arg1: i32, %arg2: i32) -> (i32, i32) {
    %c0_i32 = arith.constant 0 : i32
    %c0_i32_0 = arith.constant 0 : i32
    return %c0_i32, %arg1 : i32, i32
  }
  func.func @transform_3(%arg0: i32, %arg1: i32, %arg2: i32) -> (i32, i32) {
    %c0_i32 = arith.constant 0 : i32
    return %arg0, %arg1 : i32, i32
  }
}

module attributes {stable_mosaic.version = 11 : i64} {
  func.func @_resstack_kernel(%arg0: i32, %arg1: memref<1x4x4x128xbf16, #tpu.memory_space<vmem>>, %arg2: memref<1152x128xbf16, #tpu.memory_space<vmem>>, %arg3: memref<1x128xf32, #tpu.memory_space<vmem>>, %arg4: memref<1152x128xbf16, #tpu.memory_space<vmem>>, %arg5: memref<128x128xbf16, #tpu.memory_space<vmem>>, %arg6: memref<1x4x4x128xf32, #tpu.memory_space<vmem>>, %arg7: memref<6x6x128xbf16, #tpu.memory_space<vmem>>, %arg8: memref<16x1152xbf16, #tpu.memory_space<vmem>>, %arg9: memref<16x128xf32, #tpu.memory_space<vmem>>) attributes {dimension_semantics = [#tpu.dimension_semantics<parallel>], iteration_bounds = array<i64: 2>, scalar_prefetch = 0 : i64, scratch_operands = 3 : i64, tpu.core_type = #tpu.core_type<tc>, window_params = [{transform_indices = @transform_0, window_bounds = array<i64: 1, 4, 4, 128>}, {pipeline_mode = #tpu.pipeline_mode<synchronous>, transform_indices = @transform_1, window_bounds = array<i64: 1152, 128>}, {pipeline_mode = #tpu.pipeline_mode<synchronous>, transform_indices = @transform_2, window_bounds = array<i64: 1, 128>}, {pipeline_mode = #tpu.pipeline_mode<synchronous>, transform_indices = @transform_3, window_bounds = array<i64: 1152, 128>}, {pipeline_mode = #tpu.pipeline_mode<synchronous>, transform_indices = @transform_4, window_bounds = array<i64: 128, 128>}, {transform_indices = @transform_5, window_bounds = array<i64: 1, 4, 4, 128>}]} {
    %cst = arith.constant 0.000000e+00 : bf16
    %0 = vector.broadcast %cst : bf16 to vector<1x6x128xbf16>
    %cst_0 = arith.constant 0.000000e+00 : bf16
    %1 = vector.broadcast %cst_0 : bf16 to vector<6x1x128xbf16>
    %c0 = arith.constant 0 : index
    %c0_1 = arith.constant 0 : index
    %c0_2 = arith.constant 0 : index
    %2 = vector.load %arg7[%c0, %c0_1, %c0_2] : memref<6x6x128xbf16, #tpu.memory_space<vmem>>, vector<1x6x128xbf16>
    tpu.vector_store %arg7[%c0, %c0_1, %c0_2], %0 {strides = array<i32>} : memref<6x6x128xbf16, #tpu.memory_space<vmem>>, vector<1x6x128xbf16>,
    %c5 = arith.constant 5 : index
    %c0_3 = arith.constant 0 : index
    %c0_4 = arith.constant 0 : index
    %3 = vector.load %arg7[%c5, %c0_3, %c0_4] : memref<6x6x128xbf16, #tpu.memory_space<vmem>>, vector<1x6x128xbf16>
    tpu.vector_store %arg7[%c5, %c0_3, %c0_4], %0 {strides = array<i32>} : memref<6x6x128xbf16, #tpu.memory_space<vmem>>, vector<1x6x128xbf16>,
    %c0_5 = arith.constant 0 : index
    %c0_6 = arith.constant 0 : index
    %c0_7 = arith.constant 0 : index
    %4 = vector.load %arg7[%c0_5, %c0_6, %c0_7] : memref<6x6x128xbf16, #tpu.memory_space<vmem>>, vector<6x1x128xbf16>
    tpu.vector_store %arg7[%c0_5, %c0_6, %c0_7], %1 {strides = array<i32>} : memref<6x6x128xbf16, #tpu.memory_space<vmem>>, vector<6x1x128xbf16>,
    %c0_8 = arith.constant 0 : index
    %c5_9 = arith.constant 5 : index
    %c0_10 = arith.constant 0 : index
    %5 = vector.load %arg7[%c0_8, %c5_9, %c0_10] : memref<6x6x128xbf16, #tpu.memory_space<vmem>>, vector<6x1x128xbf16>
    tpu.vector_store %arg7[%c0_8, %c5_9, %c0_10], %1 {strides = array<i32>} : memref<6x6x128xbf16, #tpu.memory_space<vmem>>, vector<6x1x128xbf16>,
    %c0_11 = arith.constant 0 : index
    %c0_12 = arith.constant 0 : index
    %c0_13 = arith.constant 0 : index
    %c0_14 = arith.constant 0 : index
    %6 = vector.load %arg1[%c0_11, %c0_12, %c0_13, %c0_14] : memref<1x4x4x128xbf16, #tpu.memory_space<vmem>>, vector<1x4x4x128xbf16>
    %7 = vector.shape_cast %6 : vector<1x4x4x128xbf16> to vector<4x4x128xbf16>
    %c1 = arith.constant 1 : index
    %c1_15 = arith.constant 1 : index
    %c0_16 = arith.constant 0 : index
    %8 = vector.load %arg7[%c1, %c1_15, %c0_16] : memref<6x6x128xbf16, #tpu.memory_space<vmem>>, vector<4x4x128xbf16>
    tpu.vector_store %arg7[%c1, %c1_15, %c0_16], %7 {strides = array<i32>} : memref<6x6x128xbf16, #tpu.memory_space<vmem>>, vector<4x4x128xbf16>,
    %c0_17 = arith.constant 0 : index
    %c0_18 = arith.constant 0 : index
    %c0_19 = arith.constant 0 : index
    %9 = vector.load %arg7[%c0_17, %c0_18, %c0_19] : memref<6x6x128xbf16, #tpu.memory_space<vmem>>, vector<4x4x128xbf16>
    %10 = vector.shape_cast %9 : vector<4x4x128xbf16> to vector<16x128xbf16>
    %c0_20 = arith.constant 0 : index
    %c0_21 = arith.constant 0 : index
    %11 = vector.load %arg8[%c0_20, %c0_21] : memref<16x1152xbf16, #tpu.memory_space<vmem>>, vector<16x128xbf16>
    tpu.vector_store %arg8[%c0_20, %c0_21], %10 {strides = array<i32>} : memref<16x1152xbf16, #tpu.memory_space<vmem>>, vector<16x128xbf16>,
    %c0_22 = arith.constant 0 : index
    %c1_23 = arith.constant 1 : index
    %c0_24 = arith.constant 0 : index
    %12 = vector.load %arg7[%c0_22, %c1_23, %c0_24] : memref<6x6x128xbf16, #tpu.memory_space<vmem>>, vector<4x4x128xbf16>
    %13 = vector.shape_cast %12 : vector<4x4x128xbf16> to vector<16x128xbf16>
    %c0_25 = arith.constant 0 : index
    %c128 = arith.constant 128 : index
    %14 = vector.load %arg8[%c0_25, %c128] : memref<16x1152xbf16, #tpu.memory_space<vmem>>, vector<16x128xbf16>
    tpu.vector_store %arg8[%c0_25, %c128], %13 {strides = array<i32>} : memref<16x1152xbf16, #tpu.memory_space<vmem>>, vector<16x128xbf16>,
    %c0_26 = arith.constant 0 : index
    %c2 = arith.constant 2 : index
    %c0_27 = arith.constant 0 : index
    %15 = vector.load %arg7[%c0_26, %c2, %c0_27] : memref<6x6x128xbf16, #tpu.memory_space<vmem>>, vector<4x4x128xbf16>
    %16 = vector.shape_cast %15 : vector<4x4x128xbf16> to vector<16x128xbf16>
    %c0_28 = arith.constant 0 : index
    %c256 = arith.constant 256 : index
    %17 = vector.load %arg8[%c0_28, %c256] : memref<16x1152xbf16, #tpu.memory_space<vmem>>, vector<16x128xbf16>
    tpu.vector_store %arg8[%c0_28, %c256], %16 {strides = array<i32>} : memref<16x1152xbf16, #tpu.memory_space<vmem>>, vector<16x128xbf16>,
    %c1_29 = arith.constant 1 : index
    %c0_30 = arith.constant 0 : index
    %c0_31 = arith.constant 0 : index
    %18 = vector.load %arg7[%c1_29, %c0_30, %c0_31] : memref<6x6x128xbf16, #tpu.memory_space<vmem>>, vector<4x4x128xbf16>
    %19 = vector.shape_cast %18 : vector<4x4x128xbf16> to vector<16x128xbf16>
    %c0_32 = arith.constant 0 : index
    %c384 = arith.constant 384 : index
    %20 = vector.load %arg8[%c0_32, %c384] : memref<16x1152xbf16, #tpu.memory_space<vmem>>, vector<16x128xbf16>
    tpu.vector_store %arg8[%c0_32, %c384], %19 {strides = array<i32>} : memref<16x1152xbf16, #tpu.memory_space<vmem>>, vector<16x128xbf16>,
    %c1_33 = arith.constant 1 : index
    %c1_34 = arith.constant 1 : index
    %c0_35 = arith.constant 0 : index
    %21 = vector.load %arg7[%c1_33, %c1_34, %c0_35] : memref<6x6x128xbf16, #tpu.memory_space<vmem>>, vector<4x4x128xbf16>
    %22 = vector.shape_cast %21 : vector<4x4x128xbf16> to vector<16x128xbf16>
    %c0_36 = arith.constant 0 : index
    %c512 = arith.constant 512 : index
    %23 = vector.load %arg8[%c0_36, %c512] : memref<16x1152xbf16, #tpu.memory_space<vmem>>, vector<16x128xbf16>
    tpu.vector_store %arg8[%c0_36, %c512], %22 {strides = array<i32>} : memref<16x1152xbf16, #tpu.memory_space<vmem>>, vector<16x128xbf16>,
    %c1_37 = arith.constant 1 : index
    %c2_38 = arith.constant 2 : index
    %c0_39 = arith.constant 0 : index
    %24 = vector.load %arg7[%c1_37, %c2_38, %c0_39] : memref<6x6x128xbf16, #tpu.memory_space<vmem>>, vector<4x4x128xbf16>
    %25 = vector.shape_cast %24 : vector<4x4x128xbf16> to vector<16x128xbf16>
    %c0_40 = arith.constant 0 : index
    %c640 = arith.constant 640 : index
    %26 = vector.load %arg8[%c0_40, %c640] : memref<16x1152xbf16, #tpu.memory_space<vmem>>, vector<16x128xbf16>
    tpu.vector_store %arg8[%c0_40, %c640], %25 {strides = array<i32>} : memref<16x1152xbf16, #tpu.memory_space<vmem>>, vector<16x128xbf16>,
    %c2_41 = arith.constant 2 : index
    %c0_42 = arith.constant 0 : index
    %c0_43 = arith.constant 0 : index
    %27 = vector.load %arg7[%c2_41, %c0_42, %c0_43] : memref<6x6x128xbf16, #tpu.memory_space<vmem>>, vector<4x4x128xbf16>
    %28 = vector.shape_cast %27 : vector<4x4x128xbf16> to vector<16x128xbf16>
    %c0_44 = arith.constant 0 : index
    %c768 = arith.constant 768 : index
    %29 = vector.load %arg8[%c0_44, %c768] : memref<16x1152xbf16, #tpu.memory_space<vmem>>, vector<16x128xbf16>
    tpu.vector_store %arg8[%c0_44, %c768], %28 {strides = array<i32>} : memref<16x1152xbf16, #tpu.memory_space<vmem>>, vector<16x128xbf16>,
    %c2_45 = arith.constant 2 : index
    %c1_46 = arith.constant 1 : index
    %c0_47 = arith.constant 0 : index
    %30 = vector.load %arg7[%c2_45, %c1_46, %c0_47] : memref<6x6x128xbf16, #tpu.memory_space<vmem>>, vector<4x4x128xbf16>
    %31 = vector.shape_cast %30 : vector<4x4x128xbf16> to vector<16x128xbf16>
    %c0_48 = arith.constant 0 : index
    %c896 = arith.constant 896 : index
    %32 = vector.load %arg8[%c0_48, %c896] : memref<16x1152xbf16, #tpu.memory_space<vmem>>, vector<16x128xbf16>
    tpu.vector_store %arg8[%c0_48, %c896], %31 {strides = array<i32>} : memref<16x1152xbf16, #tpu.memory_space<vmem>>, vector<16x128xbf16>,
    %c2_49 = arith.constant 2 : index
    %c2_50 = arith.constant 2 : index
    %c0_51 = arith.constant 0 : index
    %33 = vector.load %arg7[%c2_49, %c2_50, %c0_51] : memref<6x6x128xbf16, #tpu.memory_space<vmem>>, vector<4x4x128xbf16>
    %34 = vector.shape_cast %33 : vector<4x4x128xbf16> to vector<16x128xbf16>
    %c0_52 = arith.constant 0 : index
    %c1024 = arith.constant 1024 : index
    %35 = vector.load %arg8[%c0_52, %c1024] : memref<16x1152xbf16, #tpu.memory_space<vmem>>, vector<16x128xbf16>
    tpu.vector_store %arg8[%c0_52, %c1024], %34 {strides = array<i32>} : memref<16x1152xbf16, #tpu.memory_space<vmem>>, vector<16x128xbf16>,
    %c0_53 = arith.constant 0 : index
    %c0_54 = arith.constant 0 : index
    %36 = vector.load %arg8[%c0_53, %c0_54] : memref<16x1152xbf16, #tpu.memory_space<vmem>>, vector<16x1152xbf16>
    %c0_55 = arith.constant 0 : index
    %c0_56 = arith.constant 0 : index
    %37 = vector.load %arg2[%c0_55, %c0_56] : memref<1152x128xbf16, #tpu.memory_space<vmem>>, vector<1152x128xbf16>
    %cst_57 = arith.constant dense<0.000000e+00> : vector<16x128xf32>
    %38 = tpu.matmul %36, %37, %cst_57 {dimension_numbers = #tpu.dot_dimension_numbers<[1], [0], [0], [1], [0, 0, 1, 1], [], []>} : vector<16x1152xbf16>, vector<1152x128xbf16>, vector<16x128xf32> -> vector<16x128xf32>
    %c0_58 = arith.constant 0 : index
    %c0_59 = arith.constant 0 : index
    %39 = vector.load %arg3[%c0_58, %c0_59] : memref<1x128xf32, #tpu.memory_space<vmem>>, vector<1x128xf32>
    %40 = vector.broadcast %39 : vector<1x128xf32> to vector<16x128xf32>
    %41 = arith.addf %38, %40 : vector<16x128xf32>
    %c0_60 = arith.constant 0 : index
    %c0_61 = arith.constant 0 : index
    %42 = vector.load %arg9[%c0_60, %c0_61] : memref<16x128xf32, #tpu.memory_space<vmem>>, vector<16x128xf32>
    tpu.vector_store %arg9[%c0_60, %c0_61], %41 {strides = array<i32>} : memref<16x128xf32, #tpu.memory_space<vmem>>, vector<16x128xf32>,
    %c0_i32 = arith.constant 0 : i32
    %c2_i32 = arith.constant 2 : i32
    %43 = arith.addi %c0_i32, %c2_i32 : i32
    %c1_i32 = arith.constant 1 : i32
    scf.for %arg10 = %c0_i32 to %43 step %c1_i32  : i32 {
      %c0_69 = arith.constant 0 : index
      %c0_70 = arith.constant 0 : index
      %51 = vector.load %arg9[%c0_69, %c0_70] : memref<16x128xf32, #tpu.memory_space<vmem>>, vector<16x128xf32>
      %cst_71 = arith.constant 0.000000e+00 : f32
      %52 = vector.broadcast %cst_71 : f32 to vector<16x128xf32>
      %53 = arith.maximumf %51, %52 : vector<16x128xf32>
      %54 = arith.truncf %53 : vector<16x128xf32> to vector<16x128xbf16>
      %55 = vector.shape_cast %54 : vector<16x128xbf16> to vector<4x4x128xbf16>
      %c1_72 = arith.constant 1 : index
      %c1_73 = arith.constant 1 : index
      %c0_74 = arith.constant 0 : index
      %56 = vector.load %arg7[%c1_72, %c1_73, %c0_74] : memref<6x6x128xbf16, #tpu.memory_space<vmem>>, vector<4x4x128xbf16>
      tpu.vector_store %arg7[%c1_72, %c1_73, %c0_74], %55 {strides = array<i32>} : memref<6x6x128xbf16, #tpu.memory_space<vmem>>, vector<4x4x128xbf16>,
      %c0_75 = arith.constant 0 : index
      %c0_76 = arith.constant 0 : index
      %c0_77 = arith.constant 0 : index
      %57 = vector.load %arg7[%c0_75, %c0_76, %c0_77] : memref<6x6x128xbf16, #tpu.memory_space<vmem>>, vector<4x4x128xbf16>
      %58 = vector.shape_cast %57 : vector<4x4x128xbf16> to vector<16x128xbf16>
      %c0_78 = arith.constant 0 : index
      %c0_79 = arith.constant 0 : index
      %59 = vector.load %arg8[%c0_78, %c0_79] : memref<16x1152xbf16, #tpu.memory_space<vmem>>, vector<16x128xbf16>
      tpu.vector_store %arg8[%c0_78, %c0_79], %58 {strides = array<i32>} : memref<16x1152xbf16, #tpu.memory_space<vmem>>, vector<16x128xbf16>,
      %c0_80 = arith.constant 0 : index
      %c1_81 = arith.constant 1 : index
      %c0_82 = arith.constant 0 : index
      %60 = vector.load %arg7[%c0_80, %c1_81, %c0_82] : memref<6x6x128xbf16, #tpu.memory_space<vmem>>, vector<4x4x128xbf16>
      %61 = vector.shape_cast %60 : vector<4x4x128xbf16> to vector<16x128xbf16>
      %c0_83 = arith.constant 0 : index
      %c128_84 = arith.constant 128 : index
      %62 = vector.load %arg8[%c0_83, %c128_84] : memref<16x1152xbf16, #tpu.memory_space<vmem>>, vector<16x128xbf16>
      tpu.vector_store %arg8[%c0_83, %c128_84], %61 {strides = array<i32>} : memref<16x1152xbf16, #tpu.memory_space<vmem>>, vector<16x128xbf16>,
      %c0_85 = arith.constant 0 : index
      %c2_86 = arith.constant 2 : index
      %c0_87 = arith.constant 0 : index
      %63 = vector.load %arg7[%c0_85, %c2_86, %c0_87] : memref<6x6x128xbf16, #tpu.memory_space<vmem>>, vector<4x4x128xbf16>
      %64 = vector.shape_cast %63 : vector<4x4x128xbf16> to vector<16x128xbf16>
      %c0_88 = arith.constant 0 : index
      %c256_89 = arith.constant 256 : index
      %65 = vector.load %arg8[%c0_88, %c256_89] : memref<16x1152xbf16, #tpu.memory_space<vmem>>, vector<16x128xbf16>
      tpu.vector_store %arg8[%c0_88, %c256_89], %64 {strides = array<i32>} : memref<16x1152xbf16, #tpu.memory_space<vmem>>, vector<16x128xbf16>,
      %c1_90 = arith.constant 1 : index
      %c0_91 = arith.constant 0 : index
      %c0_92 = arith.constant 0 : index
      %66 = vector.load %arg7[%c1_90, %c0_91, %c0_92] : memref<6x6x128xbf16, #tpu.memory_space<vmem>>, vector<4x4x128xbf16>
      %67 = vector.shape_cast %66 : vector<4x4x128xbf16> to vector<16x128xbf16>
      %c0_93 = arith.constant 0 : index
      %c384_94 = arith.constant 384 : index
      %68 = vector.load %arg8[%c0_93, %c384_94] : memref<16x1152xbf16, #tpu.memory_space<vmem>>, vector<16x128xbf16>
      tpu.vector_store %arg8[%c0_93, %c384_94], %67 {strides = array<i32>} : memref<16x1152xbf16, #tpu.memory_space<vmem>>, vector<16x128xbf16>,
      %c1_95 = arith.constant 1 : index
      %c1_96 = arith.constant 1 : index
      %c0_97 = arith.constant 0 : index
      %69 = vector.load %arg7[%c1_95, %c1_96, %c0_97] : memref<6x6x128xbf16, #tpu.memory_space<vmem>>, vector<4x4x128xbf16>
      %70 = vector.shape_cast %69 : vector<4x4x128xbf16> to vector<16x128xbf16>
      %c0_98 = arith.constant 0 : index
      %c512_99 = arith.constant 512 : index
      %71 = vector.load %arg8[%c0_98, %c512_99] : memref<16x1152xbf16, #tpu.memory_space<vmem>>, vector<16x128xbf16>
      tpu.vector_store %arg8[%c0_98, %c512_99], %70 {strides = array<i32>} : memref<16x1152xbf16, #tpu.memory_space<vmem>>, vector<16x128xbf16>,
      %c1_100 = arith.constant 1 : index
      %c2_101 = arith.constant 2 : index
      %c0_102 = arith.constant 0 : index
      %72 = vector.load %arg7[%c1_100, %c2_101, %c0_102] : memref<6x6x128xbf16, #tpu.memory_space<vmem>>, vector<4x4x128xbf16>
      %73 = vector.shape_cast %72 : vector<4x4x128xbf16> to vector<16x128xbf16>
      %c0_103 = arith.constant 0 : index
      %c640_104 = arith.constant 640 : index
      %74 = vector.load %arg8[%c0_103, %c640_104] : memref<16x1152xbf16, #tpu.memory_space<vmem>>, vector<16x128xbf16>
      tpu.vector_store %arg8[%c0_103, %c640_104], %73 {strides = array<i32>} : memref<16x1152xbf16, #tpu.memory_space<vmem>>, vector<16x128xbf16>,
      %c2_105 = arith.constant 2 : index
      %c0_106 = arith.constant 0 : index
      %c0_107 = arith.constant 0 : index
      %75 = vector.load %arg7[%c2_105, %c0_106, %c0_107] : memref<6x6x128xbf16, #tpu.memory_space<vmem>>, vector<4x4x128xbf16>
      %76 = vector.shape_cast %75 : vector<4x4x128xbf16> to vector<16x128xbf16>
      %c0_108 = arith.constant 0 : index
      %c768_109 = arith.constant 768 : index
      %77 = vector.load %arg8[%c0_108, %c768_109] : memref<16x1152xbf16, #tpu.memory_space<vmem>>, vector<16x128xbf16>
      tpu.vector_store %arg8[%c0_108, %c768_109], %76 {strides = array<i32>} : memref<16x1152xbf16, #tpu.memory_space<vmem>>, vector<16x128xbf16>,
      %c2_110 = arith.constant 2 : index
      %c1_111 = arith.constant 1 : index
      %c0_112 = arith.constant 0 : index
      %78 = vector.load %arg7[%c2_110, %c1_111, %c0_112] : memref<6x6x128xbf16, #tpu.memory_space<vmem>>, vector<4x4x128xbf16>
      %79 = vector.shape_cast %78 : vector<4x4x128xbf16> to vector<16x128xbf16>
      %c0_113 = arith.constant 0 : index
      %c896_114 = arith.constant 896 : index
      %80 = vector.load %arg8[%c0_113, %c896_114] : memref<16x1152xbf16, #tpu.memory_space<vmem>>, vector<16x128xbf16>
      tpu.vector_store %arg8[%c0_113, %c896_114], %79 {strides = array<i32>} : memref<16x1152xbf16, #tpu.memory_space<vmem>>, vector<16x128xbf16>,
      %c2_115 = arith.constant 2 : index
      %c2_116 = arith.constant 2 : index
      %c0_117 = arith.constant 0 : index
      %81 = vector.load %arg7[%c2_115, %c2_116, %c0_117] : memref<6x6x128xbf16, #tpu.memory_space<vmem>>, vector<4x4x128xbf16>
      %82 = vector.shape_cast %81 : vector<4x4x128xbf16> to vector<16x128xbf16>
      %c0_118 = arith.constant 0 : index
      %c1024_119 = arith.constant 1024 : index
      %83 = vector.load %arg8[%c0_118, %c1024_119] : memref<16x1152xbf16, #tpu.memory_space<vmem>>, vector<16x128xbf16>
      tpu.vector_store %arg8[%c0_118, %c1024_119], %82 {strides = array<i32>} : memref<16x1152xbf16, #tpu.memory_space<vmem>>, vector<16x128xbf16>,
      %c0_120 = arith.constant 0 : index
      %c0_121 = arith.constant 0 : index
      %84 = vector.load %arg8[%c0_120, %c0_121] : memref<16x1152xbf16, #tpu.memory_space<vmem>>, vector<16x1152xbf16>
      %c0_122 = arith.constant 0 : index
      %c0_123 = arith.constant 0 : index
      %85 = vector.load %arg4[%c0_122, %c0_123] : memref<1152x128xbf16, #tpu.memory_space<vmem>>, vector<1152x128xbf16>
      %cst_124 = arith.constant dense<0.000000e+00> : vector<16x128xf32>
      %86 = tpu.matmul %84, %85, %cst_124 {dimension_numbers = #tpu.dot_dimension_numbers<[1], [0], [0], [1], [0, 0, 1, 1], [], []>} : vector<16x1152xbf16>, vector<1152x128xbf16>, vector<16x128xf32> -> vector<16x128xf32>
      %cst_125 = arith.constant 0.000000e+00 : f32
      %87 = vector.broadcast %cst_125 : f32 to vector<16x128xf32>
      %88 = arith.maximumf %86, %87 : vector<16x128xf32>
      %c0_126 = arith.constant 0 : index
      %c0_127 = arith.constant 0 : index
      %89 = vector.load %arg9[%c0_126, %c0_127] : memref<16x128xf32, #tpu.memory_space<vmem>>, vector<16x128xf32>
      %90 = arith.truncf %88 : vector<16x128xf32> to vector<16x128xbf16>
      %c0_128 = arith.constant 0 : index
      %c0_129 = arith.constant 0 : index
      %91 = vector.load %arg5[%c0_128, %c0_129] : memref<128x128xbf16, #tpu.memory_space<vmem>>, vector<128x128xbf16>
      %cst_130 = arith.constant dense<0.000000e+00> : vector<16x128xf32>
      %92 = tpu.matmul %90, %91, %cst_130 {dimension_numbers = #tpu.dot_dimension_numbers<[1], [0], [0], [1], [0, 0, 1, 1], [], []>} : vector<16x128xbf16>, vector<128x128xbf16>, vector<16x128xf32> -> vector<16x128xf32>
      %93 = arith.addf %89, %92 : vector<16x128xf32>
      %c0_131 = arith.constant 0 : index
      %c0_132 = arith.constant 0 : index
      %94 = vector.load %arg9[%c0_131, %c0_132] : memref<16x128xf32, #tpu.memory_space<vmem>>, vector<16x128xf32>
      tpu.vector_store %arg9[%c0_131, %c0_132], %93 {strides = array<i32>} : memref<16x128xf32, #tpu.memory_space<vmem>>, vector<16x128xf32>,
    }
    %c0_62 = arith.constant 0 : index
    %c0_63 = arith.constant 0 : index
    %44 = vector.load %arg9[%c0_62, %c0_63] : memref<16x128xf32, #tpu.memory_space<vmem>>, vector<16x128xf32>
    %cst_64 = arith.constant 0.000000e+00 : f32
    %45 = vector.broadcast %cst_64 : f32 to vector<16x128xf32>
    %46 = arith.maximumf %44, %45 : vector<16x128xf32>
    %47 = vector.shape_cast %46 : vector<16x128xf32> to vector<4x4x128xf32>
    %c0_65 = arith.constant 0 : index
    %c0_66 = arith.constant 0 : index
    %c0_67 = arith.constant 0 : index
    %c0_68 = arith.constant 0 : index
    %48 = vector.load %arg6[%c0_65, %c0_66, %c0_67, %c0_68] : memref<1x4x4x128xf32, #tpu.memory_space<vmem>>, vector<1x4x4x128xf32>
    %49 = vector.shape_cast %48 : vector<1x4x4x128xf32> to vector<4x4x128xf32>
    %50 = vector.shape_cast %47 : vector<4x4x128xf32> to vector<1x4x4x128xf32>
    tpu.vector_store %arg6[%c0_65, %c0_66, %c0_67, %c0_68], %50 {strides = array<i32>} : memref<1x4x4x128xf32, #tpu.memory_space<vmem>>, vector<1x4x4x128xf32>,
    return
  }
  func.func @transform_0(%arg0: i32) -> (i32, i32, i32, i32) {
    %c0_i32 = arith.constant 0 : i32
    %c0_i32_0 = arith.constant 0 : i32
    %c0_i32_1 = arith.constant 0 : i32
    %c0_i32_2 = arith.constant 0 : i32
    return %arg0, %c0_i32, %c0_i32_0, %c0_i32_1 : i32, i32, i32, i32
  }
  func.func @transform_1(%arg0: i32) -> (i32, i32) {
    %c0_i32 = arith.constant 0 : i32
    %c0_i32_0 = arith.constant 0 : i32
    %c0_i32_1 = arith.constant 0 : i32
    return %c0_i32, %c0_i32_0 : i32, i32
  }
  func.func @transform_2(%arg0: i32) -> (i32, i32) {
    %c0_i32 = arith.constant 0 : i32
    %c0_i32_0 = arith.constant 0 : i32
    %c0_i32_1 = arith.constant 0 : i32
    return %c0_i32, %c0_i32_0 : i32, i32
  }
  func.func @transform_3(%arg0: i32) -> (i32, i32) {
    %c0_i32 = arith.constant 0 : i32
    %c0_i32_0 = arith.constant 0 : i32
    %c0_i32_1 = arith.constant 0 : i32
    return %c0_i32, %c0_i32_0 : i32, i32
  }
  func.func @transform_4(%arg0: i32) -> (i32, i32) {
    %c0_i32 = arith.constant 0 : i32
    %c0_i32_0 = arith.constant 0 : i32
    %c0_i32_1 = arith.constant 0 : i32
    return %c0_i32, %c0_i32_0 : i32, i32
  }
  func.func @transform_5(%arg0: i32) -> (i32, i32, i32, i32) {
    %c0_i32 = arith.constant 0 : i32
    %c0_i32_0 = arith.constant 0 : i32
    %c0_i32_1 = arith.constant 0 : i32
    %c0_i32_2 = arith.constant 0 : i32
    return %arg0, %c0_i32, %c0_i32_0, %c0_i32_1 : i32, i32, i32, i32
  }
}

</mosaic_0001>

<llo_original>
// kernel: encoder_forward.3
$region0: #{encoder_forward.3}
  #allocation0 [shape = 'u32[]', space=smem, size = 0x4, offset = 0x4, fixed_abs, tag = 'smem constant byte address 0x4 - core index']
  #allocation1 [shape = 'u32[72,128]{1,0:T(1,128)}', space=vmem, size = 0x9000, scoped, tag = 'internal scratch']
  #allocation2 [shape = 'f32[128,128]{1,0:T(8,128)}', space=vmem, size = 0x10000, scoped, tag = 'scratch operand']
  %s0 = inlined_call_operand.vmem [shape: bf16[128,128], index: 0, kind: input, shape index: {}]
  %s1 = inlined_call_operand.vmem [shape: bf16[128,128], index: 1, kind: input, shape index: {}]
  %s2 = inlined_call_operand.vmem [shape: f32[1,128], index: 2, kind: input, shape index: {}]
  %s3 = inlined_call_operand.vmem [shape: bf16[128,128], index: 3, kind: output, shape index: {}]
  %s4 = sld [smem:[#allocation0]]
  $region30: #{encoder_forward.3} parent=0
    _
  %s6 = ssub.s32 1, %s4
  %s7 = scalar_select 0, %s6, %s4
  // Predicated region
  $region2: #{encoder_forward.3} parent=0 // pred_check
    _
  $region3: #{encoder_forward.3} parent=0 // pred_check_branch
    %9 = sbr.rel (0) target = $region5
  $region4: #{encoder_forward.3} parent=0 // pred_region
    _
  $region5: #{encoder_forward.3} parent=0 // pred_fallthru
    _
  // Predicated region
  $region6: #{encoder_forward.3} parent=0 // pred_check
    _
  $region7: #{encoder_forward.3} parent=0 // pred_check_branch
    %11 = sbr.rel (0) target = $region9
  $region8: #{encoder_forward.3} parent=0 // pred_region
    _
  $region9: #{encoder_forward.3} parent=0 // pred_fallthru
    _
  // Predicated region
  $region10: #{encoder_forward.3} parent=0 // pred_check
    _
  $region11: #{encoder_forward.3} parent=0 // pred_check_branch
    %13 = sbr.rel (0) target = $region13
  $region12: #{encoder_forward.3} parent=0 // pred_region
    _
  $region13: #{encoder_forward.3} parent=0 // pred_fallthru
    _
  %p14 = scmp.eq.s32.totalorder 0, 0
  // Predicated region
  $region14: #{encoder_forward.3} parent=0 // pred_check
    %p15 = pneg %p14
  $region15: #{encoder_forward.3} parent=0 // pred_check_branch
    %17 = sbr.rel (%p15) target = $region17
  $region16: #{encoder_forward.3} parent=0 // pred_region
    %18 = vst [vmem:[#allocation2] sm:$0xff] 0.0
    %19 = vst [vmem:[#allocation2 + $0x8] sm:$0xff] 0.0
    %20 = vst [vmem:[#allocation2 + $0x10] sm:$0xff] 0.0
    %21 = vst [vmem:[#allocation2 + $0x18] sm:$0xff] 0.0
    %22 = vst [vmem:[#allocation2 + $0x20] sm:$0xff] 0.0
    %23 = vst [vmem:[#allocation2 + $0x28] sm:$0xff] 0.0
    %24 = vst [vmem:[#allocation2 + $0x30] sm:$0xff] 0.0
    %25 = vst [vmem:[#allocation2 + $0x38] sm:$0xff] 0.0
    %26 = vst [vmem:[#allocation2 + $0x40] sm:$0xff] 0.0
    %27 = vst [vmem:[#allocation2 + $0x48] sm:$0xff] 0.0
    %28 = vst [vmem:[#allocation2 + $0x50] sm:$0xff] 0.0
    %29 = vst [vmem:[#allocation2 + $0x58] sm:$0xff] 0.0
    %30 = vst [vmem:[#allocation2 + $0x60] sm:$0xff] 0.0
    %31 = vst [vmem:[#allocation2 + $0x68] sm:$0xff] 0.0
    %32 = vst [vmem:[#allocation2 + $0x70] sm:$0xff] 0.0
    %33 = vst [vmem:[#allocation2 + $0x78] sm:$0xff] 0.0
  $region17: #{encoder_forward.3} parent=0 // pred_fallthru
    _
  %v34 = vld [vmem:[#allocation2] sm:$0xff]
  %v35 = vld [vmem:[#allocation2 + $0x8] sm:$0xff]
  %v36 = vld [vmem:[#allocation2 + $0x10] sm:$0xff]
  %v37 = vld [vmem:[#allocation2 + $0x18] sm:$0xff]
  %v38 = vld [vmem:[#allocation2 + $0x20] sm:$0xff]
  %v39 = vld [vmem:[#allocation2 + $0x28] sm:$0xff]
  %v40 = vld [vmem:[#allocation2 + $0x30] sm:$0xff]
  %v41 = vld [vmem:[#allocation2 + $0x38] sm:$0xff]
  %v42 = vld [vmem:[#allocation2 + $0x40] sm:$0xff]
  %v43 = vld [vmem:[#allocation2 + $0x48] sm:$0xff]
  %v44 = vld [vmem:[#allocation2 + $0x50] sm:$0xff]
  %v45 = vld [vmem:[#allocation2 + $0x58] sm:$0xff]
  %v46 = vld [vmem:[#allocation2 + $0x60] sm:$0xff]
  %v47 = vld [vmem:[#allocation2 + $0x68] sm:$0xff]
  %v48 = vld [vmem:[#allocation2 + $0x70] sm:$0xff]
  %v49 = vld [vmem:[#allocation2 + $0x78] sm:$0xff]
  %v50 = vld [vmem:[%s0] sm:$0xf]
  %v51 = vld [vmem:[%s0 + $0x4] sm:$0xf]
  %v52 = vld [vmem:[%s0 + $0x8] sm:$0xf]
  %v53 = vld [vmem:[%s0 + $0xc] sm:$0xf]
  %v54 = vld [vmem:[%s0 + $0x10] sm:$0xf]
  %v55 = vld [vmem:[%s0 + $0x14] sm:$0xf]
  %v56 = vld [vmem:[%s0 + $0x18] sm:$0xf]
  %v57 = vld [vmem:[%s0 + $0x1c] sm:$0xf]
  %v58 = vld [vmem:[%s0 + $0x20] sm:$0xf]
  %v59 = vld [vmem:[%s0 + $0x24] sm:$0xf]
  %v60 = vld [vmem:[%s0 + $0x28] sm:$0xf]
  %v61 = vld [vmem:[%s0 + $0x2c] sm:$0xf]
  %v62 = vld [vmem:[%s0 + $0x30] sm:$0xf]
  %v63 = vld [vmem:[%s0 + $0x34] sm:$0xf]
  %v64 = vld [vmem:[%s0 + $0x38] sm:$0xf]
  %v65 = vld [vmem:[%s0 + $0x3c] sm:$0xf]
  %v66 = vld [vmem:[%s1] sm:$0xf]
  %v67 = vld [vmem:[%s1 + $0x4] sm:$0xf]
  %v68 = vld [vmem:[%s1 + $0x8] sm:$0xf]
  %v69 = vld [vmem:[%s1 + $0xc] sm:$0xf]
  %v70 = vld [vmem:[%s1 + $0x10] sm:$0xf]
  %v71 = vld [vmem:[%s1 + $0x14] sm:$0xf]
  %v72 = vld [vmem:[%s1 + $0x18] sm:$0xf]
  %v73 = vld [vmem:[%s1 + $0x1c] sm:$0xf]
  %v74 = vld [vmem:[%s1 + $0x20] sm:$0xf]
  %v75 = vld [vmem:[%s1 + $0x24] sm:$0xf]
  %v76 = vld [vmem:[%s1 + $0x28] sm:$0xf]
  %v77 = vld [vmem:[%s1 + $0x2c] sm:$0xf]
  %v78 = vld [vmem:[%s1 + $0x30] sm:$0xf]
  %v79 = vld [vmem:[%s1 + $0x34] sm:$0xf]
  %v80 = vld [vmem:[%s1 + $0x38] sm:$0xf]
  %v81 = vld [vmem:[%s1 + $0x3c] sm:$0xf]
  %v98 = vunpack.c.l.b16 %v50
  %v99 = vunpack.c.l.b16 %v51
  %v100 = vunpack.c.l.b16 %v52
  %v101 = vunpack.c.l.b16 %v53
  %v102 = vunpack.c.l.b16 %v54
  %v103 = vunpack.c.l.b16 %v55
  %v104 = vunpack.c.l.b16 %v56
  %v105 = vunpack.c.l.b16 %v57
  %v106 = vunpack.c.l.b16 %v58
  %v107 = vunpack.c.l.b16 %v59
  %v108 = vunpack.c.l.b16 %v60
  %v109 = vunpack.c.l.b16 %v61
  %v110 = vunpack.c.l.b16 %v62
  %v111 = vunpack.c.l.b16 %v63
  %v112 = vunpack.c.l.b16 %v64
  %v113 = vunpack.c.l.b16 %v65
  %v114 = vpack.c.b16 %v99, %v98
  %v115 = vpack.c.b16 %v101, %v100
  %v116 = vpack.c.b16 %v103, %v102
  %v117 = vpack.c.b16 %v105, %v104
  %v118 = vpack.c.b16 %v107, %v106
  %v119 = vpack.c.b16 %v109, %v108
  %v120 = vpack.c.b16 %v111, %v110
  %v121 = vpack.c.b16 %v113, %v112
  %v146 = vunpack.c.l.b16 %v66
  %v147 = vunpack.c.l.b16 %v67
  %v148 = vunpack.c.l.b16 %v68
  %v149 = vunpack.c.l.b16 %v69
  %v150 = vunpack.c.l.b16 %v70
  %v151 = vunpack.c.l.b16 %v71
  %v152 = vunpack.c.l.b16 %v72
  %v153 = vunpack.c.l.b16 %v73
  %v154 = vunpack.c.l.b16 %v74
  %v155 = vunpack.c.l.b16 %v75
  %v156 = vunpack.c.l.b16 %v76
  %v157 = vunpack.c.l.b16 %v77
  %v158 = vunpack.c.l.b16 %v78
  %v159 = vunpack.c.l.b16 %v79
  %v160 = vunpack.c.l.b16 %v80
  %v161 = vunpack.c.l.b16 %v81
  %v162 = vpack.c.b16 %v147, %v146
  %v163 = vpack.c.b16 %v149, %v148
  %v164 = vpack.c.b16 %v151, %v150
  %v165 = vpack.c.b16 %v153, %v152
  %v166 = vpack.c.b16 %v155, %v154
  %v167 = vpack.c.b16 %v157, %v156
  %v168 = vpack.c.b16 %v159, %v158
  %v169 = vpack.c.b16 %v161, %v160
  %178 = vmatpush.bf16.msra.mxu0 %v169
  %179 = vmatpush.bf16.msra.mxu0 %v168
  %180 = vmatpush.bf16.msra.mxu0 %v167
  %181 = vmatpush.bf16.msra.mxu0 %v166
  %182 = vmatpush.bf16.msra.mxu0 %v165
  %183 = vmatpush.bf16.msra.mxu0 %v164
  %184 = vmatpush.bf16.msra.mxu0 %v163
  %185 = vmatpush.bf16.msra.mxu0 %v162
  %186 = vmatmul.bf16.gmra.mxu0 %v114
  %v187 = vpop.f32.mrf.mxu0
  %v188 = vadd.f32 0.0, %v187
  %v189 = vpop.f32.mrf.mxu0
  %v190 = vadd.f32 0.0, %v189
  %191 = vmatmul.bf16.gmra.mxu0 %v115
  %v192 = vpop.f32.mrf.mxu0
  %v193 = vadd.f32 0.0, %v192
  %v194 = vpop.f32.mrf.mxu0
  %v195 = vadd.f32 0.0, %v194
  %196 = vmatmul.bf16.gmra.mxu0 %v116
  %v197 = vpop.f32.mrf.mxu0
  %v198 = vadd.f32 0.0, %v197
  %v199 = vpop.f32.mrf.mxu0
  %v200 = vadd.f32 0.0, %v199
  %201 = vmatmul.bf16.gmra.mxu0 %v117
  %v202 = vpop.f32.mrf.mxu0
  %v203 = vadd.f32 0.0, %v202
  %v204 = vpop.f32.mrf.mxu0
  %v205 = vadd.f32 0.0, %v204
  %206 = vmatmul.bf16.gmra.mxu0 %v118
  %v207 = vpop.f32.mrf.mxu0
  %v208 = vadd.f32 0.0, %v207
  %v209 = vpop.f32.mrf.mxu0
  %v210 = vadd.f32 0.0, %v209
  %211 = vmatmul.bf16.gmra.mxu0 %v119
  %v212 = vpop.f32.mrf.mxu0
  %v213 = vadd.f32 0.0, %v212
  %v214 = vpop.f32.mrf.mxu0
  %v215 = vadd.f32 0.0, %v214
  %216 = vmatmul.bf16.gmra.mxu0 %v120
  %v217 = vpop.f32.mrf.mxu0
  %v218 = vadd.f32 0.0, %v217
  %v219 = vpop.f32.mrf.mxu0
  %v220 = vadd.f32 0.0, %v219
  %221 = vmatmul.bf16.gmra.mxu0 %v121
  %v222 = vpop.f32.mrf.mxu0
  %v223 = vadd.f32 0.0, %v222
  %v224 = vpop.f32.mrf.mxu0
  %v225 = vadd.f32 0.0, %v224
  %226 = vdwg.mxu0
  %v227 = vadd.f32 %v34, %v188
  %v228 = vadd.f32 %v35, %v190
  %v229 = vadd.f32 %v36, %v193
  %v230 = vadd.f32 %v37, %v195
  %v231 = vadd.f32 %v38, %v198
  %v232 = vadd.f32 %v39, %v200
  %v233 = vadd.f32 %v40, %v203
  %v234 = vadd.f32 %v41, %v205
  %v235 = vadd.f32 %v42, %v208
  %v236 = vadd.f32 %v43, %v210
  %v237 = vadd.f32 %v44, %v213
  %v238 = vadd.f32 %v45, %v215
  %v239 = vadd.f32 %v46, %v218
  %v240 = vadd.f32 %v47, %v220
  %v241 = vadd.f32 %v48, %v223
  %v242 = vadd.f32 %v49, %v225
  %243 = vst [vmem:[#allocation2] sm:$0xff] %v227
  %244 = vst [vmem:[#allocation2 + $0x8] sm:$0xff] %v228
  %245 = vst [vmem:[#allocation2 + $0x10] sm:$0xff] %v229
  %246 = vst [vmem:[#allocation2 + $0x18] sm:$0xff] %v230
  %247 = vst [vmem:[#allocation2 + $0x20] sm:$0xff] %v231
  %248 = vst [vmem:[#allocation2 + $0x28] sm:$0xff] %v232
  %249 = vst [vmem:[#allocation2 + $0x30] sm:$0xff] %v233
  %250 = vst [vmem:[#allocation2 + $0x38] sm:$0xff] %v234
  %251 = vst [vmem:[#allocation2 + $0x40] sm:$0xff] %v235
  %252 = vst [vmem:[#allocation2 + $0x48] sm:$0xff] %v236
  %253 = vst [vmem:[#allocation2 + $0x50] sm:$0xff] %v237
  %254 = vst [vmem:[#allocation2 + $0x58] sm:$0xff] %v238
  %255 = vst [vmem:[#allocation2 + $0x60] sm:$0xff] %v239
  %256 = vst [vmem:[#allocation2 + $0x68] sm:$0xff] %v240
  %257 = vst [vmem:[#allocation2 + $0x70] sm:$0xff] %v241
  %258 = vst [vmem:[#allocation2 + $0x78] sm:$0xff] %v242
  // Predicated region
  $region18: #{encoder_forward.3} parent=0 // pred_check
    %p259 = pneg %p14
  $region19: #{encoder_forward.3} parent=0 // pred_check_branch
    %261 = sbr.rel (%p259) target = $region21
  $region20: #{encoder_forward.3} parent=0 // pred_region
    %v262 = vld [vmem:[#allocation2] sm:$0xff]
    %v263 = vld [vmem:[#allocation2 + $0x8] sm:$0xff]
    %v264 = vld [vmem:[#allocation2 + $0x10] sm:$0xff]
    %v265 = vld [vmem:[#allocation2 + $0x18] sm:$0xff]
    %v266 = vld [vmem:[#allocation2 + $0x20] sm:$0xff]
    %v267 = vld [vmem:[#allocation2 + $0x28] sm:$0xff]
    %v268 = vld [vmem:[#allocation2 + $0x30] sm:$0xff]
    %v269 = vld [vmem:[#allocation2 + $0x38] sm:$0xff]
    %v270 = vld [vmem:[#allocation2 + $0x40] sm:$0xff]
    %v271 = vld [vmem:[#allocation2 + $0x48] sm:$0xff]
    %v272 = vld [vmem:[#allocation2 + $0x50] sm:$0xff]
    %v273 = vld [vmem:[#allocation2 + $0x58] sm:$0xff]
    %v274 = vld [vmem:[#allocation2 + $0x60] sm:$0xff]
    %v275 = vld [vmem:[#allocation2 + $0x68] sm:$0xff]
    %v276 = vld [vmem:[#allocation2 + $0x70] sm:$0xff]
    %v277 = vld [vmem:[#allocation2 + $0x78] sm:$0xff]
    %v278 = vld [vmem:[%s2] sm:$0x1]
    %v280 = vperm.slane %v278, 0
    %v282 = vadd.f32 %v262, %v280
    %v283 = vadd.f32 %v263, %v280
    %v284 = vadd.f32 %v264, %v280
    %v285 = vadd.f32 %v265, %v280
    %v286 = vadd.f32 %v266, %v280
    %v287 = vadd.f32 %v267, %v280
    %v288 = vadd.f32 %v268, %v280
    %v289 = vadd.f32 %v269, %v280
    %v290 = vadd.f32 %v270, %v280
    %v291 = vadd.f32 %v271, %v280
    %v292 = vadd.f32 %v272, %v280
    %v293 = vadd.f32 %v273, %v280
    %v294 = vadd.f32 %v274, %v280
    %v295 = vadd.f32 %v275, %v280
    %v296 = vadd.f32 %v276, %v280
    %v297 = vadd.f32 %v277, %v280
    %v298 = vmax.f32 %v282, 0.0
    %v299 = vmax.f32 %v283, 0.0
    %v300 = vmax.f32 %v284, 0.0
    %v301 = vmax.f32 %v285, 0.0
    %v302 = vmax.f32 %v286, 0.0
    %v303 = vmax.f32 %v287, 0.0
    %v304 = vmax.f32 %v288, 0.0
    %v305 = vmax.f32 %v289, 0.0
    %v306 = vmax.f32 %v290, 0.0
    %v307 = vmax.f32 %v291, 0.0
    %v308 = vmax.f32 %v292, 0.0
    %v309 = vmax.f32 %v293, 0.0
    %v310 = vmax.f32 %v294, 0.0
    %v311 = vmax.f32 %v295, 0.0
    %v312 = vmax.f32 %v296, 0.0
    %v313 = vmax.f32 %v297, 0.0
    %v314 = vpack.c.bf16 %v298, %v298
    %v315 = vpack.c.bf16 %v299, %v299
    %v316 = vpack.c.bf16 %v300, %v300
    %v317 = vpack.c.bf16 %v301, %v301
    %v318 = vpack.c.bf16 %v302, %v302
    %v319 = vpack.c.bf16 %v303, %v303
    %v320 = vpack.c.bf16 %v304, %v304
    %v321 = vpack.c.bf16 %v305, %v305
    %v322 = vpack.c.bf16 %v306, %v306
    %v323 = vpack.c.bf16 %v307, %v307
    %v324 = vpack.c.bf16 %v308, %v308
    %v325 = vpack.c.bf16 %v309, %v309
    %v326 = vpack.c.bf16 %v310, %v310
    %v327 = vpack.c.bf16 %v311, %v311
    %v328 = vpack.c.bf16 %v312, %v312
    %v329 = vpack.c.bf16 %v313, %v313
    %330 = vst [vmem:[%s3] sm:$0xf] %v314
    %331 = vst [vmem:[%s3 + $0x4] sm:$0xf] %v315
    %332 = vst [vmem:[%s3 + $0x8] sm:$0xf] %v316
    %333 = vst [vmem:[%s3 + $0xc] sm:$0xf] %v317
    %334 = vst [vmem:[%s3 + $0x10] sm:$0xf] %v318
    %335 = vst [vmem:[%s3 + $0x14] sm:$0xf] %v319
    %336 = vst [vmem:[%s3 + $0x18] sm:$0xf] %v320
    %337 = vst [vmem:[%s3 + $0x1c] sm:$0xf] %v321
    %338 = vst [vmem:[%s3 + $0x20] sm:$0xf] %v322
    %339 = vst [vmem:[%s3 + $0x24] sm:$0xf] %v323
    %340 = vst [vmem:[%s3 + $0x28] sm:$0xf] %v324
    %341 = vst [vmem:[%s3 + $0x2c] sm:$0xf] %v325
    %342 = vst [vmem:[%s3 + $0x30] sm:$0xf] %v326
    %343 = vst [vmem:[%s3 + $0x34] sm:$0xf] %v327
    %344 = vst [vmem:[%s3 + $0x38] sm:$0xf] %v328
    %345 = vst [vmem:[%s3 + $0x3c] sm:$0xf] %v329
  $region21: #{encoder_forward.3} parent=0 // pred_fallthru
    _
  // Predicated region
  $region22: #{encoder_forward.3} parent=0 // pred_check
    _
  $region23: #{encoder_forward.3} parent=0 // pred_check_branch
    %347 = sbr.rel (0) target = $region25
  $region24: #{encoder_forward.3} parent=0 // pred_region
    _
  $region25: #{encoder_forward.3} parent=0 // pred_fallthru
    _
  // Predicated region
  $region26: #{encoder_forward.3} parent=0 // pred_check
    _
  $region27: #{encoder_forward.3} parent=0 // pred_check_branch
    %349 = sbr.rel (0) target = $region29
  $region28: #{encoder_forward.3} parent=0 // pred_region
    _
  $region29: #{encoder_forward.3} parent=0 // pred_fallthru
    _

// kernel: encoder_forward.4
$region0: #{encoder_forward.4}
  #allocation0 [shape = 'u32[]', space=smem, size = 0x4, offset = 0x4, fixed_abs, tag = 'smem constant byte address 0x4 - core index']
  #allocation1 [shape = 'u32[72,128]{1,0:T(1,128)}', space=vmem, size = 0x9000, scoped, tag = 'internal scratch']
  #allocation2 [shape = 'f32[32,128]{1,0:T(8,128)}', space=vmem, size = 0x4000, scoped, tag = 'scratch operand']
  %s0 = inlined_call_operand.vmem [shape: bf16[32,256], index: 0, kind: input, shape index: {}]
  %s1 = inlined_call_operand.vmem [shape: bf16[256,128], index: 1, kind: input, shape index: {}]
  %s2 = inlined_call_operand.vmem [shape: f32[1,128], index: 2, kind: input, shape index: {}]
  %s3 = inlined_call_operand.vmem [shape: bf16[32,128], index: 3, kind: output, shape index: {}]
  %s4 = sld [smem:[#allocation0]]
  $region30: #{encoder_forward.4} parent=0
    _
  %s6 = ssub.s32 1, %s4
  %s7 = scalar_select 0, %s6, %s4
  // Predicated region
  $region2: #{encoder_forward.4} parent=0 // pred_check
    _
  $region3: #{encoder_forward.4} parent=0 // pred_check_branch
    %9 = sbr.rel (0) target = $region5
  $region4: #{encoder_forward.4} parent=0 // pred_region
    _
  $region5: #{encoder_forward.4} parent=0 // pred_fallthru
    _
  // Predicated region
  $region6: #{encoder_forward.4} parent=0 // pred_check
    _
  $region7: #{encoder_forward.4} parent=0 // pred_check_branch
    %11 = sbr.rel (0) target = $region9
  $region8: #{encoder_forward.4} parent=0 // pred_region
    _
  $region9: #{encoder_forward.4} parent=0 // pred_fallthru
    _
  // Predicated region
  $region10: #{encoder_forward.4} parent=0 // pred_check
    _
  $region11: #{encoder_forward.4} parent=0 // pred_check_branch
    %13 = sbr.rel (0) target = $region13
  $region12: #{encoder_forward.4} parent=0 // pred_region
    _
  $region13: #{encoder_forward.4} parent=0 // pred_fallthru
    _
  %p14 = scmp.eq.s32.totalorder 0, 0
  // Predicated region
  $region14: #{encoder_forward.4} parent=0 // pred_check
    %p15 = pneg %p14
  $region15: #{encoder_forward.4} parent=0 // pred_check_branch
    %17 = sbr.rel (%p15) target = $region17
  $region16: #{encoder_forward.4} parent=0 // pred_region
    %18 = vst [vmem:[#allocation2] sm:$0xff] 0.0
    %19 = vst [vmem:[#allocation2 + $0x8] sm:$0xff] 0.0
    %20 = vst [vmem:[#allocation2 + $0x10] sm:$0xff] 0.0
    %21 = vst [vmem:[#allocation2 + $0x18] sm:$0xff] 0.0
  $region17: #{encoder_forward.4} parent=0 // pred_fallthru
    _
  %v22 = vld [vmem:[#allocation2] sm:$0xff]
  %v23 = vld [vmem:[#allocation2 + $0x8] sm:$0xff]
  %v24 = vld [vmem:[#allocation2 + $0x10] sm:$0xff]
  %v25 = vld [vmem:[#allocation2 + $0x18] sm:$0xff]
  %v26 = vld [vmem:[%s0] sm:$0xff]
  %v27 = vld [vmem:[%s0 + $0x8] sm:$0xff]
  %v28 = vld [vmem:[%s0 + $0x10] sm:$0xff]
  %v29 = vld [vmem:[%s0 + $0x18] sm:$0xff]
  %v30 = vld [vmem:[%s1] sm:$0xf]
  %v31 = vld [vmem:[%s1 + $0x4] sm:$0xf]
  %v32 = vld [vmem:[%s1 + $0x8] sm:$0xf]
  %v33 = vld [vmem:[%s1 + $0xc] sm:$0xf]
  %v34 = vld [vmem:[%s1 + $0x10] sm:$0xf]
  %v35 = vld [vmem:[%s1 + $0x14] sm:$0xf]
  %v36 = vld [vmem:[%s1 + $0x18] sm:$0xf]
  %v37 = vld [vmem:[%s1 + $0x1c] sm:$0xf]
  %v38 = vld [vmem:[%s1 + $0x20] sm:$0xf]
  %v39 = vld [vmem:[%s1 + $0x24] sm:$0xf]
  %v40 = vld [vmem:[%s1 + $0x28] sm:$0xf]
  %v41 = vld [vmem:[%s1 + $0x2c] sm:$0xf]
  %v42 = vld [vmem:[%s1 + $0x30] sm:$0xf]
  %v43 = vld [vmem:[%s1 + $0x34] sm:$0xf]
  %v44 = vld [vmem:[%s1 + $0x38] sm:$0xf]
  %v45 = vld [vmem:[%s1 + $0x3c] sm:$0xf]
  %v46 = vld [vmem:[%s1 + $0x40] sm:$0xf]
  %v47 = vld [vmem:[%s1 + $0x44] sm:$0xf]
  %v48 = vld [vmem:[%s1 + $0x48] sm:$0xf]
  %v49 = vld [vmem:[%s1 + $0x4c] sm:$0xf]
  %v50 = vld [vmem:[%s1 + $0x50] sm:$0xf]
  %v51 = vld [vmem:[%s1 + $0x54] sm:$0xf]
  %v52 = vld [vmem:[%s1 + $0x58] sm:$0xf]
  %v53 = vld [vmem:[%s1 + $0x5c] sm:$0xf]
  %v54 = vld [vmem:[%s1 + $0x60] sm:$0xf]
  %v55 = vld [vmem:[%s1 + $0x64] sm:$0xf]
  %v56 = vld [vmem:[%s1 + $0x68] sm:$0xf]
  %v57 = vld [vmem:[%s1 + $0x6c] sm:$0xf]
  %v58 = vld [vmem:[%s1 + $0x70] sm:$0xf]
  %v59 = vld [vmem:[%s1 + $0x74] sm:$0xf]
  %v60 = vld [vmem:[%s1 + $0x78] sm:$0xf]
  %v61 = vld [vmem:[%s1 + $0x7c] sm:$0xf]
  %v66 = vunpack.c.l.b16 %v26
  %v67 = vunpack.c.h.b16 %v26
  %v68 = vunpack.c.l.b16 %v27
  %v69 = vunpack.c.h.b16 %v27
  %v70 = vunpack.c.l.b16 %v28
  %v71 = vunpack.c.h.b16 %v28
  %v72 = vunpack.c.l.b16 %v29
  %v73 = vunpack.c.h.b16 %v29
  %v74 = vpack.c.b16 %v68, %v66
  %v75 = vpack.c.b16 %v69, %v67
  %v76 = vpack.c.b16 %v72, %v70
  %v77 = vpack.c.b16 %v73, %v71
  %v114 = vunpack.c.l.b16 %v30
  %v115 = vunpack.c.l.b16 %v31
  %v116 = vunpack.c.l.b16 %v32
  %v117 = vunpack.c.l.b16 %v33
  %v118 = vunpack.c.l.b16 %v34
  %v119 = vunpack.c.l.b16 %v35
  %v120 = vunpack.c.l.b16 %v36
  %v121 = vunpack.c.l.b16 %v37
  %v122 = vunpack.c.l.b16 %v38
  %v123 = vunpack.c.l.b16 %v39
  %v124 = vunpack.c.l.b16 %v40
  %v125 = vunpack.c.l.b16 %v41
  %v126 = vunpack.c.l.b16 %v42
  %v127 = vunpack.c.l.b16 %v43
  %v128 = vunpack.c.l.b16 %v44
  %v129 = vunpack.c.l.b16 %v45
  %v130 = vunpack.c.l.b16 %v46
  %v131 = vunpack.c.l.b16 %v47
  %v132 = vunpack.c.l.b16 %v48
  %v133 = vunpack.c.l.b16 %v49
  %v134 = vunpack.c.l.b16 %v50
  %v135 = vunpack.c.l.b16 %v51
  %v136 = vunpack.c.l.b16 %v52
  %v137 = vunpack.c.l.b16 %v53
  %v138 = vunpack.c.l.b16 %v54
  %v139 = vunpack.c.l.b16 %v55
  %v140 = vunpack.c.l.b16 %v56
  %v141 = vunpack.c.l.b16 %v57
  %v142 = vunpack.c.l.b16 %v58
  %v143 = vunpack.c.l.b16 %v59
  %v144 = vunpack.c.l.b16 %v60
  %v145 = vunpack.c.l.b16 %v61
  %v146 = vpack.c.b16 %v115, %v114
  %v147 = vpack.c.b16 %v117, %v116
  %v148 = vpack.c.b16 %v119, %v118
  %v149 = vpack.c.b16 %v121, %v120
  %v150 = vpack.c.b16 %v123, %v122
  %v151 = vpack.c.b16 %v125, %v124
  %v152 = vpack.c.b16 %v127, %v126
  %v153 = vpack.c.b16 %v129, %v128
  %v154 = vpack.c.b16 %v131, %v130
  %v155 = vpack.c.b16 %v133, %v132
  %v156 = vpack.c.b16 %v135, %v134
  %v157 = vpack.c.b16 %v137, %v136
  %v158 = vpack.c.b16 %v139, %v138
  %v159 = vpack.c.b16 %v141, %v140
  %v160 = vpack.c.b16 %v143, %v142
  %v161 = vpack.c.b16 %v145, %v144
  %178 = vmatpush.bf16.msra.mxu0 %v153
  %179 = vmatpush.bf16.msra.mxu0 %v152
  %180 = vmatpush.bf16.msra.mxu0 %v151
  %181 = vmatpush.bf16.msra.mxu0 %v150
  %182 = vmatpush.bf16.msra.mxu0 %v149
  %183 = vmatpush.bf16.msra.mxu0 %v148
  %184 = vmatpush.bf16.msra.mxu0 %v147
  %185 = vmatpush.bf16.msra.mxu0 %v146
  %186 = vmatmul.bf16.gmra.mxu0 %v74
  %v187 = vpop.f32.mrf.mxu0
  %v188 = vadd.f32 0.0, %v187
  %v189 = vpop.f32.mrf.mxu0
  %v190 = vadd.f32 0.0, %v189
  %191 = vmatmul.bf16.gmra.mxu0 %v76
  %v192 = vpop.f32.mrf.mxu0
  %v193 = vadd.f32 0.0, %v192
  %v194 = vpop.f32.mrf.mxu0
  %v195 = vadd.f32 0.0, %v194
  %196 = vdwg.mxu0
  %197 = vmatpush.bf16.msra.mxu0 %v161
  %198 = vmatpush.bf16.msra.mxu0 %v160
  %199 = vmatpush.bf16.msra.mxu0 %v159
  %200 = vmatpush.bf16.msra.mxu0 %v158
  %201 = vmatpush.bf16.msra.mxu0 %v157
  %202 = vmatpush.bf16.msra.mxu0 %v156
  %203 = vmatpush.bf16.msra.mxu0 %v155
  %204 = vmatpush.bf16.msra.mxu0 %v154
  %205 = vmatmul.bf16.gmra.mxu0 %v75
  %v206 = vpop.f32.mrf.mxu0
  %v207 = vadd.f32 %v188, %v206
  %v208 = vpop.f32.mrf.mxu0
  %v209 = vadd.f32 %v190, %v208
  %210 = vmatmul.bf16.gmra.mxu0 %v77
  %v211 = vpop.f32.mrf.mxu0
  %v212 = vadd.f32 %v193, %v211
  %v213 = vpop.f32.mrf.mxu0
  %v214 = vadd.f32 %v195, %v213
  %215 = vdwg.mxu0
  %v216 = vadd.f32 %v22, %v207
  %v217 = vadd.f32 %v23, %v209
  %v218 = vadd.f32 %v24, %v212
  %v219 = vadd.f32 %v25, %v214
  %220 = vst [vmem:[#allocation2] sm:$0xff] %v216
  %221 = vst [vmem:[#allocation2 + $0x8] sm:$0xff] %v217
  %222 = vst [vmem:[#allocation2 + $0x10] sm:$0xff] %v218
  %223 = vst [vmem:[#allocation2 + $0x18] sm:$0xff] %v219
  // Predicated region
  $region18: #{encoder_forward.4} parent=0 // pred_check
    %p224 = pneg %p14
  $region19: #{encoder_forward.4} parent=0 // pred_check_branch
    %226 = sbr.rel (%p224) target = $region21
  $region20: #{encoder_forward.4} parent=0 // pred_region
    %v227 = vld [vmem:[#allocation2] sm:$0xff]
    %v228 = vld [vmem:[#allocation2 + $0x8] sm:$0xff]
    %v229 = vld [vmem:[#allocation2 + $0x10] sm:$0xff]
    %v230 = vld [vmem:[#allocation2 + $0x18] sm:$0xff]
    %v231 = vld [vmem:[%s2] sm:$0x1]
    %v233 = vperm.slane %v231, 0
    %v235 = vadd.f32 %v227, %v233
    %v236 = vadd.f32 %v228, %v233
    %v237 = vadd.f32 %v229, %v233
    %v238 = vadd.f32 %v230, %v233
    %v239 = vmax.f32 %v235, 0.0
    %v240 = vmax.f32 %v236, 0.0
    %v241 = vmax.f32 %v237, 0.0
    %v242 = vmax.f32 %v238, 0.0
    %v243 = vpack.c.bf16 %v239, %v239
    %v244 = vpack.c.bf16 %v240, %v240
    %v245 = vpack.c.bf16 %v241, %v241
    %v246 = vpack.c.bf16 %v242, %v242
    %247 = vst [vmem:[%s3] sm:$0xf] %v243
    %248 = vst [vmem:[%s3 + $0x4] sm:$0xf] %v244
    %249 = vst [vmem:[%s3 + $0x8] sm:$0xf] %v245
    %250 = vst [vmem:[%s3 + $0xc] sm:$0xf] %v246
  $region21: #{encoder_forward.4} parent=0 // pred_fallthru
    _
  // Predicated region
  $region22: #{encoder_forward.4} parent=0 // pred_check
    _
  $region23: #{encoder_forward.4} parent=0 // pred_check_branch
    %252 = sbr.rel (0) target = $region25
  $region24: #{encoder_forward.4} parent=0 // pred_region
    _
  $region25: #{encoder_forward.4} parent=0 // pred_fallthru
    _
  // Predicated region
  $region26: #{encoder_forward.4} parent=0 // pred_check
    _
  $region27: #{encoder_forward.4} parent=0 // pred_check_branch
    %254 = sbr.rel (0) target = $region29
  $region28: #{encoder_forward.4} parent=0 // pred_region
    _
  $region29: #{encoder_forward.4} parent=0 // pred_fallthru
    _

// kernel: encoder_forward.5
$region0: #{encoder_forward.5}
  #allocation0 [shape = 'u32[]', space=smem, size = 0x4, offset = 0x4, fixed_abs, tag = 'smem constant byte address 0x4 - core index']
  #allocation1 [shape = 'u32[72,128]{1,0:T(1,128)}', space=vmem, size = 0x9000, scoped, tag = 'internal scratch']
  #allocation2 [shape = 'bf16[6,6,128]{2,1,0:T(8,128)(2,1)}', space=vmem, size = 0x3000, scoped, tag = 'scratch operand']
  #allocation3 [shape = 'bf16[16,1152]{1,0:T(8,128)(2,1)}', space=vmem, size = 0x9000, scoped, tag = 'scratch operand']
  #allocation4 [shape = 'f32[16,128]{1,0:T(8,128)}', space=vmem, size = 0x2000, scoped, tag = 'scratch operand']
  %s0 = inlined_call_operand.vmem [shape: bf16[2,4,4,128], index: 0, kind: input, shape index: {}]
  %s1 = inlined_call_operand.vmem [shape: bf16[1152,128], index: 1, kind: input, shape index: {}]
  %s2 = inlined_call_operand.vmem [shape: f32[1,128], index: 2, kind: input, shape index: {}]
  %s3 = inlined_call_operand.vmem [shape: bf16[1152,128], index: 3, kind: input, shape index: {}]
  %s4 = inlined_call_operand.vmem [shape: bf16[128,128], index: 4, kind: input, shape index: {}]
  %s5 = inlined_call_operand.vmem [shape: f32[2,4,4,128], index: 5, kind: output, shape index: {}]
  %s6 = sld [smem:[#allocation0]]
  $region60: #{encoder_forward.5} parent=0
    _
  %s8 = ssub.s32 1, %s6
  %s9 = scalar_select 0, %s8, %s6
  loop: start=0, step=1, limit=4
  $region2: #{encoder_forward.5} parent=0 // loop_pre_header
    _
  $region3: #{encoder_forward.5} parent=0 // loop_header
    %s11 = sphi 0, %s15
    %p12 = scmp.ge.s32.totalorder %s11, 4
    %s21 = sphi 0, %s23
    %s24 = sphi 0, %s21
    %s25 = sphi 0, %s24
    %s41 = sphi 0, %s25
    %s45 = sphi 0, %s45
    %s47 = sphi 0, %s45
    %s48 = sphi 0, %s47
    %s62 = sphi 0, %s48
    %s66 = sphi 0, %s66
    %s68 = sphi 0, %s66
    %s69 = sphi 0, %s68
    %s83 = sphi 0, %s69
    %s87 = sphi 0, %s87
    %s89 = sphi 0, %s87
    %s90 = sphi 0, %s89
    %s104 = sphi 0, %s90
    %s108 = sphi 0, %s108
    %s110 = sphi 0, %s108
    %s111 = sphi 0, %s110
    %s125 = sphi 0, %s111
    %s131 = sphi 0, %s133
    %s134 = sphi 0, %s131
    %s135 = sphi 0, %s134
    %s151 = sphi 0, %s135
  $region4: #{encoder_forward.5} parent=0 // loop_header_branch
    %14 = sbr.rel (%p12) target = $region8
  $region5: #{encoder_forward.5} parent=0 // loop_body
    %s16 = ssub.s32 %s11, 1
    %s17 = ssub.s32 %s11, 2
    %s18 = sadd.s32 %s11, 1
    %s19 = ssub.s32 %s11, %s18
    %p20 = scmp.eq.s32.totalorder %s19, 0
    %s22 = sadd.s32 %s21, 1
    %s23 = scalar_select %p20, %s21, %s22
    %p26 = pneg %p20
    %p27 = scmp.eq.s32.totalorder %s11, 1
    %p28 = por %p26, %p27
    %p29 = scmp.ne.s32.totalorder %s21, %s24
    %p30 = scmp.eq.s32.totalorder %s11, 0
    %p31 = por %p29, %p30
    %p32 = scmp.ne.s32.totalorder %s21, %s24
    %p33 = scmp.eq.s32.totalorder %s16, 1
    %p34 = por %p32, %p33
    %p35 = scmp.ne.s32.totalorder %s24, %s25
    %p36 = scmp.eq.s32.totalorder %s16, 0
    %p37 = por %p35, %p36
    %p38 = scmp.ne.s32.totalorder %s24, %s25
    %p39 = scmp.eq.s32.totalorder %s17, 1
    %p40 = por %p38, %p39
    %p42 = scmp.ne.s32.totalorder %s25, %s41
    %p43 = scmp.eq.s32.totalorder %s17, 0
    %p44 = por %p42, %p43
    %s46 = sadd.s32 %s45, 1
    %p49 = scmp.eq.s32.totalorder %s11, 1
    %p50 = scmp.ne.s32.totalorder %s45, %s47
    %p51 = scmp.eq.s32.totalorder %s11, 0
    %p52 = por %p50, %p51
    %p53 = scmp.ne.s32.totalorder %s45, %s47
    %p54 = scmp.eq.s32.totalorder %s16, 1
    %p55 = por %p53, %p54
    %p56 = scmp.ne.s32.totalorder %s47, %s48
    %p57 = scmp.eq.s32.totalorder %s16, 0
    %p58 = por %p56, %p57
    %p59 = scmp.ne.s32.totalorder %s47, %s48
    %p60 = scmp.eq.s32.totalorder %s17, 1
    %p61 = por %p59, %p60
    %p63 = scmp.ne.s32.totalorder %s48, %s62
    %p64 = scmp.eq.s32.totalorder %s17, 0
    %p65 = por %p63, %p64
    %s67 = sadd.s32 %s66, 1
    %p70 = scmp.eq.s32.totalorder %s11, 1
    %p71 = scmp.ne.s32.totalorder %s66, %s68
    %p72 = scmp.eq.s32.totalorder %s11, 0
    %p73 = por %p71, %p72
    %p74 = scmp.ne.s32.totalorder %s66, %s68
    %p75 = scmp.eq.s32.totalorder %s16, 1
    %p76 = por %p74, %p75
    %p77 = scmp.ne.s32.totalorder %s68, %s69
    %p78 = scmp.eq.s32.totalorder %s16, 0
    %p79 = por %p77, %p78
    %p80 = scmp.ne.s32.totalorder %s68, %s69
    %p81 = scmp.eq.s32.totalorder %s17, 1
    %p82 = por %p80, %p81
    %p84 = scmp.ne.s32.totalorder %s69, %s83
    %p85 = scmp.eq.s32.totalorder %s17, 0
    %p86 = por %p84, %p85
    %s88 = sadd.s32 %s87, 1
    %p91 = scmp.eq.s32.totalorder %s11, 1
    %p92 = scmp.ne.s32.totalorder %s87, %s89
    %p93 = scmp.eq.s32.totalorder %s11, 0
    %p94 = por %p92, %p93
    %p95 = scmp.ne.s32.totalorder %s87, %s89
    %p96 = scmp.eq.s32.totalorder %s16, 1
    %p97 = por %p95, %p96
    %p98 = scmp.ne.s32.totalorder %s89, %s90
    %p99 = scmp.eq.s32.totalorder %s16, 0
    %p100 = por %p98, %p99
    %p101 = scmp.ne.s32.totalorder %s89, %s90
    %p102 = scmp.eq.s32.totalorder %s17, 1
    %p103 = por %p101, %p102
    %p105 = scmp.ne.s32.totalorder %s90, %s104
    %p106 = scmp.eq.s32.totalorder %s17, 0
    %p107 = por %p105, %p106
    %s109 = sadd.s32 %s108, 1
    %p112 = scmp.eq.s32.totalorder %s11, 1
    %p113 = scmp.ne.s32.totalorder %s108, %s110
    %p114 = scmp.eq.s32.totalorder %s11, 0
    %p115 = por %p113, %p114
    %p116 = scmp.ne.s32.totalorder %s108, %s110
    %p117 = scmp.eq.s32.totalorder %s16, 1
    %p118 = por %p116, %p117
    %p119 = scmp.ne.s32.totalorder %s110, %s111
    %p120 = scmp.eq.s32.totalorder %s16, 0
    %p121 = por %p119, %p120
    %p122 = scmp.ne.s32.totalorder %s110, %s111
    %p123 = scmp.eq.s32.totalorder %s17, 1
    %p124 = por %p122, %p123
    %p126 = scmp.ne.s32.totalorder %s111, %s125
    %p127 = scmp.eq.s32.totalorder %s17, 0
    %p128 = por %p126, %p127
    %s129 = ssub.s32 %s11, %s18
    %p130 = scmp.eq.s32.totalorder %s129, 0
    %s132 = sadd.s32 %s131, 1
    %s133 = scalar_select %p130, %s131, %s132
    %p136 = pneg %p130
    %p137 = scmp.eq.s32.totalorder %s11, 1
    %p138 = por %p136, %p137
    %p139 = scmp.ne.s32.totalorder %s131, %s134
    %p140 = scmp.eq.s32.totalorder %s11, 0
    %p141 = por %p139, %p140
    %p142 = scmp.ne.s32.totalorder %s131, %s134
    %p143 = scmp.eq.s32.totalorder %s16, 1
    %p144 = por %p142, %p143
    %p145 = scmp.ne.s32.totalorder %s134, %s135
    %p146 = scmp.eq.s32.totalorder %s16, 0
    %p147 = por %p145, %p146
    %p148 = scmp.ne.s32.totalorder %s134, %s135
    %p149 = scmp.eq.s32.totalorder %s17, 1
    %p150 = por %p148, %p149
    %p152 = scmp.ne.s32.totalorder %s135, %s151
    %p153 = scmp.eq.s32.totalorder %s17, 0
    %p154 = por %p152, %p153
    %p155 = scmp.le.s32.totalorder 1, %s11
    %p156 = scmp.lt.s32.totalorder %s11, 3
    %p157 = pnand %p155, %p156
    %p158 = pneg %p157
    // Predicated region
    $region9: #{encoder_forward.5} parent=5 // pred_check
      _
    $region10: #{encoder_forward.5} parent=5 // pred_check_branch
      %160 = sbr.rel (%p157) target = $region12
    $region11: #{encoder_forward.5} parent=5 // pred_region
      %s161 = ssub.s32 %s11, 1
      // Predicated region
      $region13: #{encoder_forward.5} parent=11 // pred_check
        %p162 = pneg %p58
      $region14: #{encoder_forward.5} parent=11 // pred_check_branch
        %164 = sbr.rel (%p162) target = $region16
      $region15: #{encoder_forward.5} parent=11 // pred_region
        _
      $region16: #{encoder_forward.5} parent=11 // pred_fallthru
        _
      // Predicated region
      $region17: #{encoder_forward.5} parent=11 // pred_check
        %p165 = pneg %p79
      $region18: #{encoder_forward.5} parent=11 // pred_check_branch
        %167 = sbr.rel (%p165) target = $region20
      $region19: #{encoder_forward.5} parent=11 // pred_region
        _
      $region20: #{encoder_forward.5} parent=11 // pred_fallthru
        _
      // Predicated region
      $region21: #{encoder_forward.5} parent=11 // pred_check
        %p168 = pneg %p100
      $region22: #{encoder_forward.5} parent=11 // pred_check_branch
        %170 = sbr.rel (%p168) target = $region24
      $region23: #{encoder_forward.5} parent=11 // pred_region
        _
      $region24: #{encoder_forward.5} parent=11 // pred_fallthru
        _
      // Predicated region
      $region25: #{encoder_forward.5} parent=11 // pred_check
        %p171 = pneg %p121
      $region26: #{encoder_forward.5} parent=11 // pred_check_branch
        %173 = sbr.rel (%p171) target = $region28
      $region27: #{encoder_forward.5} parent=11 // pred_region
        _
      $region28: #{encoder_forward.5} parent=11 // pred_fallthru
        _
    $region12: #{encoder_forward.5} parent=5 // pred_fallthru
      _
    %p174 = scmp.lt.s32.totalorder %s11, 2
    // Predicated region
    $region29: #{encoder_forward.5} parent=5 // pred_check
      %p175 = pneg %p174
    $region30: #{encoder_forward.5} parent=5 // pred_check_branch
      %177 = sbr.rel (%p175) target = $region32
    $region31: #{encoder_forward.5} parent=5 // pred_region
      // Predicated region
      $region33: #{encoder_forward.5} parent=31 // pred_check
        %p178 = pneg %p31
      $region34: #{encoder_forward.5} parent=31 // pred_check_branch
        %180 = sbr.rel (%p178) target = $region36
      $region35: #{encoder_forward.5} parent=31 // pred_region
        %p181 = scmp.lt.s32.totalorder %s11, 1
        %s182 = scalar_select %p181, %s11, 1
        %s183 = smul.addr %s182, 4
        %s184 = smul.addr %s183, 2
        %s185 = scalar_lea.vmem %s0, %s184
      $region36: #{encoder_forward.5} parent=31 // pred_fallthru
        _
    $region32: #{encoder_forward.5} parent=5 // pred_fallthru
      _
    %p186 = scmp.le.s32.totalorder 1, %s11
    %p187 = scmp.lt.s32.totalorder %s11, 3
    %p188 = pnand %p186, %p187
    %p189 = pneg %p188
    // Predicated region
    $region37: #{encoder_forward.5} parent=5 // pred_check
      _
    $region38: #{encoder_forward.5} parent=5 // pred_check_branch
      %191 = sbr.rel (%p188) target = $region40
    $region39: #{encoder_forward.5} parent=5 // pred_region
      %s192 = ssub.s32 %s11, 1
      %p193 = scmp.lt.s32.totalorder %s16, 1
      %s194 = scalar_select %p193, %s16, 1
      %s195 = smul.addr %s194, 4
      %s196 = smul.addr %s195, 2
      %s197 = scalar_lea.vmem %s0, %s196
      %p198 = pneg %p37
      %p199 = pneg %p34
      %p200 = pneg %p58
      %p201 = pneg %p55
      %p202 = pneg %p79
      %p203 = pneg %p76
      %p204 = pneg %p100
      %p205 = pneg %p97
      %p206 = pneg %p121
      %p207 = pneg %p118
      %p208 = pneg %p147
      %p209 = pneg %p144
      %p210 = scmp.lt.s32.totalorder %s16, 1
      %s211 = scalar_select %p210, %s16, 1
      %s212 = smul.addr %s211, 4
      %s213 = smul.addr %s212, 4
      %s214 = scalar_lea.vmem %s5, %s213
      %p215 = scmp.lt.s32.totalorder %s16, 1
      %s216 = scalar_select %p215, %s16, 1
      %s217 = smul.addr %s216, 4
      %s218 = smul.addr %s217, 2
      %s219 = scalar_lea.vmem %s0, %s218
      %p220 = scmp.lt.s32.totalorder %s16, 1
      %s221 = scalar_select %p220, %s16, 1
      %s222 = smul.addr %s221, 4
      %s223 = smul.addr %s222, 4
      %s224 = scalar_lea.vmem %s5, %s223
      %226 = vst [vmem:[#allocation2] sm:$0x7] 0
      %s227 = scalar_lea.vmem [#allocation2], 20
      %228 = vst [vmem:[%s227] sm:$0x7] 0
      %vm229 = vcmask 1040384
      %vm230 = vsmask.f32 256
      %vm231 = vmand %vm229, %vm230
      %v232 = vld [vmem:[#allocation2] sm:$0x1]
      %v233 = vsel %vm231, 0, %v232
      %234 = vst [vmem:[#allocation2] sm:$0x1] %v233
      %v235 = vld [vmem:[#allocation2 + $0x4] sm:$0x1]
      %v236 = vsel %vm231, 0, %v235
      %237 = vst [vmem:[#allocation2 + $0x4] sm:$0x1] %v236
      %v238 = vld [vmem:[#allocation2 + $0x8] sm:$0x1]
      %v239 = vsel %vm231, 0, %v238
      %240 = vst [vmem:[#allocation2 + $0x8] sm:$0x1] %v239
      %v241 = vld [vmem:[#allocation2 + $0xc] sm:$0x1]
      %v242 = vsel %vm231, 0, %v241
      %243 = vst [vmem:[#allocation2 + $0xc] sm:$0x1] %v242
      %v244 = vld [vmem:[#allocation2 + $0x10] sm:$0x1]
      %v245 = vsel %vm231, 0, %v244
      %246 = vst [vmem:[#allocation2 + $0x10] sm:$0x1] %v245
      %v247 = vld [vmem:[#allocation2 + $0x14] sm:$0x1]
      %v248 = vsel %vm231, 0, %v247
      %249 = vst [vmem:[#allocation2 + $0x14] sm:$0x1] %v248
      %vm250 = vcmask 1042434
      %vm251 = vsmask.f32 7946
      %vm252 = vmand %vm250, %vm251
      %v253 = vld [vmem:[#allocation2] sm:$0x4]
      %v254 = vsel %vm252, 0, %v253
      %255 = vst [vmem:[#allocation2] sm:$0x4] %v254
      %v256 = vld [vmem:[#allocation2 + $0x4] sm:$0x4]
      %v257 = vsel %vm252, 0, %v256
      %258 = vst [vmem:[#allocation2 + $0x4] sm:$0x4] %v257
      %v259 = vld [vmem:[#allocation2 + $0x8] sm:$0x4]
      %v260 = vsel %vm252, 0, %v259
      %261 = vst [vmem:[#allocation2 + $0x8] sm:$0x4] %v260
      %v262 = vld [vmem:[#allocation2 + $0xc] sm:$0x4]
      %v263 = vsel %vm252, 0, %v262
      %264 = vst [vmem:[#allocation2 + $0xc] sm:$0x4] %v263
      %v265 = vld [vmem:[#allocation2 + $0x10] sm:$0x4]
      %v266 = vsel %vm252, 0, %v265
      %267 = vst [vmem:[#allocation2 + $0x10] sm:$0x4] %v266
      %v268 = vld [vmem:[#allocation2 + $0x14] sm:$0x4]
      %v269 = vsel %vm252, 0, %v268
      %270 = vst [vmem:[#allocation2 + $0x14] sm:$0x4] %v269
      %v271 = vld [vmem:[%s219] sm:$0x3]
      %v272 = vld [vmem:[%s219 + $0x2] sm:$0x3]
      %v273 = vld [vmem:[%s219 + $0x4] sm:$0x3]
      %v274 = vld [vmem:[%s219 + $0x6] sm:$0x3]
      %276 = vst [vmem:[#allocation1] ss:$2 sm:$0xff] %v271
      %v277 = vld.sshfl [vmem:[#allocation1] sm:$0xff pattern:$0x75643120]
      %s279 = scalar_lea.vmem [#allocation1], 16
      %280 = vst [vmem:[%s279] ss:$2 sm:$0xff] %v272
      %v281 = vld.sshfl [vmem:[#allocation1 + $0x10] sm:$0xff pattern:$0x75643120]
      %s283 = scalar_lea.vmem [#allocation1], 32
      %284 = vst [vmem:[%s283] ss:$2 sm:$0xff] %v273
      %v285 = vld.sshfl [vmem:[#allocation1 + $0x20] sm:$0xff pattern:$0x75643120]
      %s287 = scalar_lea.vmem [#allocation1], 48
      %288 = vst [vmem:[%s287] ss:$2 sm:$0xff] %v274
      %v289 = vld.sshfl [vmem:[#allocation1 + $0x30] sm:$0xff pattern:$0x75643120]
      %v290 = vshrl.u32 %v277, 16
      %v292 = vrot.slane %v290, 7
      %v293 = vshll.u32 %v277, 16
      %v295 = vor.u32 %v292, %v293
      %v296 = vshrl.u32 %v281, 16
      %v298 = vrot.slane %v296, 7
      %v299 = vshll.u32 %v281, 16
      %v301 = vor.u32 %v298, %v299
      %v302 = vshrl.u32 %v285, 16
      %v304 = vrot.slane %v302, 7
      %v305 = vshll.u32 %v285, 16
      %v307 = vor.u32 %v304, %v305
      %v308 = vshrl.u32 %v289, 16
      %v310 = vrot.slane %v308, 7
      %v311 = vshll.u32 %v289, 16
      %v313 = vor.u32 %v310, %v311
      %s318 = scalar_lea.vmem [#allocation2], 4
      %vm319 = vcmask 1042432
      %vm320 = vsmask.f32 2306
      %vm321 = vmand %vm319, %vm320
      %v322 = vld [vmem:[%s318] sm:$0x7]
      %v323 = vsel %vm321, %v295, %v322
      %324 = vst [vmem:[%s318] sm:$0x7] %v323
      %v325 = vld [vmem:[%s318 + $0x4] sm:$0x7]
      %v326 = vsel %vm321, %v301, %v325
      %327 = vst [vmem:[%s318 + $0x4] sm:$0x7] %v326
      %v328 = vld [vmem:[%s318 + $0x8] sm:$0x7]
      %v329 = vsel %vm321, %v307, %v328
      %330 = vst [vmem:[%s318 + $0x8] sm:$0x7] %v329
      %v331 = vld [vmem:[%s318 + $0xc] sm:$0x7]
      %v332 = vsel %vm321, %v313, %v331
      %333 = vst [vmem:[%s318 + $0xc] sm:$0x7] %v332
      %v334 = vld [vmem:[#allocation2] sm:$0x3]
      %v335 = vld [vmem:[#allocation2 + $0x4] sm:$0x3]
      %v336 = vld [vmem:[#allocation2 + $0x8] sm:$0x3]
      %v337 = vld [vmem:[#allocation2 + $0xc] sm:$0x3]
      %339 = vst [vmem:[#allocation1] ss:$2 sm:$0xff] %v334
      %s341 = scalar_lea.vmem [#allocation1], 1
      %342 = vst [vmem:[%s341] ss:$2 sm:$0xff] %v335
      %s344 = scalar_lea.vmem [#allocation1], 16
      %345 = vst [vmem:[%s344] ss:$2 sm:$0xff] %v336
      %s347 = scalar_lea.vmem [#allocation1], 17
      %348 = vst [vmem:[%s347] ss:$2 sm:$0xff] %v337
      %v349 = vld.sshfl [vmem:[#allocation1] sm:$0xff pattern:$0x75643120]
      %v350 = vld.sshfl [vmem:[#allocation1 + $0x10] sm:$0xff pattern:$0x75643120]
      %353 = vst [vmem:[#allocation3] sm:$0xf] %v349
      %354 = vst [vmem:[#allocation3 + $0x24] sm:$0xf] %v350
      %v355 = vld [vmem:[#allocation2] sm:$0x7]
      %v356 = vld [vmem:[#allocation2 + $0x4] sm:$0x7]
      %v357 = vld [vmem:[#allocation2 + $0x8] sm:$0x7]
      %v358 = vld [vmem:[#allocation2 + $0xc] sm:$0x7]
      %v363 = vrot.slane %v355, 2
      %v364 = vrot.slane %v356, 2
      %v365 = vrot.slane %v357, 2
      %v366 = vrot.slane %v358, 2
      %vm367 = vcmask 1041408
      %v370 = vsel %vm367, %v355, %v363
      %vm371 = vcmask 1043458
      %v372 = vsel %vm371, %v355, %v363
      %v374 = vrot.slane %v372, 2
      %v377 = vsel %vm367, %v356, %v364
      %v378 = vsel %vm371, %v356, %v364
      %v380 = vrot.slane %v378, 2
      %v383 = vsel %vm367, %v357, %v365
      %v384 = vsel %vm371, %v357, %v365
      %v386 = vrot.slane %v384, 2
      %v389 = vsel %vm367, %v358, %v366
      %v390 = vsel %vm371, %v358, %v366
      %v392 = vrot.slane %v390, 2
      %vm393 = vsmask.f32 1280
      %vm394 = vsmask.f32 3336
      %vm395 = vmor %vm393, %vm394
      %vm396 = vsmask.f32 5392
      %vm397 = vmor %vm395, %vm396
      %vm398 = vsmask.f32 7448
      %vm399 = vmor %vm397, %vm398
      %v400 = vshrl.u32 %v370, 16
      %v402 = vrot.slane %v400, 6
      %v403 = vshll.u32 %v370, 16
      %v405 = vrot.slane %v403, 7
      %v406 = vor.u32 %v402, %v405
      %v407 = vrot.slane %v406, 2
      %v409 = vshll.u32 %v374, 16
      %v411 = vrot.slane %v409, 7
      %v412 = vsel %vm399, %v407, %v411
      %v413 = vshrl.u32 %v377, 16
      %v415 = vrot.slane %v413, 6
      %v416 = vshll.u32 %v377, 16
      %v418 = vrot.slane %v416, 7
      %v419 = vor.u32 %v415, %v418
      %v420 = vrot.slane %v419, 2
      %v422 = vshll.u32 %v380, 16
      %v424 = vrot.slane %v422, 7
      %v425 = vsel %vm399, %v420, %v424
      %v426 = vshrl.u32 %v383, 16
      %v428 = vrot.slane %v426, 6
      %v429 = vshll.u32 %v383, 16
      %v431 = vrot.slane %v429, 7
      %v432 = vor.u32 %v428, %v431
      %v433 = vrot.slane %v432, 2
      %v435 = vshll.u32 %v386, 16
      %v437 = vrot.slane %v435, 7
      %v438 = vsel %vm399, %v433, %v437
      %v439 = vshrl.u32 %v389, 16
      %v441 = vrot.slane %v439, 6
      %v442 = vshll.u32 %v389, 16
      %v444 = vrot.slane %v442, 7
      %v445 = vor.u32 %v441, %v444
      %v446 = vrot.slane %v445, 2
      %v448 = vshll.u32 %v392, 16
      %v450 = vrot.slane %v448, 7
      %v451 = vsel %vm399, %v446, %v450
      %453 = vst [vmem:[#allocation1] ss:$2 sm:$0xff] %v412
      %s455 = scalar_lea.vmem [#allocation1], 1
      %456 = vst [vmem:[%s455] ss:$2 sm:$0xff] %v425
      %s458 = scalar_lea.vmem [#allocation1], 16
      %459 = vst [vmem:[%s458] ss:$2 sm:$0xff] %v438
      %s461 = scalar_lea.vmem [#allocation1], 17
      %462 = vst [vmem:[%s461] ss:$2 sm:$0xff] %v451
      %v463 = vld.sshfl [vmem:[#allocation1] sm:$0xff pattern:$0x75643120]
      %v464 = vld.sshfl [vmem:[#allocation1 + $0x10] sm:$0xff pattern:$0x75643120]
      %467 = vst [vmem:[#allocation3 + $0x4] sm:$0xf] %v463
      %468 = vst [vmem:[#allocation3 + $0x28] sm:$0xf] %v464
      %v469 = vld [vmem:[#allocation2] sm:$0x6]
      %v470 = vld [vmem:[#allocation2 + $0x4] sm:$0x6]
      %v471 = vld [vmem:[#allocation2 + $0x8] sm:$0x6]
      %v472 = vld [vmem:[#allocation2 + $0xc] sm:$0x6]
      %v477 = vrot.slane %v469, 2
      %v478 = vrot.slane %v470, 2
      %v479 = vrot.slane %v471, 2
      %v480 = vrot.slane %v472, 2
      %v483 = vsel %vm367, %v469, %v477
      %v485 = vsel %vm371, %v469, %v477
      %v487 = vrot.slane %v485, 2
      %v490 = vsel %vm367, %v470, %v478
      %v492 = vsel %vm371, %v470, %v478
      %v494 = vrot.slane %v492, 2
      %v497 = vsel %vm367, %v471, %v479
      %v499 = vsel %vm371, %v471, %v479
      %v501 = vrot.slane %v499, 2
      %v504 = vsel %vm367, %v472, %v480
      %v506 = vsel %vm371, %v472, %v480
      %v508 = vrot.slane %v506, 2
      %vm509 = vmor %vm229, %vm250
      %vm510 = vcmask 1044484
      %vm511 = vmor %vm509, %vm510
      %vm512 = vcmask 1046534
      %vm513 = vmor %vm511, %vm512
      %v514 = vrot.slane %v483, 7
      %v515 = vrot.slane %v514, 2
      %v516 = vrot.slane %v487, 7
      %v517 = vsel %vm513, %v515, %v516
      %v518 = vrot.slane %v490, 7
      %v519 = vrot.slane %v518, 2
      %v520 = vrot.slane %v494, 7
      %v521 = vsel %vm513, %v519, %v520
      %v522 = vrot.slane %v497, 7
      %v523 = vrot.slane %v522, 2
      %v524 = vrot.slane %v501, 7
      %v525 = vsel %vm513, %v523, %v524
      %v526 = vrot.slane %v504, 7
      %v527 = vrot.slane %v526, 2
      %v528 = vrot.slane %v508, 7
      %v529 = vsel %vm513, %v527, %v528
      %531 = vst [vmem:[#allocation1] ss:$2 sm:$0xff] %v517
      %s533 = scalar_lea.vmem [#allocation1], 1
      %534 = vst [vmem:[%s533] ss:$2 sm:$0xff] %v521
      %s536 = scalar_lea.vmem [#allocation1], 16
      %537 = vst [vmem:[%s536] ss:$2 sm:$0xff] %v525
      %s539 = scalar_lea.vmem [#allocation1], 17
      %540 = vst [vmem:[%s539] ss:$2 sm:$0xff] %v529
      %v541 = vld.sshfl [vmem:[#allocation1] sm:$0xff pattern:$0x75643120]
      %v542 = vld.sshfl [vmem:[#allocation1 + $0x10] sm:$0xff pattern:$0x75643120]
      %545 = vst [vmem:[#allocation3 + $0x8] sm:$0xf] %v541
      %546 = vst [vmem:[#allocation3 + $0x2c] sm:$0xf] %v542
      %v547 = vld [vmem:[%s318] sm:$0x3]
      %v548 = vld [vmem:[%s318 + $0x4] sm:$0x3]
      %v549 = vld [vmem:[%s318 + $0x8] sm:$0x3]
      %v550 = vld [vmem:[%s318 + $0xc] sm:$0x3]
      %552 = vst [vmem:[#allocation1] ss:$2 sm:$0xff] %v547
      %s554 = scalar_lea.vmem [#allocation1], 1
      %555 = vst [vmem:[%s554] ss:$2 sm:$0xff] %v548
      %s557 = scalar_lea.vmem [#allocation1], 16
      %558 = vst [vmem:[%s557] ss:$2 sm:$0xff] %v549
      %s560 = scalar_lea.vmem [#allocation1], 17
      %561 = vst [vmem:[%s560] ss:$2 sm:$0xff] %v550
      %v562 = vld.sshfl [vmem:[#allocation1] sm:$0xff pattern:$0x75643120]
      %v563 = vld.sshfl [vmem:[#allocation1 + $0x10] sm:$0xff pattern:$0x75643120]
      %566 = vst [vmem:[#allocation3 + $0xc] sm:$0xf] %v562
      %567 = vst [vmem:[#allocation3 + $0x30] sm:$0xf] %v563
      %v568 = vld [vmem:[%s318] sm:$0x7]
      %v569 = vld [vmem:[%s318 + $0x4] sm:$0x7]
      %v570 = vld [vmem:[%s318 + $0x8] sm:$0x7]
      %v571 = vld [vmem:[%s318 + $0xc] sm:$0x7]
      %v576 = vrot.slane %v568, 2
      %v577 = vrot.slane %v569, 2
      %v578 = vrot.slane %v570, 2
      %v579 = vrot.slane %v571, 2
      %v582 = vsel %vm367, %v568, %v576
      %v583 = vsel %vm371, %v568, %v576
      %v585 = vrot.slane %v583, 2
      %v588 = vsel %vm367, %v569, %v577
      %v589 = vsel %vm371, %v569, %v577
      %v591 = vrot.slane %v589, 2
      %v594 = vsel %vm367, %v570, %v578
      %v595 = vsel %vm371, %v570, %v578
      %v597 = vrot.slane %v595, 2
      %v600 = vsel %vm367, %v571, %v579
      %v601 = vsel %vm371, %v571, %v579
      %v603 = vrot.slane %v601, 2
      %v604 = vshrl.u32 %v582, 16
      %v606 = vrot.slane %v604, 6
      %v607 = vshll.u32 %v582, 16
      %v609 = vrot.slane %v607, 7
      %v610 = vor.u32 %v606, %v609
      %v611 = vrot.slane %v610, 2
      %v613 = vshll.u32 %v585, 16
      %v615 = vrot.slane %v613, 7
      %v616 = vsel %vm399, %v611, %v615
      %v617 = vshrl.u32 %v588, 16
      %v619 = vrot.slane %v617, 6
      %v620 = vshll.u32 %v588, 16
      %v622 = vrot.slane %v620, 7
      %v623 = vor.u32 %v619, %v622
      %v624 = vrot.slane %v623, 2
      %v626 = vshll.u32 %v591, 16
      %v628 = vrot.slane %v626, 7
      %v629 = vsel %vm399, %v624, %v628
      %v630 = vshrl.u32 %v594, 16
      %v632 = vrot.slane %v630, 6
      %v633 = vshll.u32 %v594, 16
      %v635 = vrot.slane %v633, 7
      %v636 = vor.u32 %v632, %v635
      %v637 = vrot.slane %v636, 2
      %v639 = vshll.u32 %v597, 16
      %v641 = vrot.slane %v639, 7
      %v642 = vsel %vm399, %v637, %v641
      %v643 = vshrl.u32 %v600, 16
      %v645 = vrot.slane %v643, 6
      %v646 = vshll.u32 %v600, 16
      %v648 = vrot.slane %v646, 7
      %v649 = vor.u32 %v645, %v648
      %v650 = vrot.slane %v649, 2
      %v652 = vshll.u32 %v603, 16
      %v654 = vrot.slane %v652, 7
      %v655 = vsel %vm399, %v650, %v654
      %657 = vst [vmem:[#allocation1] ss:$2 sm:$0xff] %v616
      %s659 = scalar_lea.vmem [#allocation1], 1
      %660 = vst [vmem:[%s659] ss:$2 sm:$0xff] %v629
      %s662 = scalar_lea.vmem [#allocation1], 16
      %663 = vst [vmem:[%s662] ss:$2 sm:$0xff] %v642
      %s665 = scalar_lea.vmem [#allocation1], 17
      %666 = vst [vmem:[%s665] ss:$2 sm:$0xff] %v655
      %v667 = vld.sshfl [vmem:[#allocation1] sm:$0xff pattern:$0x75643120]
      %v668 = vld.sshfl [vmem:[#allocation1 + $0x10] sm:$0xff pattern:$0x75643120]
      %671 = vst [vmem:[#allocation3 + $0x10] sm:$0xf] %v667
      %672 = vst [vmem:[#allocation3 + $0x34] sm:$0xf] %v668
      %v673 = vld [vmem:[%s318] sm:$0x6]
      %v674 = vld [vmem:[%s318 + $0x4] sm:$0x6]
      %v675 = vld [vmem:[%s318 + $0x8] sm:$0x6]
      %v676 = vld [vmem:[%s318 + $0xc] sm:$0x6]
      %v681 = vrot.slane %v673, 2
      %v682 = vrot.slane %v674, 2
      %v683 = vrot.slane %v675, 2
      %v684 = vrot.slane %v676, 2
      %v687 = vsel %vm367, %v673, %v681
      %v689 = vsel %vm371, %v673, %v681
      %v691 = vrot.slane %v689, 2
      %v694 = vsel %vm367, %v674, %v682
      %v696 = vsel %vm371, %v674, %v682
      %v698 = vrot.slane %v696, 2
      %v701 = vsel %vm367, %v675, %v683
      %v703 = vsel %vm371, %v675, %v683
      %v705 = vrot.slane %v703, 2
      %v708 = vsel %vm367, %v676, %v684
      %v710 = vsel %vm371, %v676, %v684
      %v712 = vrot.slane %v710, 2
      %v713 = vrot.slane %v687, 7
      %v714 = vrot.slane %v713, 2
      %v715 = vrot.slane %v691, 7
      %v716 = vsel %vm513, %v714, %v715
      %v717 = vrot.slane %v694, 7
      %v718 = vrot.slane %v717, 2
      %v719 = vrot.slane %v698, 7
      %v720 = vsel %vm513, %v718, %v719
      %v721 = vrot.slane %v701, 7
      %v722 = vrot.slane %v721, 2
      %v723 = vrot.slane %v705, 7
      %v724 = vsel %vm513, %v722, %v723
      %v725 = vrot.slane %v708, 7
      %v726 = vrot.slane %v725, 2
      %v727 = vrot.slane %v712, 7
      %v728 = vsel %vm513, %v726, %v727
      %730 = vst [vmem:[#allocation1] ss:$2 sm:$0xff] %v716
      %s732 = scalar_lea.vmem [#allocation1], 1
      %733 = vst [vmem:[%s732] ss:$2 sm:$0xff] %v720
      %s735 = scalar_lea.vmem [#allocation1], 16
      %736 = vst [vmem:[%s735] ss:$2 sm:$0xff] %v724
      %s738 = scalar_lea.vmem [#allocation1], 17
      %739 = vst [vmem:[%s738] ss:$2 sm:$0xff] %v728
      %v740 = vld.sshfl [vmem:[#allocation1] sm:$0xff pattern:$0x75643120]
      %v741 = vld.sshfl [vmem:[#allocation1 + $0x10] sm:$0xff pattern:$0x75643120]
      %744 = vst [vmem:[#allocation3 + $0x14] sm:$0xf] %v740
      %745 = vst [vmem:[#allocation3 + $0x38] sm:$0xf] %v741
      %s746 = scalar_lea.vmem [#allocation2], 8
      %v747 = vld [vmem:[%s746] sm:$0x3]
      %v748 = vld [vmem:[%s746 + $0x4] sm:$0x3]
      %v749 = vld [vmem:[%s746 + $0x8] sm:$0x3]
      %v750 = vld [vmem:[%s746 + $0xc] sm:$0x3]
      %752 = vst [vmem:[#allocation1] ss:$2 sm:$0xff] %v747
      %s754 = scalar_lea.vmem [#allocation1], 1
      %755 = vst [vmem:[%s754] ss:$2 sm:$0xff] %v748
      %s757 = scalar_lea.vmem [#allocation1], 16
      %758 = vst [vmem:[%s757] ss:$2 sm:$0xff] %v749
      %s760 = scalar_lea.vmem [#allocation1], 17
      %761 = vst [vmem:[%s760] ss:$2 sm:$0xff] %v750
      %v762 = vld.sshfl [vmem:[#allocation1] sm:$0xff pattern:$0x75643120]
      %v763 = vld.sshfl [vmem:[#allocation1 + $0x10] sm:$0xff pattern:$0x75643120]
      %766 = vst [vmem:[#allocation3 + $0x18] sm:$0xf] %v762
      %767 = vst [vmem:[#allocation3 + $0x3c] sm:$0xf] %v763
      %v768 = vld [vmem:[%s746] sm:$0x7]
      %v769 = vld [vmem:[%s746 + $0x4] sm:$0x7]
      %v770 = vld [vmem:[%s746 + $0x8] sm:$0x7]
      %v771 = vld [vmem:[%s746 + $0xc] sm:$0x7]
      %v776 = vrot.slane %v768, 2
      %v777 = vrot.slane %v769, 2
      %v778 = vrot.slane %v770, 2
      %v779 = vrot.slane %v771, 2
      %v782 = vsel %vm367, %v768, %v776
      %v783 = vsel %vm371, %v768, %v776
      %v785 = vrot.slane %v783, 2
      %v788 = vsel %vm367, %v769, %v777
      %v789 = vsel %vm371, %v769, %v777
      %v791 = vrot.slane %v789, 2
      %v794 = vsel %vm367, %v770, %v778
      %v795 = vsel %vm371, %v770, %v778
      %v797 = vrot.slane %v795, 2
      %v800 = vsel %vm367, %v771, %v779
      %v801 = vsel %vm371, %v771, %v779
      %v803 = vrot.slane %v801, 2
      %v804 = vshrl.u32 %v782, 16
      %v806 = vrot.slane %v804, 6
      %v807 = vshll.u32 %v782, 16
      %v809 = vrot.slane %v807, 7
      %v810 = vor.u32 %v806, %v809
      %v811 = vrot.slane %v810, 2
      %v813 = vshll.u32 %v785, 16
      %v815 = vrot.slane %v813, 7
      %v816 = vsel %vm399, %v811, %v815
      %v817 = vshrl.u32 %v788, 16
      %v819 = vrot.slane %v817, 6
      %v820 = vshll.u32 %v788, 16
      %v822 = vrot.slane %v820, 7
      %v823 = vor.u32 %v819, %v822
      %v824 = vrot.slane %v823, 2
      %v826 = vshll.u32 %v791, 16
      %v828 = vrot.slane %v826, 7
      %v829 = vsel %vm399, %v824, %v828
      %v830 = vshrl.u32 %v794, 16
      %v832 = vrot.slane %v830, 6
      %v833 = vshll.u32 %v794, 16
      %v835 = vrot.slane %v833, 7
      %v836 = vor.u32 %v832, %v835
      %v837 = vrot.slane %v836, 2
      %v839 = vshll.u32 %v797, 16
      %v841 = vrot.slane %v839, 7
      %v842 = vsel %vm399, %v837, %v841
      %v843 = vshrl.u32 %v800, 16
      %v845 = vrot.slane %v843, 6
      %v846 = vshll.u32 %v800, 16
      %v848 = vrot.slane %v846, 7
      %v849 = vor.u32 %v845, %v848
      %v850 = vrot.slane %v849, 2
      %v852 = vshll.u32 %v803, 16
      %v854 = vrot.slane %v852, 7
      %v855 = vsel %vm399, %v850, %v854
      %857 = vst [vmem:[#allocation1] ss:$2 sm:$0xff] %v816
      %s859 = scalar_lea.vmem [#allocation1], 1
      %860 = vst [vmem:[%s859] ss:$2 sm:$0xff] %v829
      %s862 = scalar_lea.vmem [#allocation1], 16
      %863 = vst [vmem:[%s862] ss:$2 sm:$0xff] %v842
      %s865 = scalar_lea.vmem [#allocation1], 17
      %866 = vst [vmem:[%s865] ss:$2 sm:$0xff] %v855
      %v867 = vld.sshfl [vmem:[#allocation1] sm:$0xff pattern:$0x75643120]
      %v868 = vld.sshfl [vmem:[#allocation1 + $0x10] sm:$0xff pattern:$0x75643120]
      %871 = vst [vmem:[#allocation3 + $0x1c] sm:$0xf] %v867
      %872 = vst [vmem:[#allocation3 + $0x40] sm:$0xf] %v868
      %v873 = vld [vmem:[%s746] sm:$0x6]
      %v874 = vld [vmem:[%s746 + $0x4] sm:$0x6]
      %v875 = vld [vmem:[%s746 + $0x8] sm:$0x6]
      %v876 = vld [vmem:[%s746 + $0xc] sm:$0x6]
      %v881 = vrot.slane %v873, 2
      %v882 = vrot.slane %v874, 2
      %v883 = vrot.slane %v875, 2
      %v884 = vrot.slane %v876, 2
      %v887 = vsel %vm367, %v873, %v881
      %v889 = vsel %vm371, %v873, %v881
      %v891 = vrot.slane %v889, 2
      %v894 = vsel %vm367, %v874, %v882
      %v896 = vsel %vm371, %v874, %v882
      %v898 = vrot.slane %v896, 2
      %v901 = vsel %vm367, %v875, %v883
      %v903 = vsel %vm371, %v875, %v883
      %v905 = vrot.slane %v903, 2
      %v908 = vsel %vm367, %v876, %v884
      %v910 = vsel %vm371, %v876, %v884
      %v912 = vrot.slane %v910, 2
      %v913 = vrot.slane %v887, 7
      %v914 = vrot.slane %v913, 2
      %v915 = vrot.slane %v891, 7
      %v916 = vsel %vm513, %v914, %v915
      %v917 = vrot.slane %v894, 7
      %v918 = vrot.slane %v917, 2
      %v919 = vrot.slane %v898, 7
      %v920 = vsel %vm513, %v918, %v919
      %v921 = vrot.slane %v901, 7
      %v922 = vrot.slane %v921, 2
      %v923 = vrot.slane %v905, 7
      %v924 = vsel %vm513, %v922, %v923
      %v925 = vrot.slane %v908, 7
      %v926 = vrot.slane %v925, 2
      %v927 = vrot.slane %v912, 7
      %v928 = vsel %vm513, %v926, %v927
      %930 = vst [vmem:[#allocation1] ss:$2 sm:$0xff] %v916
      %s932 = scalar_lea.vmem [#allocation1], 1
      %933 = vst [vmem:[%s932] ss:$2 sm:$0xff] %v920
      %s935 = scalar_lea.vmem [#allocation1], 16
      %936 = vst [vmem:[%s935] ss:$2 sm:$0xff] %v924
      %s938 = scalar_lea.vmem [#allocation1], 17
      %939 = vst [vmem:[%s938] ss:$2 sm:$0xff] %v928
      %v940 = vld.sshfl [vmem:[#allocation1] sm:$0xff pattern:$0x75643120]
      %v941 = vld.sshfl [vmem:[#allocation1 + $0x10] sm:$0xff pattern:$0x75643120]
      %944 = vst [vmem:[#allocation3 + $0x20] sm:$0xf] %v940
      %945 = vst [vmem:[#allocation3 + $0x44] sm:$0xf] %v941
      %v946 = vld [vmem:[#allocation3] sm:$0xff]
      %v947 = vld [vmem:[#allocation3 + $0x8] sm:$0xff]
      %v948 = vld [vmem:[#allocation3 + $0x10] sm:$0xff]
      %v949 = vld [vmem:[#allocation3 + $0x18] sm:$0xff]
      %v950 = vld [vmem:[#allocation3 + $0x20] sm:$0xf]
      %v951 = vld [vmem:[#allocation3 + $0x24] sm:$0xff]
      %v952 = vld [vmem:[#allocation3 + $0x2c] sm:$0xff]
      %v953 = vld [vmem:[#allocation3 + $0x34] sm:$0xff]
      %v954 = vld [vmem:[#allocation3 + $0x3c] sm:$0xff]
      %v955 = vld [vmem:[#allocation3 + $0x44] sm:$0xf]
      %v956 = vld [vmem:[%s1] sm:$0xf]
      %v957 = vld [vmem:[%s1 + $0x4] sm:$0xf]
      %v958 = vld [vmem:[%s1 + $0x8] sm:$0xf]
      %v959 = vld [vmem:[%s1 + $0xc] sm:$0xf]
      %v960 = vld [vmem:[%s1 + $0x10] sm:$0xf]
      %v961 = vld [vmem:[%s1 + $0x14] sm:$0xf]
      %v962 = vld [vmem:[%s1 + $0x18] sm:$0xf]
      %v963 = vld [vmem:[%s1 + $0x1c] sm:$0xf]
      %v964 = vld [vmem:[%s1 + $0x20] sm:$0xf]
      %v965 = vld [vmem:[%s1 + $0x24] sm:$0xf]
      %v966 = vld [vmem:[%s1 + $0x28] sm:$0xf]
      %v967 = vld [vmem:[%s1 + $0x2c] sm:$0xf]
      %v968 = vld [vmem:[%s1 + $0x30] sm:$0xf]
      %v969 = vld [vmem:[%s1 + $0x34] sm:$0xf]
      %v970 = vld [vmem:[%s1 + $0x38] sm:$0xf]
      %v971 = vld [vmem:[%s1 + $0x3c] sm:$0xf]
      %v972 = vld [vmem:[%s1 + $0x40] sm:$0xf]
      %v973 = vld [vmem:[%s1 + $0x44] sm:$0xf]
      %v974 = vld [vmem:[%s1 + $0x48] sm:$0xf]
      %v975 = vld [vmem:[%s1 + $0x4c] sm:$0xf]
      %v976 = vld [vmem:[%s1 + $0x50] sm:$0xf]
      %v977 = vld [vmem:[%s1 + $0x54] sm:$0xf]
      %v978 = vld [vmem:[%s1 + $0x58] sm:$0xf]
      %v979 = vld [vmem:[%s1 + $0x5c] sm:$0xf]
      %v980 = vld [vmem:[%s1 + $0x60] sm:$0xf]
      %v981 = vld [vmem:[%s1 + $0x64] sm:$0xf]
      %v982 = vld [vmem:[%s1 + $0x68] sm:$0xf]
      %v983 = vld [vmem:[%s1 + $0x6c] sm:$0xf]
      %v984 = vld [vmem:[%s1 + $0x70] sm:$0xf]
      %v985 = vld [vmem:[%s1 + $0x74] sm:$0xf]
      %v986 = vld [vmem:[%s1 + $0x78] sm:$0xf]
      %v987 = vld [vmem:[%s1 + $0x7c] sm:$0xf]
      %v988 = vld [vmem:[%s1 + $0x80] sm:$0xf]
      %v989 = vld [vmem:[%s1 + $0x84] sm:$0xf]
      %v990 = vld [vmem:[%s1 + $0x88] sm:$0xf]
      %v991 = vld [vmem:[%s1 + $0x8c] sm:$0xf]
      %v992 = vld [vmem:[%s1 + $0x90] sm:$0xf]
      %v993 = vld [vmem:[%s1 + $0x94] sm:$0xf]
      %v994 = vld [vmem:[%s1 + $0x98] sm:$0xf]
      %v995 = vld [vmem:[%s1 + $0x9c] sm:$0xf]
      %v996 = vld [vmem:[%s1 + $0xa0] sm:$0xf]
      %v997 = vld [vmem:[%s1 + $0xa4] sm:$0xf]
      %v998 = vld [vmem:[%s1 + $0xa8] sm:$0xf]
      %v999 = vld [vmem:[%s1 + $0xac] sm:$0xf]
      %v1000 = vld [vmem:[%s1 + $0xb0] sm:$0xf]
      %v1001 = vld [vmem:[%s1 + $0xb4] sm:$0xf]
      %v1002 = vld [vmem:[%s1 + $0xb8] sm:$0xf]
      %v1003 = vld [vmem:[%s1 + $0xbc] sm:$0xf]
      %v1004 = vld [vmem:[%s1 + $0xc0] sm:$0xf]
      %v1005 = vld [vmem:[%s1 + $0xc4] sm:$0xf]
      %v1006 = vld [vmem:[%s1 + $0xc8] sm:$0xf]
      %v1007 = vld [vmem:[%s1 + $0xcc] sm:$0xf]
      %v1008 = vld [vmem:[%s1 + $0xd0] sm:$0xf]
      %v1009 = vld [vmem:[%s1 + $0xd4] sm:$0xf]
      %v1010 = vld [vmem:[%s1 + $0xd8] sm:$0xf]
      %v1011 = vld [vmem:[%s1 + $0xdc] sm:$0xf]
      %v1012 = vld [vmem:[%s1 + $0xe0] sm:$0xf]
      %v1013 = vld [vmem:[%s1 + $0xe4] sm:$0xf]
      %v1014 = vld [vmem:[%s1 + $0xe8] sm:$0xf]
      %v1015 = vld [vmem:[%s1 + $0xec] sm:$0xf]
      %v1016 = vld [vmem:[%s1 + $0xf0] sm:$0xf]
      %v1017 = vld [vmem:[%s1 + $0xf4] sm:$0xf]
      %v1018 = vld [vmem:[%s1 + $0xf8] sm:$0xf]
      %v1019 = vld [vmem:[%s1 + $0xfc] sm:$0xf]
      %v1020 = vld [vmem:[%s1 + $0x100] sm:$0xf]
      %v1021 = vld [vmem:[%s1 + $0x104] sm:$0xf]
      %v1022 = vld [vmem:[%s1 + $0x108] sm:$0xf]
      %v1023 = vld [vmem:[%s1 + $0x10c] sm:$0xf]
      %v1024 = vld [vmem:[%s1 + $0x110] sm:$0xf]
      %v1025 = vld [vmem:[%s1 + $0x114] sm:$0xf]
      %v1026 = vld [vmem:[%s1 + $0x118] sm:$0xf]
      %v1027 = vld [vmem:[%s1 + $0x11c] sm:$0xf]
      %v1028 = vld [vmem:[%s1 + $0x120] sm:$0xf]
      %v1029 = vld [vmem:[%s1 + $0x124] sm:$0xf]
      %v1030 = vld [vmem:[%s1 + $0x128] sm:$0xf]
      %v1031 = vld [vmem:[%s1 + $0x12c] sm:$0xf]
      %v1032 = vld [vmem:[%s1 + $0x130] sm:$0xf]
      %v1033 = vld [vmem:[%s1 + $0x134] sm:$0xf]
      %v1034 = vld [vmem:[%s1 + $0x138] sm:$0xf]
      %v1035 = vld [vmem:[%s1 + $0x13c] sm:$0xf]
      %v1036 = vld [vmem:[%s1 + $0x140] sm:$0xf]
      %v1037 = vld [vmem:[%s1 + $0x144] sm:$0xf]
      %v1038 = vld [vmem:[%s1 + $0x148] sm:$0xf]
      %v1039 = vld [vmem:[%s1 + $0x14c] sm:$0xf]
      %v1040 = vld [vmem:[%s1 + $0x150] sm:$0xf]
      %v1041 = vld [vmem:[%s1 + $0x154] sm:$0xf]
      %v1042 = vld [vmem:[%s1 + $0x158] sm:$0xf]
      %v1043 = vld [vmem:[%s1 + $0x15c] sm:$0xf]
      %v1044 = vld [vmem:[%s1 + $0x160] sm:$0xf]
      %v1045 = vld [vmem:[%s1 + $0x164] sm:$0xf]
      %v1046 = vld [vmem:[%s1 + $0x168] sm:$0xf]
      %v1047 = vld [vmem:[%s1 + $0x16c] sm:$0xf]
      %v1048 = vld [vmem:[%s1 + $0x170] sm:$0xf]
      %v1049 = vld [vmem:[%s1 + $0x174] sm:$0xf]
      %v1050 = vld [vmem:[%s1 + $0x178] sm:$0xf]
      %v1051 = vld [vmem:[%s1 + $0x17c] sm:$0xf]
      %v1052 = vld [vmem:[%s1 + $0x180] sm:$0xf]
      %v1053 = vld [vmem:[%s1 + $0x184] sm:$0xf]
      %v1054 = vld [vmem:[%s1 + $0x188] sm:$0xf]
      %v1055 = vld [vmem:[%s1 + $0x18c] sm:$0xf]
      %v1056 = vld [vmem:[%s1 + $0x190] sm:$0xf]
      %v1057 = vld [vmem:[%s1 + $0x194] sm:$0xf]
      %v1058 = vld [vmem:[%s1 + $0x198] sm:$0xf]
      %v1059 = vld [vmem:[%s1 + $0x19c] sm:$0xf]
      %v1060 = vld [vmem:[%s1 + $0x1a0] sm:$0xf]
      %v1061 = vld [vmem:[%s1 + $0x1a4] sm:$0xf]
      %v1062 = vld [vmem:[%s1 + $0x1a8] sm:$0xf]
      %v1063 = vld [vmem:[%s1 + $0x1ac] sm:$0xf]
      %v1064 = vld [vmem:[%s1 + $0x1b0] sm:$0xf]
      %v1065 = vld [vmem:[%s1 + $0x1b4] sm:$0xf]
      %v1066 = vld [vmem:[%s1 + $0x1b8] sm:$0xf]
      %v1067 = vld [vmem:[%s1 + $0x1bc] sm:$0xf]
      %v1068 = vld [vmem:[%s1 + $0x1c0] sm:$0xf]
      %v1069 = vld [vmem:[%s1 + $0x1c4] sm:$0xf]
      %v1070 = vld [vmem:[%s1 + $0x1c8] sm:$0xf]
      %v1071 = vld [vmem:[%s1 + $0x1cc] sm:$0xf]
      %v1072 = vld [vmem:[%s1 + $0x1d0] sm:$0xf]
      %v1073 = vld [vmem:[%s1 + $0x1d4] sm:$0xf]
      %v1074 = vld [vmem:[%s1 + $0x1d8] sm:$0xf]
      %v1075 = vld [vmem:[%s1 + $0x1dc] sm:$0xf]
      %v1076 = vld [vmem:[%s1 + $0x1e0] sm:$0xf]
      %v1077 = vld [vmem:[%s1 + $0x1e4] sm:$0xf]
      %v1078 = vld [vmem:[%s1 + $0x1e8] sm:$0xf]
      %v1079 = vld [vmem:[%s1 + $0x1ec] sm:$0xf]
      %v1080 = vld [vmem:[%s1 + $0x1f0] sm:$0xf]
      %v1081 = vld [vmem:[%s1 + $0x1f4] sm:$0xf]
      %v1082 = vld [vmem:[%s1 + $0x1f8] sm:$0xf]
      %v1083 = vld [vmem:[%s1 + $0x1fc] sm:$0xf]
      %v1084 = vld [vmem:[%s1 + $0x200] sm:$0xf]
      %v1085 = vld [vmem:[%s1 + $0x204] sm:$0xf]
      %v1086 = vld [vmem:[%s1 + $0x208] sm:$0xf]
      %v1087 = vld [vmem:[%s1 + $0x20c] sm:$0xf]
      %v1088 = vld [vmem:[%s1 + $0x210] sm:$0xf]
      %v1089 = vld [vmem:[%s1 + $0x214] sm:$0xf]
      %v1090 = vld [vmem:[%s1 + $0x218] sm:$0xf]
      %v1091 = vld [vmem:[%s1 + $0x21c] sm:$0xf]
      %v1092 = vld [vmem:[%s1 + $0x220] sm:$0xf]
      %v1093 = vld [vmem:[%s1 + $0x224] sm:$0xf]
      %v1094 = vld [vmem:[%s1 + $0x228] sm:$0xf]
      %v1095 = vld [vmem:[%s1 + $0x22c] sm:$0xf]
      %v1096 = vld [vmem:[%s1 + $0x230] sm:$0xf]
      %v1097 = vld [vmem:[%s1 + $0x234] sm:$0xf]
      %v1098 = vld [vmem:[%s1 + $0x238] sm:$0xf]
      %v1099 = vld [vmem:[%s1 + $0x23c] sm:$0xf]
      %v1100 = vld [vmem:[%s2] sm:$0x1]
      %v1102 = vperm.slane %v1100, 0
      %v1114 = vunpack.c.l.b16 %v946
      %v1115 = vunpack.c.h.b16 %v946
      %v1116 = vunpack.c.l.b16 %v947
      %v1117 = vunpack.c.h.b16 %v947
      %v1118 = vunpack.c.l.b16 %v948
      %v1119 = vunpack.c.h.b16 %v948
      %v1120 = vunpack.c.l.b16 %v949
      %v1121 = vunpack.c.h.b16 %v949
      %v1122 = vunpack.c.l.b16 %v950
      %v1123 = vunpack.c.l.b16 %v951
      %v1124 = vunpack.c.h.b16 %v951
      %v1125 = vunpack.c.l.b16 %v952
      %v1126 = vunpack.c.h.b16 %v952
      %v1127 = vunpack.c.l.b16 %v953
      %v1128 = vunpack.c.h.b16 %v953
      %v1129 = vunpack.c.l.b16 %v954
      %v1130 = vunpack.c.h.b16 %v954
      %v1131 = vunpack.c.l.b16 %v955
      %v1132 = vpack.c.b16 %v1123, %v1114
      %v1133 = vpack.c.b16 %v1124, %v1115
      %v1134 = vpack.c.b16 %v1125, %v1116
      %v1135 = vpack.c.b16 %v1126, %v1117
      %v1136 = vpack.c.b16 %v1127, %v1118
      %v1137 = vpack.c.b16 %v1128, %v1119
      %v1138 = vpack.c.b16 %v1129, %v1120
      %v1139 = vpack.c.b16 %v1130, %v1121
      %v1140 = vpack.c.b16 %v1131, %v1122
      %v1294 = vunpack.c.l.b16 %v956
      %v1295 = vunpack.c.l.b16 %v957
      %v1296 = vunpack.c.l.b16 %v958
      %v1297 = vunpack.c.l.b16 %v959
      %v1298 = vunpack.c.l.b16 %v960
      %v1299 = vunpack.c.l.b16 %v961
      %v1300 = vunpack.c.l.b16 %v962
      %v1301 = vunpack.c.l.b16 %v963
      %v1302 = vunpack.c.l.b16 %v964
      %v1303 = vunpack.c.l.b16 %v965
      %v1304 = vunpack.c.l.b16 %v966
      %v1305 = vunpack.c.l.b16 %v967
      %v1306 = vunpack.c.l.b16 %v968
      %v1307 = vunpack.c.l.b16 %v969
      %v1308 = vunpack.c.l.b16 %v970
      %v1309 = vunpack.c.l.b16 %v971
      %v1310 = vunpack.c.l.b16 %v972
      %v1311 = vunpack.c.l.b16 %v973
      %v1312 = vunpack.c.l.b16 %v974
      %v1313 = vunpack.c.l.b16 %v975
      %v1314 = vunpack.c.l.b16 %v976
      %v1315 = vunpack.c.l.b16 %v977
      %v1316 = vunpack.c.l.b16 %v978
      %v1317 = vunpack.c.l.b16 %v979
      %v1318 = vunpack.c.l.b16 %v980
      %v1319 = vunpack.c.l.b16 %v981
      %v1320 = vunpack.c.l.b16 %v982
      %v1321 = vunpack.c.l.b16 %v983
      %v1322 = vunpack.c.l.b16 %v984
      %v1323 = vunpack.c.l.b16 %v985
      %v1324 = vunpack.c.l.b16 %v986
      %v1325 = vunpack.c.l.b16 %v987
      %v1326 = vunpack.c.l.b16 %v988
      %v1327 = vunpack.c.l.b16 %v989
      %v1328 = vunpack.c.l.b16 %v990
      %v1329 = vunpack.c.l.b16 %v991
      %v1330 = vunpack.c.l.b16 %v992
      %v1331 = vunpack.c.l.b16 %v993
      %v1332 = vunpack.c.l.b16 %v994
      %v1333 = vunpack.c.l.b16 %v995
      %v1334 = vunpack.c.l.b16 %v996
      %v1335 = vunpack.c.l.b16 %v997
      %v1336 = vunpack.c.l.b16 %v998
      %v1337 = vunpack.c.l.b16 %v999
      %v1338 = vunpack.c.l.b16 %v1000
      %v1339 = vunpack.c.l.b16 %v1001
      %v1340 = vunpack.c.l.b16 %v1002
      %v1341 = vunpack.c.l.b16 %v1003
      %v1342 = vunpack.c.l.b16 %v1004
      %v1343 = vunpack.c.l.b16 %v1005
      %v1344 = vunpack.c.l.b16 %v1006
      %v1345 = vunpack.c.l.b16 %v1007
      %v1346 = vunpack.c.l.b16 %v1008
      %v1347 = vunpack.c.l.b16 %v1009
      %v1348 = vunpack.c.l.b16 %v1010
      %v1349 = vunpack.c.l.b16 %v1011
      %v1350 = vunpack.c.l.b16 %v1012
      %v1351 = vunpack.c.l.b16 %v1013
      %v1352 = vunpack.c.l.b16 %v1014
      %v1353 = vunpack.c.l.b16 %v1015
      %v1354 = vunpack.c.l.b16 %v1016
      %v1355 = vunpack.c.l.b16 %v1017
      %v1356 = vunpack.c.l.b16 %v1018
      %v1357 = vunpack.c.l.b16 %v1019
      %v1358 = vunpack.c.l.b16 %v1020
      %v1359 = vunpack.c.l.b16 %v1021
      %v1360 = vunpack.c.l.b16 %v1022
      %v1361 = vunpack.c.l.b16 %v1023
      %v1362 = vunpack.c.l.b16 %v1024
      %v1363 = vunpack.c.l.b16 %v1025
      %v1364 = vunpack.c.l.b16 %v1026
      %v1365 = vunpack.c.l.b16 %v1027
      %v1366 = vunpack.c.l.b16 %v1028
      %v1367 = vunpack.c.l.b16 %v1029
      %v1368 = vunpack.c.l.b16 %v1030
      %v1369 = vunpack.c.l.b16 %v1031
      %v1370 = vunpack.c.l.b16 %v1032
      %v1371 = vunpack.c.l.b16 %v1033
      %v1372 = vunpack.c.l.b16 %v1034
      %v1373 = vunpack.c.l.b16 %v1035
      %v1374 = vunpack.c.l.b16 %v1036
      %v1375 = vunpack.c.l.b16 %v1037
      %v1376 = vunpack.c.l.b16 %v1038
      %v1377 = vunpack.c.l.b16 %v1039
      %v1378 = vunpack.c.l.b16 %v1040
      %v1379 = vunpack.c.l.b16 %v1041
      %v1380 = vunpack.c.l.b16 %v1042
      %v1381 = vunpack.c.l.b16 %v1043
      %v1382 = vunpack.c.l.b16 %v1044
      %v1383 = vunpack.c.l.b16 %v1045
      %v1384 = vunpack.c.l.b16 %v1046
      %v1385 = vunpack.c.l.b16 %v1047
      %v1386 = vunpack.c.l.b16 %v1048
      %v1387 = vunpack.c.l.b16 %v1049
      %v1388 = vunpack.c.l.b16 %v1050
      %v1389 = vunpack.c.l.b16 %v1051
      %v1390 = vunpack.c.l.b16 %v1052
      %v1391 = vunpack.c.l.b16 %v1053
      %v1392 = vunpack.c.l.b16 %v1054
      %v1393 = vunpack.c.l.b16 %v1055
      %v1394 = vunpack.c.l.b16 %v1056
      %v1395 = vunpack.c.l.b16 %v1057
      %v1396 = vunpack.c.l.b16 %v1058
      %v1397 = vunpack.c.l.b16 %v1059
      %v1398 = vunpack.c.l.b16 %v1060
      %v1399 = vunpack.c.l.b16 %v1061
      %v1400 = vunpack.c.l.b16 %v1062
      %v1401 = vunpack.c.l.b16 %v1063
      %v1402 = vunpack.c.l.b16 %v1064
      %v1403 = vunpack.c.l.b16 %v1065
      %v1404 = vunpack.c.l.b16 %v1066
      %v1405 = vunpack.c.l.b16 %v1067
      %v1406 = vunpack.c.l.b16 %v1068
      %v1407 = vunpack.c.l.b16 %v1069
      %v1408 = vunpack.c.l.b16 %v1070
      %v1409 = vunpack.c.l.b16 %v1071
      %v1410 = vunpack.c.l.b16 %v1072
      %v1411 = vunpack.c.l.b16 %v1073
      %v1412 = vunpack.c.l.b16 %v1074
      %v1413 = vunpack.c.l.b16 %v1075
      %v1414 = vunpack.c.l.b16 %v1076
      %v1415 = vunpack.c.l.b16 %v1077
      %v1416 = vunpack.c.l.b16 %v1078
      %v1417 = vunpack.c.l.b16 %v1079
      %v1418 = vunpack.c.l.b16 %v1080
      %v1419 = vunpack.c.l.b16 %v1081
      %v1420 = vunpack.c.l.b16 %v1082
      %v1421 = vunpack.c.l.b16 %v1083
      %v1422 = vunpack.c.l.b16 %v1084
      %v1423 = vunpack.c.l.b16 %v1085
      %v1424 = vunpack.c.l.b16 %v1086
      %v1425 = vunpack.c.l.b16 %v1087
      %v1426 = vunpack.c.l.b16 %v1088
      %v1427 = vunpack.c.l.b16 %v1089
      %v1428 = vunpack.c.l.b16 %v1090
      %v1429 = vunpack.c.l.b16 %v1091
      %v1430 = vunpack.c.l.b16 %v1092
      %v1431 = vunpack.c.l.b16 %v1093
      %v1432 = vunpack.c.l.b16 %v1094
      %v1433 = vunpack.c.l.b16 %v1095
      %v1434 = vunpack.c.l.b16 %v1096
      %v1435 = vunpack.c.l.b16 %v1097
      %v1436 = vunpack.c.l.b16 %v1098
      %v1437 = vunpack.c.l.b16 %v1099
      %v1438 = vpack.c.b16 %v1295, %v1294
      %v1439 = vpack.c.b16 %v1297, %v1296
      %v1440 = vpack.c.b16 %v1299, %v1298
      %v1441 = vpack.c.b16 %v1301, %v1300
      %v1442 = vpack.c.b16 %v1303, %v1302
      %v1443 = vpack.c.b16 %v1305, %v1304
      %v1444 = vpack.c.b16 %v1307, %v1306
      %v1445 = vpack.c.b16 %v1309, %v1308
      %v1446 = vpack.c.b16 %v1311, %v1310
      %v1447 = vpack.c.b16 %v1313, %v1312
      %v1448 = vpack.c.b16 %v1315, %v1314
      %v1449 = vpack.c.b16 %v1317, %v1316
      %v1450 = vpack.c.b16 %v1319, %v1318
      %v1451 = vpack.c.b16 %v1321, %v1320
      %v1452 = vpack.c.b16 %v1323, %v1322
      %v1453 = vpack.c.b16 %v1325, %v1324
      %v1454 = vpack.c.b16 %v1327, %v1326
      %v1455 = vpack.c.b16 %v1329, %v1328
      %v1456 = vpack.c.b16 %v1331, %v1330
      %v1457 = vpack.c.b16 %v1333, %v1332
      %v1458 = vpack.c.b16 %v1335, %v1334
      %v1459 = vpack.c.b16 %v1337, %v1336
      %v1460 = vpack.c.b16 %v1339, %v1338
      %v1461 = vpack.c.b16 %v1341, %v1340
      %v1462 = vpack.c.b16 %v1343, %v1342
      %v1463 = vpack.c.b16 %v1345, %v1344
      %v1464 = vpack.c.b16 %v1347, %v1346
      %v1465 = vpack.c.b16 %v1349, %v1348
      %v1466 = vpack.c.b16 %v1351, %v1350
      %v1467 = vpack.c.b16 %v1353, %v1352
      %v1468 = vpack.c.b16 %v1355, %v1354
      %v1469 = vpack.c.b16 %v1357, %v1356
      %v1470 = vpack.c.b16 %v1359, %v1358
      %v1471 = vpack.c.b16 %v1361, %v1360
      %v1472 = vpack.c.b16 %v1363, %v1362
      %v1473 = vpack.c.b16 %v1365, %v1364
      %v1474 = vpack.c.b16 %v1367, %v1366
      %v1475 = vpack.c.b16 %v1369, %v1368
      %v1476 = vpack.c.b16 %v1371, %v1370
      %v1477 = vpack.c.b16 %v1373, %v1372
      %v1478 = vpack.c.b16 %v1375, %v1374
      %v1479 = vpack.c.b16 %v1377, %v1376
      %v1480 = vpack.c.b16 %v1379, %v1378
      %v1481 = vpack.c.b16 %v1381, %v1380
      %v1482 = vpack.c.b16 %v1383, %v1382
      %v1483 = vpack.c.b16 %v1385, %v1384
      %v1484 = vpack.c.b16 %v1387, %v1386
      %v1485 = vpack.c.b16 %v1389, %v1388
      %v1486 = vpack.c.b16 %v1391, %v1390
      %v1487 = vpack.c.b16 %v1393, %v1392
      %v1488 = vpack.c.b16 %v1395, %v1394
      %v1489 = vpack.c.b16 %v1397, %v1396
      %v1490 = vpack.c.b16 %v1399, %v1398
      %v1491 = vpack.c.b16 %v1401, %v1400
      %v1492 = vpack.c.b16 %v1403, %v1402
      %v1493 = vpack.c.b16 %v1405, %v1404
      %v1494 = vpack.c.b16 %v1407, %v1406
      %v1495 = vpack.c.b16 %v1409, %v1408
      %v1496 = vpack.c.b16 %v1411, %v1410
      %v1497 = vpack.c.b16 %v1413, %v1412
      %v1498 = vpack.c.b16 %v1415, %v1414
      %v1499 = vpack.c.b16 %v1417, %v1416
      %v1500 = vpack.c.b16 %v1419, %v1418
      %v1501 = vpack.c.b16 %v1421, %v1420
      %v1502 = vpack.c.b16 %v1423, %v1422
      %v1503 = vpack.c.b16 %v1425, %v1424
      %v1504 = vpack.c.b16 %v1427, %v1426
      %v1505 = vpack.c.b16 %v1429, %v1428
      %v1506 = vpack.c.b16 %v1431, %v1430
      %v1507 = vpack.c.b16 %v1433, %v1432
      %v1508 = vpack.c.b16 %v1435, %v1434
      %v1509 = vpack.c.b16 %v1437, %v1436
      %1582 = vmatpush.bf16.msra.mxu0 %v1445
      %1583 = vmatpush.bf16.msra.mxu0 %v1444
      %1584 = vmatpush.bf16.msra.mxu0 %v1443
      %1585 = vmatpush.bf16.msra.mxu0 %v1442
      %1586 = vmatpush.bf16.msra.mxu0 %v1441
      %1587 = vmatpush.bf16.msra.mxu0 %v1440
      %1588 = vmatpush.bf16.msra.mxu0 %v1439
      %1589 = vmatpush.bf16.msra.mxu0 %v1438
      %1590 = vmatmul.bf16.gmra.mxu0 %v1132
      %v1591 = vpop.f32.mrf.mxu0
      %v1592 = vadd.f32 %v1102, %v1591
      %v1593 = vpop.f32.mrf.mxu0
      %v1594 = vadd.f32 %v1102, %v1593
      %1595 = vdwg.mxu0
      %1596 = vmatpush.bf16.msra.mxu0 %v1453
      %1597 = vmatpush.bf16.msra.mxu0 %v1452
      %1598 = vmatpush.bf16.msra.mxu0 %v1451
      %1599 = vmatpush.bf16.msra.mxu0 %v1450
      %1600 = vmatpush.bf16.msra.mxu0 %v1449
      %1601 = vmatpush.bf16.msra.mxu0 %v1448
      %1602 = vmatpush.bf16.msra.mxu0 %v1447
      %1603 = vmatpush.bf16.msra.mxu0 %v1446
      %1604 = vmatmul.bf16.gmra.mxu0 %v1133
      %v1605 = vpop.f32.mrf.mxu0
      %v1606 = vadd.f32 %v1592, %v1605
      %v1607 = vpop.f32.mrf.mxu0
      %v1608 = vadd.f32 %v1594, %v1607
      %1609 = vdwg.mxu0
      %1610 = vmatpush.bf16.msra.mxu0 %v1461
      %1611 = vmatpush.bf16.msra.mxu0 %v1460
      %1612 = vmatpush.bf16.msra.mxu0 %v1459
      %1613 = vmatpush.bf16.msra.mxu0 %v1458
      %1614 = vmatpush.bf16.msra.mxu0 %v1457
      %1615 = vmatpush.bf16.msra.mxu0 %v1456
      %1616 = vmatpush.bf16.msra.mxu0 %v1455
      %1617 = vmatpush.bf16.msra.mxu0 %v1454
      %1618 = vmatmul.bf16.gmra.mxu0 %v1134
      %v1619 = vpop.f32.mrf.mxu0
      %v1620 = vadd.f32 %v1606, %v1619
      %v1621 = vpop.f32.mrf.mxu0
      %v1622 = vadd.f32 %v1608, %v1621
      %1623 = vdwg.mxu0
      %1624 = vmatpush.bf16.msra.mxu0 %v1469
      %1625 = vmatpush.bf16.msra.mxu0 %v1468
      %1626 = vmatpush.bf16.msra.mxu0 %v1467
      %1627 = vmatpush.bf16.msra.mxu0 %v1466
      %1628 = vmatpush.bf16.msra.mxu0 %v1465
      %1629 = vmatpush.bf16.msra.mxu0 %v1464
      %1630 = vmatpush.bf16.msra.mxu0 %v1463
      %1631 = vmatpush.bf16.msra.mxu0 %v1462
      %1632 = vmatmul.bf16.gmra.mxu0 %v1135
      %v1633 = vpop.f32.mrf.mxu0
      %v1634 = vadd.f32 %v1620, %v1633
      %v1635 = vpop.f32.mrf.mxu0
      %v1636 = vadd.f32 %v1622, %v1635
      %1637 = vdwg.mxu0
      %1638 = vmatpush.bf16.msra.mxu0 %v1477
      %1639 = vmatpush.bf16.msra.mxu0 %v1476
      %1640 = vmatpush.bf16.msra.mxu0 %v1475
      %1641 = vmatpush.bf16.msra.mxu0 %v1474
      %1642 = vmatpush.bf16.msra.mxu0 %v1473
      %1643 = vmatpush.bf16.msra.mxu0 %v1472
      %1644 = vmatpush.bf16.msra.mxu0 %v1471
      %1645 = vmatpush.bf16.msra.mxu0 %v1470
      %1646 = vmatmul.bf16.gmra.mxu0 %v1136
      %v1647 = vpop.f32.mrf.mxu0
      %v1648 = vadd.f32 %v1634, %v1647
      %v1649 = vpop.f32.mrf.mxu0
      %v1650 = vadd.f32 %v1636, %v1649
      %1651 = vdwg.mxu0
      %1652 = vmatpush.bf16.msra.mxu0 %v1485
      %1653 = vmatpush.bf16.msra.mxu0 %v1484
      %1654 = vmatpush.bf16.msra.mxu0 %v1483
      %1655 = vmatpush.bf16.msra.mxu0 %v1482
      %1656 = vmatpush.bf16.msra.mxu0 %v1481
      %1657 = vmatpush.bf16.msra.mxu0 %v1480
      %1658 = vmatpush.bf16.msra.mxu0 %v1479
      %1659 = vmatpush.bf16.msra.mxu0 %v1478
      %1660 = vmatmul.bf16.gmra.mxu0 %v1137
      %v1661 = vpop.f32.mrf.mxu0
      %v1662 = vadd.f32 %v1648, %v1661
      %v1663 = vpop.f32.mrf.mxu0
      %v1664 = vadd.f32 %v1650, %v1663
      %1665 = vdwg.mxu0
      %1666 = vmatpush.bf16.msra.mxu0 %v1493
      %1667 = vmatpush.bf16.msra.mxu0 %v1492
      %1668 = vmatpush.bf16.msra.mxu0 %v1491
      %1669 = vmatpush.bf16.msra.mxu0 %v1490
      %1670 = vmatpush.bf16.msra.mxu0 %v1489
      %1671 = vmatpush.bf16.msra.mxu0 %v1488
      %1672 = vmatpush.bf16.msra.mxu0 %v1487
      %1673 = vmatpush.bf16.msra.mxu0 %v1486
      %1674 = vmatmul.bf16.gmra.mxu0 %v1138
      %v1675 = vpop.f32.mrf.mxu0
      %v1676 = vadd.f32 %v1662, %v1675
      %v1677 = vpop.f32.mrf.mxu0
      %v1678 = vadd.f32 %v1664, %v1677
      %1679 = vdwg.mxu0
      %1680 = vmatpush.bf16.msra.mxu0 %v1501
      %1681 = vmatpush.bf16.msra.mxu0 %v1500
      %1682 = vmatpush.bf16.msra.mxu0 %v1499
      %1683 = vmatpush.bf16.msra.mxu0 %v1498
      %1684 = vmatpush.bf16.msra.mxu0 %v1497
      %1685 = vmatpush.bf16.msra.mxu0 %v1496
      %1686 = vmatpush.bf16.msra.mxu0 %v1495
      %1687 = vmatpush.bf16.msra.mxu0 %v1494
      %1688 = vmatmul.bf16.gmra.mxu0 %v1139
      %v1689 = vpop.f32.mrf.mxu0
      %v1690 = vadd.f32 %v1676, %v1689
      %v1691 = vpop.f32.mrf.mxu0
      %v1692 = vadd.f32 %v1678, %v1691
      %1693 = vdwg.mxu0
      %1694 = vmatpush.bf16.msra.mxu0 %v1509
      %1695 = vmatpush.bf16.msra.mxu0 %v1508
      %1696 = vmatpush.bf16.msra.mxu0 %v1507
      %1697 = vmatpush.bf16.msra.mxu0 %v1506
      %1698 = vmatpush.bf16.msra.mxu0 %v1505
      %1699 = vmatpush.bf16.msra.mxu0 %v1504
      %1700 = vmatpush.bf16.msra.mxu0 %v1503
      %1701 = vmatpush.bf16.msra.mxu0 %v1502
      %1702 = vmatmul.bf16.gmra.mxu0 %v1140
      %v1703 = vpop.f32.mrf.mxu0
      %v1704 = vadd.f32 %v1690, %v1703
      %v1705 = vpop.f32.mrf.mxu0
      %v1706 = vadd.f32 %v1692, %v1705
      %1707 = vdwg.mxu0
      %1708 = vst [vmem:[#allocation4] sm:$0xff] %v1704
      %1709 = vst [vmem:[#allocation4 + $0x8] sm:$0xff] %v1706
      loop: start=0, step=1, limit=2
      $region41: #{encoder_forward.5} parent=39 // loop_pre_header
        _
      $region42: #{encoder_forward.5} parent=39 // loop_header
        %s1711 = sphi 0, %s1715
        %p1712 = scmp.ge.s32.totalorder %s1711, 2
      $region43: #{encoder_forward.5} parent=39 // loop_header_branch
        %1714 = sbr.rel (%p1712) target = $region47
      $region44: #{encoder_forward.5} parent=39 // loop_body
        %v1716 = vld [vmem:[#allocation4] sm:$0xff]
        %v1717 = vld [vmem:[#allocation4 + $0x8] sm:$0xff]
        %v1718 = vmax.f32 %v1716, 0.0
        %v1719 = vmax.f32 %v1717, 0.0
        %v1720 = vpack.c.bf16 %v1718, %v1718
        %v1721 = vpack.c.bf16 %v1719, %v1719
        %v1724 = vrot.slane %v1720, 2
        %v1725 = vrot.slane %v1721, 2
        %v1728 = vsel %vm367, %v1720, %v1724
        %v1729 = vsel %vm371, %v1720, %v1724
        %v1731 = vrot.slane %v1729, 2
        %v1734 = vsel %vm367, %v1721, %v1725
        %v1735 = vsel %vm371, %v1721, %v1725
        %v1737 = vrot.slane %v1735, 2
        %1738 = vst [vmem:[#allocation1] ss:$2 sm:$0xff] %v1728
        %v1739 = vld.sshfl [vmem:[#allocation1] sm:$0xff pattern:$0x75643120]
        %s1741 = scalar_lea.vmem [#allocation1], 16
        %1742 = vst [vmem:[%s1741] ss:$2 sm:$0xff] %v1731
        %v1743 = vld.sshfl [vmem:[#allocation1 + $0x10] sm:$0xff pattern:$0x75643120]
        %s1744 = scalar_lea.vmem [#allocation1], 32
        %1745 = vst [vmem:[%s1744] ss:$2 sm:$0xff] %v1734
        %v1746 = vld.sshfl [vmem:[#allocation1 + $0x20] sm:$0xff pattern:$0x75643120]
        %s1748 = scalar_lea.vmem [#allocation1], 48
        %1749 = vst [vmem:[%s1748] ss:$2 sm:$0xff] %v1737
        %v1750 = vld.sshfl [vmem:[#allocation1 + $0x30] sm:$0xff pattern:$0x75643120]
        %v1751 = vshrl.u32 %v1739, 16
        %v1753 = vrot.slane %v1751, 7
        %v1754 = vshll.u32 %v1739, 16
        %v1756 = vor.u32 %v1753, %v1754
        %v1757 = vshrl.u32 %v1743, 16
        %v1759 = vrot.slane %v1757, 7
        %v1760 = vshll.u32 %v1743, 16
        %v1762 = vor.u32 %v1759, %v1760
        %v1763 = vshrl.u32 %v1746, 16
        %v1765 = vrot.slane %v1763, 7
        %v1766 = vshll.u32 %v1746, 16
        %v1768 = vor.u32 %v1765, %v1766
        %v1769 = vshrl.u32 %v1750, 16
        %v1771 = vrot.slane %v1769, 7
        %v1772 = vshll.u32 %v1750, 16
        %v1774 = vor.u32 %v1771, %v1772
        %v1779 = vld [vmem:[%s318] sm:$0x7]
        %v1780 = vsel %vm321, %v1756, %v1779
        %1781 = vst [vmem:[%s318] sm:$0x7] %v1780
        %v1782 = vld [vmem:[%s318 + $0x4] sm:$0x7]
        %v1783 = vsel %vm321, %v1762, %v1782
        %1784 = vst [vmem:[%s318 + $0x4] sm:$0x7] %v1783
        %v1785 = vld [vmem:[%s318 + $0x8] sm:$0x7]
        %v1786 = vsel %vm321, %v1768, %v1785
        %1787 = vst [vmem:[%s318 + $0x8] sm:$0x7] %v1786
        %v1788 = vld [vmem:[%s318 + $0xc] sm:$0x7]
        %v1789 = vsel %vm321, %v1774, %v1788
        %1790 = vst [vmem:[%s318 + $0xc] sm:$0x7] %v1789
        %v1791 = vld [vmem:[#allocation2] sm:$0x3]
        %v1792 = vld [vmem:[#allocation2 + $0x4] sm:$0x3]
        %v1793 = vld [vmem:[#allocation2 + $0x8] sm:$0x3]
        %v1794 = vld [vmem:[#allocation2 + $0xc] sm:$0x3]
        %1796 = vst [vmem:[#allocation1] ss:$2 sm:$0xff] %v1791
        %s1798 = scalar_lea.vmem [#allocation1], 1
        %1799 = vst [vmem:[%s1798] ss:$2 sm:$0xff] %v1792
        %s1801 = scalar_lea.vmem [#allocation1], 16
        %1802 = vst [vmem:[%s1801] ss:$2 sm:$0xff] %v1793
        %s1804 = scalar_lea.vmem [#allocation1], 17
        %1805 = vst [vmem:[%s1804] ss:$2 sm:$0xff] %v1794
        %v1806 = vld.sshfl [vmem:[#allocation1] sm:$0xff pattern:$0x75643120]
        %v1807 = vld.sshfl [vmem:[#allocation1 + $0x10] sm:$0xff pattern:$0x75643120]
        %1810 = vst [vmem:[#allocation3] sm:$0xf] %v1806
        %1811 = vst [vmem:[#allocation3 + $0x24] sm:$0xf] %v1807
        %v1812 = vld [vmem:[#allocation2] sm:$0x7]
        %v1813 = vld [vmem:[#allocation2 + $0x4] sm:$0x7]
        %v1814 = vld [vmem:[#allocation2 + $0x8] sm:$0x7]
        %v1815 = vld [vmem:[#allocation2 + $0xc] sm:$0x7]
        %v1820 = vrot.slane %v1812, 2
        %v1821 = vrot.slane %v1813, 2
        %v1822 = vrot.slane %v1814, 2
        %v1823 = vrot.slane %v1815, 2
        %v1826 = vsel %vm367, %v1812, %v1820
        %v1827 = vsel %vm371, %v1812, %v1820
        %v1829 = vrot.slane %v1827, 2
        %v1832 = vsel %vm367, %v1813, %v1821
        %v1833 = vsel %vm371, %v1813, %v1821
        %v1835 = vrot.slane %v1833, 2
        %v1838 = vsel %vm367, %v1814, %v1822
        %v1839 = vsel %vm371, %v1814, %v1822
        %v1841 = vrot.slane %v1839, 2
        %v1844 = vsel %vm367, %v1815, %v1823
        %v1845 = vsel %vm371, %v1815, %v1823
        %v1847 = vrot.slane %v1845, 2
        %v1848 = vshrl.u32 %v1826, 16
        %v1850 = vrot.slane %v1848, 6
        %v1851 = vshll.u32 %v1826, 16
        %v1853 = vrot.slane %v1851, 7
        %v1854 = vor.u32 %v1850, %v1853
        %v1855 = vrot.slane %v1854, 2
        %v1857 = vshll.u32 %v1829, 16
        %v1859 = vrot.slane %v1857, 7
        %v1860 = vsel %vm399, %v1855, %v1859
        %v1861 = vshrl.u32 %v1832, 16
        %v1863 = vrot.slane %v1861, 6
        %v1864 = vshll.u32 %v1832, 16
        %v1866 = vrot.slane %v1864, 7
        %v1867 = vor.u32 %v1863, %v1866
        %v1868 = vrot.slane %v1867, 2
        %v1870 = vshll.u32 %v1835, 16
        %v1872 = vrot.slane %v1870, 7
        %v1873 = vsel %vm399, %v1868, %v1872
        %v1874 = vshrl.u32 %v1838, 16
        %v1876 = vrot.slane %v1874, 6
        %v1877 = vshll.u32 %v1838, 16
        %v1879 = vrot.slane %v1877, 7
        %v1880 = vor.u32 %v1876, %v1879
        %v1881 = vrot.slane %v1880, 2
        %v1883 = vshll.u32 %v1841, 16
        %v1885 = vrot.slane %v1883, 7
        %v1886 = vsel %vm399, %v1881, %v1885
        %v1887 = vshrl.u32 %v1844, 16
        %v1889 = vrot.slane %v1887, 6
        %v1890 = vshll.u32 %v1844, 16
        %v1892 = vrot.slane %v1890, 7
        %v1893 = vor.u32 %v1889, %v1892
        %v1894 = vrot.slane %v1893, 2
        %v1896 = vshll.u32 %v1847, 16
        %v1898 = vrot.slane %v1896, 7
        %v1899 = vsel %vm399, %v1894, %v1898
        %1901 = vst [vmem:[#allocation1] ss:$2 sm:$0xff] %v1860
        %s1903 = scalar_lea.vmem [#allocation1], 1
        %1904 = vst [vmem:[%s1903] ss:$2 sm:$0xff] %v1873
        %s1906 = scalar_lea.vmem [#allocation1], 16
        %1907 = vst [vmem:[%s1906] ss:$2 sm:$0xff] %v1886
        %s1909 = scalar_lea.vmem [#allocation1], 17
        %1910 = vst [vmem:[%s1909] ss:$2 sm:$0xff] %v1899
        %v1911 = vld.sshfl [vmem:[#allocation1] sm:$0xff pattern:$0x75643120]
        %v1912 = vld.sshfl [vmem:[#allocation1 + $0x10] sm:$0xff pattern:$0x75643120]
        %1915 = vst [vmem:[#allocation3 + $0x4] sm:$0xf] %v1911
        %1916 = vst [vmem:[#allocation3 + $0x28] sm:$0xf] %v1912
        %v1917 = vld [vmem:[#allocation2] sm:$0x6]
        %v1918 = vld [vmem:[#allocation2 + $0x4] sm:$0x6]
        %v1919 = vld [vmem:[#allocation2 + $0x8] sm:$0x6]
        %v1920 = vld [vmem:[#allocation2 + $0xc] sm:$0x6]
        %v1925 = vrot.slane %v1917, 2
        %v1926 = vrot.slane %v1918, 2
        %v1927 = vrot.slane %v1919, 2
        %v1928 = vrot.slane %v1920, 2
        %v1931 = vsel %vm367, %v1917, %v1925
        %v1933 = vsel %vm371, %v1917, %v1925
        %v1935 = vrot.slane %v1933, 2
        %v1938 = vsel %vm367, %v1918, %v1926
        %v1940 = vsel %vm371, %v1918, %v1926
        %v1942 = vrot.slane %v1940, 2
        %v1945 = vsel %vm367, %v1919, %v1927
        %v1947 = vsel %vm371, %v1919, %v1927
        %v1949 = vrot.slane %v1947, 2
        %v1952 = vsel %vm367, %v1920, %v1928
        %v1954 = vsel %vm371, %v1920, %v1928
        %v1956 = vrot.slane %v1954, 2
        %v1957 = vrot.slane %v1931, 7
        %v1958 = vrot.slane %v1957, 2
        %v1959 = vrot.slane %v1935, 7
        %v1960 = vsel %vm513, %v1958, %v1959
        %v1961 = vrot.slane %v1938, 7
        %v1962 = vrot.slane %v1961, 2
        %v1963 = vrot.slane %v1942, 7
        %v1964 = vsel %vm513, %v1962, %v1963
        %v1965 = vrot.slane %v1945, 7
        %v1966 = vrot.slane %v1965, 2
        %v1967 = vrot.slane %v1949, 7
        %v1968 = vsel %vm513, %v1966, %v1967
        %v1969 = vrot.slane %v1952, 7
        %v1970 = vrot.slane %v1969, 2
        %v1971 = vrot.slane %v1956, 7
        %v1972 = vsel %vm513, %v1970, %v1971
        %1974 = vst [vmem:[#allocation1] ss:$2 sm:$0xff] %v1960
        %s1976 = scalar_lea.vmem [#allocation1], 1
        %1977 = vst [vmem:[%s1976] ss:$2 sm:$0xff] %v1964
        %s1979 = scalar_lea.vmem [#allocation1], 16
        %1980 = vst [vmem:[%s1979] ss:$2 sm:$0xff] %v1968
        %s1982 = scalar_lea.vmem [#allocation1], 17
        %1983 = vst [vmem:[%s1982] ss:$2 sm:$0xff] %v1972
        %v1984 = vld.sshfl [vmem:[#allocation1] sm:$0xff pattern:$0x75643120]
        %v1985 = vld.sshfl [vmem:[#allocation1 + $0x10] sm:$0xff pattern:$0x75643120]
        %1988 = vst [vmem:[#allocation3 + $0x8] sm:$0xf] %v1984
        %1989 = vst [vmem:[#allocation3 + $0x2c] sm:$0xf] %v1985
        %v1990 = vld [vmem:[%s318] sm:$0x3]
        %v1991 = vld [vmem:[%s318 + $0x4] sm:$0x3]
        %v1992 = vld [vmem:[%s318 + $0x8] sm:$0x3]
        %v1993 = vld [vmem:[%s318 + $0xc] sm:$0x3]
        %1995 = vst [vmem:[#allocation1] ss:$2 sm:$0xff] %v1990
        %s1997 = scalar_lea.vmem [#allocation1], 1
        %1998 = vst [vmem:[%s1997] ss:$2 sm:$0xff] %v1991
        %s2000 = scalar_lea.vmem [#allocation1], 16
        %2001 = vst [vmem:[%s2000] ss:$2 sm:$0xff] %v1992
        %s2003 = scalar_lea.vmem [#allocation1], 17
        %2004 = vst [vmem:[%s2003] ss:$2 sm:$0xff] %v1993
        %v2005 = vld.sshfl [vmem:[#allocation1] sm:$0xff pattern:$0x75643120]
        %v2006 = vld.sshfl [vmem:[#allocation1 + $0x10] sm:$0xff pattern:$0x75643120]
        %2009 = vst [vmem:[#allocation3 + $0xc] sm:$0xf] %v2005
        %2010 = vst [vmem:[#allocation3 + $0x30] sm:$0xf] %v2006
        %v2011 = vld [vmem:[%s318] sm:$0x7]
        %v2012 = vld [vmem:[%s318 + $0x4] sm:$0x7]
        %v2013 = vld [vmem:[%s318 + $0x8] sm:$0x7]
        %v2014 = vld [vmem:[%s318 + $0xc] sm:$0x7]
        %v2019 = vrot.slane %v2011, 2
        %v2020 = vrot.slane %v2012, 2
        %v2021 = vrot.slane %v2013, 2
        %v2022 = vrot.slane %v2014, 2
        %v2025 = vsel %vm367, %v2011, %v2019
        %v2026 = vsel %vm371, %v2011, %v2019
        %v2028 = vrot.slane %v2026, 2
        %v2031 = vsel %vm367, %v2012, %v2020
        %v2032 = vsel %vm371, %v2012, %v2020
        %v2034 = vrot.slane %v2032, 2
        %v2037 = vsel %vm367, %v2013, %v2021
        %v2038 = vsel %vm371, %v2013, %v2021
        %v2040 = vrot.slane %v2038, 2
        %v2043 = vsel %vm367, %v2014, %v2022
        %v2044 = vsel %vm371, %v2014, %v2022
        %v2046 = vrot.slane %v2044, 2
        %v2047 = vshrl.u32 %v2025, 16
        %v2049 = vrot.slane %v2047, 6
        %v2050 = vshll.u32 %v2025, 16
        %v2052 = vrot.slane %v2050, 7
        %v2053 = vor.u32 %v2049, %v2052
        %v2054 = vrot.slane %v2053, 2
        %v2056 = vshll.u32 %v2028, 16
        %v2058 = vrot.slane %v2056, 7
        %v2059 = vsel %vm399, %v2054, %v2058
        %v2060 = vshrl.u32 %v2031, 16
        %v2062 = vrot.slane %v2060, 6
        %v2063 = vshll.u32 %v2031, 16
        %v2065 = vrot.slane %v2063, 7
        %v2066 = vor.u32 %v2062, %v2065
        %v2067 = vrot.slane %v2066, 2
        %v2069 = vshll.u32 %v2034, 16
        %v2071 = vrot.slane %v2069, 7
        %v2072 = vsel %vm399, %v2067, %v2071
        %v2073 = vshrl.u32 %v2037, 16
        %v2075 = vrot.slane %v2073, 6
        %v2076 = vshll.u32 %v2037, 16
        %v2078 = vrot.slane %v2076, 7
        %v2079 = vor.u32 %v2075, %v2078
        %v2080 = vrot.slane %v2079, 2
        %v2082 = vshll.u32 %v2040, 16
        %v2084 = vrot.slane %v2082, 7
        %v2085 = vsel %vm399, %v2080, %v2084
        %v2086 = vshrl.u32 %v2043, 16
        %v2088 = vrot.slane %v2086, 6
        %v2089 = vshll.u32 %v2043, 16
        %v2091 = vrot.slane %v2089, 7
        %v2092 = vor.u32 %v2088, %v2091
        %v2093 = vrot.slane %v2092, 2
        %v2095 = vshll.u32 %v2046, 16
        %v2097 = vrot.slane %v2095, 7
        %v2098 = vsel %vm399, %v2093, %v2097
        %2100 = vst [vmem:[#allocation1] ss:$2 sm:$0xff] %v2059
        %s2102 = scalar_lea.vmem [#allocation1], 1
        %2103 = vst [vmem:[%s2102] ss:$2 sm:$0xff] %v2072
        %s2105 = scalar_lea.vmem [#allocation1], 16
        %2106 = vst [vmem:[%s2105] ss:$2 sm:$0xff] %v2085
        %s2108 = scalar_lea.vmem [#allocation1], 17
        %2109 = vst [vmem:[%s2108] ss:$2 sm:$0xff] %v2098
        %v2110 = vld.sshfl [vmem:[#allocation1] sm:$0xff pattern:$0x75643120]
        %v2111 = vld.sshfl [vmem:[#allocation1 + $0x10] sm:$0xff pattern:$0x75643120]
        %2114 = vst [vmem:[#allocation3 + $0x10] sm:$0xf] %v2110
        %2115 = vst [vmem:[#allocation3 + $0x34] sm:$0xf] %v2111
        %v2116 = vld [vmem:[%s318] sm:$0x6]
        %v2117 = vld [vmem:[%s318 + $0x4] sm:$0x6]
        %v2118 = vld [vmem:[%s318 + $0x8] sm:$0x6]
        %v2119 = vld [vmem:[%s318 + $0xc] sm:$0x6]
        %v2124 = vrot.slane %v2116, 2
        %v2125 = vrot.slane %v2117, 2
        %v2126 = vrot.slane %v2118, 2
        %v2127 = vrot.slane %v2119, 2
        %v2130 = vsel %vm367, %v2116, %v2124
        %v2132 = vsel %vm371, %v2116, %v2124
        %v2134 = vrot.slane %v2132, 2
        %v2137 = vsel %vm367, %v2117, %v2125
        %v2139 = vsel %vm371, %v2117, %v2125
        %v2141 = vrot.slane %v2139, 2
        %v2144 = vsel %vm367, %v2118, %v2126
        %v2146 = vsel %vm371, %v2118, %v2126
        %v2148 = vrot.slane %v2146, 2
        %v2151 = vsel %vm367, %v2119, %v2127
        %v2153 = vsel %vm371, %v2119, %v2127
        %v2155 = vrot.slane %v2153, 2
        %v2156 = vrot.slane %v2130, 7
        %v2157 = vrot.slane %v2156, 2
        %v2158 = vrot.slane %v2134, 7
        %v2159 = vsel %vm513, %v2157, %v2158
        %v2160 = vrot.slane %v2137, 7
        %v2161 = vrot.slane %v2160, 2
        %v2162 = vrot.slane %v2141, 7
        %v2163 = vsel %vm513, %v2161, %v2162
        %v2164 = vrot.slane %v2144, 7
        %v2165 = vrot.slane %v2164, 2
        %v2166 = vrot.slane %v2148, 7
        %v2167 = vsel %vm513, %v2165, %v2166
        %v2168 = vrot.slane %v2151, 7
        %v2169 = vrot.slane %v2168, 2
        %v2170 = vrot.slane %v2155, 7
        %v2171 = vsel %vm513, %v2169, %v2170
        %2173 = vst [vmem:[#allocation1] ss:$2 sm:$0xff] %v2159
        %s2175 = scalar_lea.vmem [#allocation1], 1
        %2176 = vst [vmem:[%s2175] ss:$2 sm:$0xff] %v2163
        %s2178 = scalar_lea.vmem [#allocation1], 16
        %2179 = vst [vmem:[%s2178] ss:$2 sm:$0xff] %v2167
        %s2181 = scalar_lea.vmem [#allocation1], 17
        %2182 = vst [vmem:[%s2181] ss:$2 sm:$0xff] %v2171
        %v2183 = vld.sshfl [vmem:[#allocation1] sm:$0xff pattern:$0x75643120]
        %v2184 = vld.sshfl [vmem:[#allocation1 + $0x10] sm:$0xff pattern:$0x75643120]
        %2187 = vst [vmem:[#allocation3 + $0x14] sm:$0xf] %v2183
        %2188 = vst [vmem:[#allocation3 + $0x38] sm:$0xf] %v2184
        %v2189 = vld [vmem:[%s746] sm:$0x3]
        %v2190 = vld [vmem:[%s746 + $0x4] sm:$0x3]
        %v2191 = vld [vmem:[%s746 + $0x8] sm:$0x3]
        %v2192 = vld [vmem:[%s746 + $0xc] sm:$0x3]
        %2194 = vst [vmem:[#allocation1] ss:$2 sm:$0xff] %v2189
        %s2196 = scalar_lea.vmem [#allocation1], 1
        %2197 = vst [vmem:[%s2196] ss:$2 sm:$0xff] %v2190
        %s2199 = scalar_lea.vmem [#allocation1], 16
        %2200 = vst [vmem:[%s2199] ss:$2 sm:$0xff] %v2191
        %s2202 = scalar_lea.vmem [#allocation1], 17
        %2203 = vst [vmem:[%s2202] ss:$2 sm:$0xff] %v2192
        %v2204 = vld.sshfl [vmem:[#allocation1] sm:$0xff pattern:$0x75643120]
        %v2205 = vld.sshfl [vmem:[#allocation1 + $0x10] sm:$0xff pattern:$0x75643120]
        %2208 = vst [vmem:[#allocation3 + $0x18] sm:$0xf] %v2204
        %2209 = vst [vmem:[#allocation3 + $0x3c] sm:$0xf] %v2205
        %v2210 = vld [vmem:[%s746] sm:$0x7]
        %v2211 = vld [vmem:[%s746 + $0x4] sm:$0x7]
        %v2212 = vld [vmem:[%s746 + $0x8] sm:$0x7]
        %v2213 = vld [vmem:[%s746 + $0xc] sm:$0x7]
        %v2218 = vrot.slane %v2210, 2
        %v2219 = vrot.slane %v2211, 2
        %v2220 = vrot.slane %v2212, 2
        %v2221 = vrot.slane %v2213, 2
        %v2224 = vsel %vm367, %v2210, %v2218
        %v2225 = vsel %vm371, %v2210, %v2218
        %v2227 = vrot.slane %v2225, 2
        %v2230 = vsel %vm367, %v2211, %v2219
        %v2231 = vsel %vm371, %v2211, %v2219
        %v2233 = vrot.slane %v2231, 2
        %v2236 = vsel %vm367, %v2212, %v2220
        %v2237 = vsel %vm371, %v2212, %v2220
        %v2239 = vrot.slane %v2237, 2
        %v2242 = vsel %vm367, %v2213, %v2221
        %v2243 = vsel %vm371, %v2213, %v2221
        %v2245 = vrot.slane %v2243, 2
        %v2246 = vshrl.u32 %v2224, 16
        %v2248 = vrot.slane %v2246, 6
        %v2249 = vshll.u32 %v2224, 16
        %v2251 = vrot.slane %v2249, 7
        %v2252 = vor.u32 %v2248, %v2251
        %v2253 = vrot.slane %v2252, 2
        %v2255 = vshll.u32 %v2227, 16
        %v2257 = vrot.slane %v2255, 7
        %v2258 = vsel %vm399, %v2253, %v2257
        %v2259 = vshrl.u32 %v2230, 16
        %v2261 = vrot.slane %v2259, 6
        %v2262 = vshll.u32 %v2230, 16
        %v2264 = vrot.slane %v2262, 7
        %v2265 = vor.u32 %v2261, %v2264
        %v2266 = vrot.slane %v2265, 2
        %v2268 = vshll.u32 %v2233, 16
        %v2270 = vrot.slane %v2268, 7
        %v2271 = vsel %vm399, %v2266, %v2270
        %v2272 = vshrl.u32 %v2236, 16
        %v2274 = vrot.slane %v2272, 6
        %v2275 = vshll.u32 %v2236, 16
        %v2277 = vrot.slane %v2275, 7
        %v2278 = vor.u32 %v2274, %v2277
        %v2279 = vrot.slane %v2278, 2
        %v2281 = vshll.u32 %v2239, 16
        %v2283 = vrot.slane %v2281, 7
        %v2284 = vsel %vm399, %v2279, %v2283
        %v2285 = vshrl.u32 %v2242, 16
        %v2287 = vrot.slane %v2285, 6
        %v2288 = vshll.u32 %v2242, 16
        %v2290 = vrot.slane %v2288, 7
        %v2291 = vor.u32 %v2287, %v2290
        %v2292 = vrot.slane %v2291, 2
        %v2294 = vshll.u32 %v2245, 16
        %v2296 = vrot.slane %v2294, 7
        %v2297 = vsel %vm399, %v2292, %v2296
        %2299 = vst [vmem:[#allocation1] ss:$2 sm:$0xff] %v2258
        %s2301 = scalar_lea.vmem [#allocation1], 1
        %2302 = vst [vmem:[%s2301] ss:$2 sm:$0xff] %v2271
        %s2304 = scalar_lea.vmem [#allocation1], 16
        %2305 = vst [vmem:[%s2304] ss:$2 sm:$0xff] %v2284
        %s2307 = scalar_lea.vmem [#allocation1], 17
        %2308 = vst [vmem:[%s2307] ss:$2 sm:$0xff] %v2297
        %v2309 = vld.sshfl [vmem:[#allocation1] sm:$0xff pattern:$0x75643120]
        %v2310 = vld.sshfl [vmem:[#allocation1 + $0x10] sm:$0xff pattern:$0x75643120]
        %2313 = vst [vmem:[#allocation3 + $0x1c] sm:$0xf] %v2309
        %2314 = vst [vmem:[#allocation3 + $0x40] sm:$0xf] %v2310
        %v2315 = vld [vmem:[%s746] sm:$0x6]
        %v2316 = vld [vmem:[%s746 + $0x4] sm:$0x6]
        %v2317 = vld [vmem:[%s746 + $0x8] sm:$0x6]
        %v2318 = vld [vmem:[%s746 + $0xc] sm:$0x6]
        %v2323 = vrot.slane %v2315, 2
        %v2324 = vrot.slane %v2316, 2
        %v2325 = vrot.slane %v2317, 2
        %v2326 = vrot.slane %v2318, 2
        %v2329 = vsel %vm367, %v2315, %v2323
        %v2331 = vsel %vm371, %v2315, %v2323
        %v2333 = vrot.slane %v2331, 2
        %v2336 = vsel %vm367, %v2316, %v2324
        %v2338 = vsel %vm371, %v2316, %v2324
        %v2340 = vrot.slane %v2338, 2
        %v2343 = vsel %vm367, %v2317, %v2325
        %v2345 = vsel %vm371, %v2317, %v2325
        %v2347 = vrot.slane %v2345, 2
        %v2350 = vsel %vm367, %v2318, %v2326
        %v2352 = vsel %vm371, %v2318, %v2326
        %v2354 = vrot.slane %v2352, 2
        %v2355 = vrot.slane %v2329, 7
        %v2356 = vrot.slane %v2355, 2
        %v2357 = vrot.slane %v2333, 7
        %v2358 = vsel %vm513, %v2356, %v2357
        %v2359 = vrot.slane %v2336, 7
        %v2360 = vrot.slane %v2359, 2
        %v2361 = vrot.slane %v2340, 7
        %v2362 = vsel %vm513, %v2360, %v2361
        %v2363 = vrot.slane %v2343, 7
        %v2364 = vrot.slane %v2363, 2
        %v2365 = vrot.slane %v2347, 7
        %v2366 = vsel %vm513, %v2364, %v2365
        %v2367 = vrot.slane %v2350, 7
        %v2368 = vrot.slane %v2367, 2
        %v2369 = vrot.slane %v2354, 7
        %v2370 = vsel %vm513, %v2368, %v2369
        %2372 = vst [vmem:[#allocation1] ss:$2 sm:$0xff] %v2358
        %s2374 = scalar_lea.vmem [#allocation1], 1
        %2375 = vst [vmem:[%s2374] ss:$2 sm:$0xff] %v2362
        %s2377 = scalar_lea.vmem [#allocation1], 16
        %2378 = vst [vmem:[%s2377] ss:$2 sm:$0xff] %v2366
        %s2380 = scalar_lea.vmem [#allocation1], 17
        %2381 = vst [vmem:[%s2380] ss:$2 sm:$0xff] %v2370
        %v2382 = vld.sshfl [vmem:[#allocation1] sm:$0xff pattern:$0x75643120]
        %v2383 = vld.sshfl [vmem:[#allocation1 + $0x10] sm:$0xff pattern:$0x75643120]
        %2386 = vst [vmem:[#allocation3 + $0x20] sm:$0xf] %v2382
        %2387 = vst [vmem:[#allocation3 + $0x44] sm:$0xf] %v2383
        %v2388 = vld [vmem:[#allocation3] sm:$0xff]
        %v2389 = vld [vmem:[#allocation3 + $0x8] sm:$0xff]
        %v2390 = vld [vmem:[#allocation3 + $0x10] sm:$0xff]
        %v2391 = vld [vmem:[#allocation3 + $0x18] sm:$0xff]
        %v2392 = vld [vmem:[#allocation3 + $0x20] sm:$0xf]
        %v2393 = vld [vmem:[#allocation3 + $0x24] sm:$0xff]
        %v2394 = vld [vmem:[#allocation3 + $0x2c] sm:$0xff]
        %v2395 = vld [vmem:[#allocation3 + $0x34] sm:$0xff]
        %v2396 = vld [vmem:[#allocation3 + $0x3c] sm:$0xff]
        %v2397 = vld [vmem:[#allocation3 + $0x44] sm:$0xf]
        %v2398 = vld [vmem:[%s3] sm:$0xf]
        %v2399 = vld [vmem:[%s3 + $0x4] sm:$0xf]
        %v2400 = vld [vmem:[%s3 + $0x8] sm:$0xf]
        %v2401 = vld [vmem:[%s3 + $0xc] sm:$0xf]
        %v2402 = vld [vmem:[%s3 + $0x10] sm:$0xf]
        %v2403 = vld [vmem:[%s3 + $0x14] sm:$0xf]
        %v2404 = vld [vmem:[%s3 + $0x18] sm:$0xf]
        %v2405 = vld [vmem:[%s3 + $0x1c] sm:$0xf]
        %v2406 = vld [vmem:[%s3 + $0x20] sm:$0xf]
        %v2407 = vld [vmem:[%s3 + $0x24] sm:$0xf]
        %v2408 = vld [vmem:[%s3 + $0x28] sm:$0xf]
        %v2409 = vld [vmem:[%s3 + $0x2c] sm:$0xf]
        %v2410 = vld [vmem:[%s3 + $0x30] sm:$0xf]
        %v2411 = vld [vmem:[%s3 + $0x34] sm:$0xf]
        %v2412 = vld [vmem:[%s3 + $0x38] sm:$0xf]
        %v2413 = vld [vmem:[%s3 + $0x3c] sm:$0xf]
        %v2414 = vld [vmem:[%s3 + $0x40] sm:$0xf]
        %v2415 = vld [vmem:[%s3 + $0x44] sm:$0xf]
        %v2416 = vld [vmem:[%s3 + $0x48] sm:$0xf]
        %v2417 = vld [vmem:[%s3 + $0x4c] sm:$0xf]
        %v2418 = vld [vmem:[%s3 + $0x50] sm:$0xf]
        %v2419 = vld [vmem:[%s3 + $0x54] sm:$0xf]
        %v2420 = vld [vmem:[%s3 + $0x58] sm:$0xf]
        %v2421 = vld [vmem:[%s3 + $0x5c] sm:$0xf]
        %v2422 = vld [vmem:[%s3 + $0x60] sm:$0xf]
        %v2423 = vld [vmem:[%s3 + $0x64] sm:$0xf]
        %v2424 = vld [vmem:[%s3 + $0x68] sm:$0xf]
        %v2425 = vld [vmem:[%s3 + $0x6c] sm:$0xf]
        %v2426 = vld [vmem:[%s3 + $0x70] sm:$0xf]
        %v2427 = vld [vmem:[%s3 + $0x74] sm:$0xf]
        %v2428 = vld [vmem:[%s3 + $0x78] sm:$0xf]
        %v2429 = vld [vmem:[%s3 + $0x7c] sm:$0xf]
        %v2430 = vld [vmem:[%s3 + $0x80] sm:$0xf]
        %v2431 = vld [vmem:[%s3 + $0x84] sm:$0xf]
        %v2432 = vld [vmem:[%s3 + $0x88] sm:$0xf]
        %v2433 = vld [vmem:[%s3 + $0x8c] sm:$0xf]
        %v2434 = vld [vmem:[%s3 + $0x90] sm:$0xf]
        %v2435 = vld [vmem:[%s3 + $0x94] sm:$0xf]
        %v2436 = vld [vmem:[%s3 + $0x98] sm:$0xf]
        %v2437 = vld [vmem:[%s3 + $0x9c] sm:$0xf]
        %v2438 = vld [vmem:[%s3 + $0xa0] sm:$0xf]
        %v2439 = vld [vmem:[%s3 + $0xa4] sm:$0xf]
        %v2440 = vld [vmem:[%s3 + $0xa8] sm:$0xf]
        %v2441 = vld [vmem:[%s3 + $0xac] sm:$0xf]
        %v2442 = vld [vmem:[%s3 + $0xb0] sm:$0xf]
        %v2443 = vld [vmem:[%s3 + $0xb4] sm:$0xf]
        %v2444 = vld [vmem:[%s3 + $0xb8] sm:$0xf]
        %v2445 = vld [vmem:[%s3 + $0xbc] sm:$0xf]
        %v2446 = vld [vmem:[%s3 + $0xc0] sm:$0xf]
        %v2447 = vld [vmem:[%s3 + $0xc4] sm:$0xf]
        %v2448 = vld [vmem:[%s3 + $0xc8] sm:$0xf]
        %v2449 = vld [vmem:[%s3 + $0xcc] sm:$0xf]
        %v2450 = vld [vmem:[%s3 + $0xd0] sm:$0xf]
        %v2451 = vld [vmem:[%s3 + $0xd4] sm:$0xf]
        %v2452 = vld [vmem:[%s3 + $0xd8] sm:$0xf]
        %v2453 = vld [vmem:[%s3 + $0xdc] sm:$0xf]
        %v2454 = vld [vmem:[%s3 + $0xe0] sm:$0xf]
        %v2455 = vld [vmem:[%s3 + $0xe4] sm:$0xf]
        %v2456 = vld [vmem:[%s3 + $0xe8] sm:$0xf]
        %v2457 = vld [vmem:[%s3 + $0xec] sm:$0xf]
        %v2458 = vld [vmem:[%s3 + $0xf0] sm:$0xf]
        %v2459 = vld [vmem:[%s3 + $0xf4] sm:$0xf]
        %v2460 = vld [vmem:[%s3 + $0xf8] sm:$0xf]
        %v2461 = vld [vmem:[%s3 + $0xfc] sm:$0xf]
        %v2462 = vld [vmem:[%s3 + $0x100] sm:$0xf]
        %v2463 = vld [vmem:[%s3 + $0x104] sm:$0xf]
        %v2464 = vld [vmem:[%s3 + $0x108] sm:$0xf]
        %v2465 = vld [vmem:[%s3 + $0x10c] sm:$0xf]
        %v2466 = vld [vmem:[%s3 + $0x110] sm:$0xf]
        %v2467 = vld [vmem:[%s3 + $0x114] sm:$0xf]
        %v2468 = vld [vmem:[%s3 + $0x118] sm:$0xf]
        %v2469 = vld [vmem:[%s3 + $0x11c] sm:$0xf]
        %v2470 = vld [vmem:[%s3 + $0x120] sm:$0xf]
        %v2471 = vld [vmem:[%s3 + $0x124] sm:$0xf]
        %v2472 = vld [vmem:[%s3 + $0x128] sm:$0xf]
        %v2473 = vld [vmem:[%s3 + $0x12c] sm:$0xf]
        %v2474 = vld [vmem:[%s3 + $0x130] sm:$0xf]
        %v2475 = vld [vmem:[%s3 + $0x134] sm:$0xf]
        %v2476 = vld [vmem:[%s3 + $0x138] sm:$0xf]
        %v2477 = vld [vmem:[%s3 + $0x13c] sm:$0xf]
        %v2478 = vld [vmem:[%s3 + $0x140] sm:$0xf]
        %v2479 = vld [vmem:[%s3 + $0x144] sm:$0xf]
        %v2480 = vld [vmem:[%s3 + $0x148] sm:$0xf]
        %v2481 = vld [vmem:[%s3 + $0x14c] sm:$0xf]
        %v2482 = vld [vmem:[%s3 + $0x150] sm:$0xf]
        %v2483 = vld [vmem:[%s3 + $0x154] sm:$0xf]
        %v2484 = vld [vmem:[%s3 + $0x158] sm:$0xf]
        %v2485 = vld [vmem:[%s3 + $0x15c] sm:$0xf]
        %v2486 = vld [vmem:[%s3 + $0x160] sm:$0xf]
        %v2487 = vld [vmem:[%s3 + $0x164] sm:$0xf]
        %v2488 = vld [vmem:[%s3 + $0x168] sm:$0xf]
        %v2489 = vld [vmem:[%s3 + $0x16c] sm:$0xf]
        %v2490 = vld [vmem:[%s3 + $0x170] sm:$0xf]
        %v2491 = vld [vmem:[%s3 + $0x174] sm:$0xf]
        %v2492 = vld [vmem:[%s3 + $0x178] sm:$0xf]
        %v2493 = vld [vmem:[%s3 + $0x17c] sm:$0xf]
        %v2494 = vld [vmem:[%s3 + $0x180] sm:$0xf]
        %v2495 = vld [vmem:[%s3 + $0x184] sm:$0xf]
        %v2496 = vld [vmem:[%s3 + $0x188] sm:$0xf]
        %v2497 = vld [vmem:[%s3 + $0x18c] sm:$0xf]
        %v2498 = vld [vmem:[%s3 + $0x190] sm:$0xf]
        %v2499 = vld [vmem:[%s3 + $0x194] sm:$0xf]
        %v2500 = vld [vmem:[%s3 + $0x198] sm:$0xf]
        %v2501 = vld [vmem:[%s3 + $0x19c] sm:$0xf]
        %v2502 = vld [vmem:[%s3 + $0x1a0] sm:$0xf]
        %v2503 = vld [vmem:[%s3 + $0x1a4] sm:$0xf]
        %v2504 = vld [vmem:[%s3 + $0x1a8] sm:$0xf]
        %v2505 = vld [vmem:[%s3 + $0x1ac] sm:$0xf]
        %v2506 = vld [vmem:[%s3 + $0x1b0] sm:$0xf]
        %v2507 = vld [vmem:[%s3 + $0x1b4] sm:$0xf]
        %v2508 = vld [vmem:[%s3 + $0x1b8] sm:$0xf]
        %v2509 = vld [vmem:[%s3 + $0x1bc] sm:$0xf]
        %v2510 = vld [vmem:[%s3 + $0x1c0] sm:$0xf]
        %v2511 = vld [vmem:[%s3 + $0x1c4] sm:$0xf]
        %v2512 = vld [vmem:[%s3 + $0x1c8] sm:$0xf]
        %v2513 = vld [vmem:[%s3 + $0x1cc] sm:$0xf]
        %v2514 = vld [vmem:[%s3 + $0x1d0] sm:$0xf]
        %v2515 = vld [vmem:[%s3 + $0x1d4] sm:$0xf]
        %v2516 = vld [vmem:[%s3 + $0x1d8] sm:$0xf]
        %v2517 = vld [vmem:[%s3 + $0x1dc] sm:$0xf]
        %v2518 = vld [vmem:[%s3 + $0x1e0] sm:$0xf]
        %v2519 = vld [vmem:[%s3 + $0x1e4] sm:$0xf]
        %v2520 = vld [vmem:[%s3 + $0x1e8] sm:$0xf]
        %v2521 = vld [vmem:[%s3 + $0x1ec] sm:$0xf]
        %v2522 = vld [vmem:[%s3 + $0x1f0] sm:$0xf]
        %v2523 = vld [vmem:[%s3 + $0x1f4] sm:$0xf]
        %v2524 = vld [vmem:[%s3 + $0x1f8] sm:$0xf]
        %v2525 = vld [vmem:[%s3 + $0x1fc] sm:$0xf]
        %v2526 = vld [vmem:[%s3 + $0x200] sm:$0xf]
        %v2527 = vld [vmem:[%s3 + $0x204] sm:$0xf]
        %v2528 = vld [vmem:[%s3 + $0x208] sm:$0xf]
        %v2529 = vld [vmem:[%s3 + $0x20c] sm:$0xf]
        %v2530 = vld [vmem:[%s3 + $0x210] sm:$0xf]
        %v2531 = vld [vmem:[%s3 + $0x214] sm:$0xf]
        %v2532 = vld [vmem:[%s3 + $0x218] sm:$0xf]
        %v2533 = vld [vmem:[%s3 + $0x21c] sm:$0xf]
        %v2534 = vld [vmem:[%s3 + $0x220] sm:$0xf]
        %v2535 = vld [vmem:[%s3 + $0x224] sm:$0xf]
        %v2536 = vld [vmem:[%s3 + $0x228] sm:$0xf]
        %v2537 = vld [vmem:[%s3 + $0x22c] sm:$0xf]
        %v2538 = vld [vmem:[%s3 + $0x230] sm:$0xf]
        %v2539 = vld [vmem:[%s3 + $0x234] sm:$0xf]
        %v2540 = vld [vmem:[%s3 + $0x238] sm:$0xf]
        %v2541 = vld [vmem:[%s3 + $0x23c] sm:$0xf]
        %v2552 = vunpack.c.l.b16 %v2388
        %v2553 = vunpack.c.h.b16 %v2388
        %v2554 = vunpack.c.l.b16 %v2389
        %v2555 = vunpack.c.h.b16 %v2389
        %v2556 = vunpack.c.l.b16 %v2390
        %v2557 = vunpack.c.h.b16 %v2390
        %v2558 = vunpack.c.l.b16 %v2391
        %v2559 = vunpack.c.h.b16 %v2391
        %v2560 = vunpack.c.l.b16 %v2392
        %v2561 = vunpack.c.l.b16 %v2393
        %v2562 = vunpack.c.h.b16 %v2393
        %v2563 = vunpack.c.l.b16 %v2394
        %v2564 = vunpack.c.h.b16 %v2394
        %v2565 = vunpack.c.l.b16 %v2395
        %v2566 = vunpack.c.h.b16 %v2395
        %v2567 = vunpack.c.l.b16 %v2396
        %v2568 = vunpack.c.h.b16 %v2396
        %v2569 = vunpack.c.l.b16 %v2397
        %v2570 = vpack.c.b16 %v2561, %v2552
        %v2571 = vpack.c.b16 %v2562, %v2553
        %v2572 = vpack.c.b16 %v2563, %v2554
        %v2573 = vpack.c.b16 %v2564, %v2555
        %v2574 = vpack.c.b16 %v2565, %v2556
        %v2575 = vpack.c.b16 %v2566, %v2557
        %v2576 = vpack.c.b16 %v2567, %v2558
        %v2577 = vpack.c.b16 %v2568, %v2559
        %v2578 = vpack.c.b16 %v2569, %v2560
        %v2732 = vunpack.c.l.b16 %v2398
        %v2733 = vunpack.c.l.b16 %v2399
        %v2734 = vunpack.c.l.b16 %v2400
        %v2735 = vunpack.c.l.b16 %v2401
        %v2736 = vunpack.c.l.b16 %v2402
        %v2737 = vunpack.c.l.b16 %v2403
        %v2738 = vunpack.c.l.b16 %v2404
        %v2739 = vunpack.c.l.b16 %v2405
        %v2740 = vunpack.c.l.b16 %v2406
        %v2741 = vunpack.c.l.b16 %v2407
        %v2742 = vunpack.c.l.b16 %v2408
        %v2743 = vunpack.c.l.b16 %v2409
        %v2744 = vunpack.c.l.b16 %v2410
        %v2745 = vunpack.c.l.b16 %v2411
        %v2746 = vunpack.c.l.b16 %v2412
        %v2747 = vunpack.c.l.b16 %v2413
        %v2748 = vunpack.c.l.b16 %v2414
        %v2749 = vunpack.c.l.b16 %v2415
        %v2750 = vunpack.c.l.b16 %v2416
        %v2751 = vunpack.c.l.b16 %v2417
        %v2752 = vunpack.c.l.b16 %v2418
        %v2753 = vunpack.c.l.b16 %v2419
        %v2754 = vunpack.c.l.b16 %v2420
        %v2755 = vunpack.c.l.b16 %v2421
        %v2756 = vunpack.c.l.b16 %v2422
        %v2757 = vunpack.c.l.b16 %v2423
        %v2758 = vunpack.c.l.b16 %v2424
        %v2759 = vunpack.c.l.b16 %v2425
        %v2760 = vunpack.c.l.b16 %v2426
        %v2761 = vunpack.c.l.b16 %v2427
        %v2762 = vunpack.c.l.b16 %v2428
        %v2763 = vunpack.c.l.b16 %v2429
        %v2764 = vunpack.c.l.b16 %v2430
        %v2765 = vunpack.c.l.b16 %v2431
        %v2766 = vunpack.c.l.b16 %v2432
        %v2767 = vunpack.c.l.b16 %v2433
        %v2768 = vunpack.c.l.b16 %v2434
        %v2769 = vunpack.c.l.b16 %v2435
        %v2770 = vunpack.c.l.b16 %v2436
        %v2771 = vunpack.c.l.b16 %v2437
        %v2772 = vunpack.c.l.b16 %v2438
        %v2773 = vunpack.c.l.b16 %v2439
        %v2774 = vunpack.c.l.b16 %v2440
        %v2775 = vunpack.c.l.b16 %v2441
        %v2776 = vunpack.c.l.b16 %v2442
        %v2777 = vunpack.c.l.b16 %v2443
        %v2778 = vunpack.c.l.b16 %v2444
        %v2779 = vunpack.c.l.b16 %v2445
        %v2780 = vunpack.c.l.b16 %v2446
        %v2781 = vunpack.c.l.b16 %v2447
        %v2782 = vunpack.c.l.b16 %v2448
        %v2783 = vunpack.c.l.b16 %v2449
        %v2784 = vunpack.c.l.b16 %v2450
        %v2785 = vunpack.c.l.b16 %v2451
        %v2786 = vunpack.c.l.b16 %v2452
        %v2787 = vunpack.c.l.b16 %v2453
        %v2788 = vunpack.c.l.b16 %v2454
        %v2789 = vunpack.c.l.b16 %v2455
        %v2790 = vunpack.c.l.b16 %v2456
        %v2791 = vunpack.c.l.b16 %v2457
        %v2792 = vunpack.c.l.b16 %v2458
        %v2793 = vunpack.c.l.b16 %v2459
        %v2794 = vunpack.c.l.b16 %v2460
        %v2795 = vunpack.c.l.b16 %v2461
        %v2796 = vunpack.c.l.b16 %v2462
        %v2797 = vunpack.c.l.b16 %v2463
        %v2798 = vunpack.c.l.b16 %v2464
        %v2799 = vunpack.c.l.b16 %v2465
        %v2800 = vunpack.c.l.b16 %v2466
        %v2801 = vunpack.c.l.b16 %v2467
        %v2802 = vunpack.c.l.b16 %v2468
        %v2803 = vunpack.c.l.b16 %v2469
        %v2804 = vunpack.c.l.b16 %v2470
        %v2805 = vunpack.c.l.b16 %v2471
        %v2806 = vunpack.c.l.b16 %v2472
        %v2807 = vunpack.c.l.b16 %v2473
        %v2808 = vunpack.c.l.b16 %v2474
        %v2809 = vunpack.c.l.b16 %v2475
        %v2810 = vunpack.c.l.b16 %v2476
        %v2811 = vunpack.c.l.b16 %v2477
        %v2812 = vunpack.c.l.b16 %v2478
        %v2813 = vunpack.c.l.b16 %v2479
        %v2814 = vunpack.c.l.b16 %v2480
        %v2815 = vunpack.c.l.b16 %v2481
        %v2816 = vunpack.c.l.b16 %v2482
        %v2817 = vunpack.c.l.b16 %v2483
        %v2818 = vunpack.c.l.b16 %v2484
        %v2819 = vunpack.c.l.b16 %v2485
        %v2820 = vunpack.c.l.b16 %v2486
        %v2821 = vunpack.c.l.b16 %v2487
        %v2822 = vunpack.c.l.b16 %v2488
        %v2823 = vunpack.c.l.b16 %v2489
        %v2824 = vunpack.c.l.b16 %v2490
        %v2825 = vunpack.c.l.b16 %v2491
        %v2826 = vunpack.c.l.b16 %v2492
        %v2827 = vunpack.c.l.b16 %v2493
        %v2828 = vunpack.c.l.b16 %v2494
        %v2829 = vunpack.c.l.b16 %v2495
        %v2830 = vunpack.c.l.b16 %v2496
        %v2831 = vunpack.c.l.b16 %v2497
        %v2832 = vunpack.c.l.b16 %v2498
        %v2833 = vunpack.c.l.b16 %v2499
        %v2834 = vunpack.c.l.b16 %v2500
        %v2835 = vunpack.c.l.b16 %v2501
        %v2836 = vunpack.c.l.b16 %v2502
        %v2837 = vunpack.c.l.b16 %v2503
        %v2838 = vunpack.c.l.b16 %v2504
        %v2839 = vunpack.c.l.b16 %v2505
        %v2840 = vunpack.c.l.b16 %v2506
        %v2841 = vunpack.c.l.b16 %v2507
        %v2842 = vunpack.c.l.b16 %v2508
        %v2843 = vunpack.c.l.b16 %v2509
        %v2844 = vunpack.c.l.b16 %v2510
        %v2845 = vunpack.c.l.b16 %v2511
        %v2846 = vunpack.c.l.b16 %v2512
        %v2847 = vunpack.c.l.b16 %v2513
        %v2848 = vunpack.c.l.b16 %v2514
        %v2849 = vunpack.c.l.b16 %v2515
        %v2850 = vunpack.c.l.b16 %v2516
        %v2851 = vunpack.c.l.b16 %v2517
        %v2852 = vunpack.c.l.b16 %v2518
        %v2853 = vunpack.c.l.b16 %v2519
        %v2854 = vunpack.c.l.b16 %v2520
        %v2855 = vunpack.c.l.b16 %v2521
        %v2856 = vunpack.c.l.b16 %v2522
        %v2857 = vunpack.c.l.b16 %v2523
        %v2858 = vunpack.c.l.b16 %v2524
        %v2859 = vunpack.c.l.b16 %v2525
        %v2860 = vunpack.c.l.b16 %v2526
        %v2861 = vunpack.c.l.b16 %v2527
        %v2862 = vunpack.c.l.b16 %v2528
        %v2863 = vunpack.c.l.b16 %v2529
        %v2864 = vunpack.c.l.b16 %v2530
        %v2865 = vunpack.c.l.b16 %v2531
        %v2866 = vunpack.c.l.b16 %v2532
        %v2867 = vunpack.c.l.b16 %v2533
        %v2868 = vunpack.c.l.b16 %v2534
        %v2869 = vunpack.c.l.b16 %v2535
        %v2870 = vunpack.c.l.b16 %v2536
        %v2871 = vunpack.c.l.b16 %v2537
        %v2872 = vunpack.c.l.b16 %v2538
        %v2873 = vunpack.c.l.b16 %v2539
        %v2874 = vunpack.c.l.b16 %v2540
        %v2875 = vunpack.c.l.b16 %v2541
        %v2876 = vpack.c.b16 %v2733, %v2732
        %v2877 = vpack.c.b16 %v2735, %v2734
        %v2878 = vpack.c.b16 %v2737, %v2736
        %v2879 = vpack.c.b16 %v2739, %v2738
        %v2880 = vpack.c.b16 %v2741, %v2740
        %v2881 = vpack.c.b16 %v2743, %v2742
        %v2882 = vpack.c.b16 %v2745, %v2744
        %v2883 = vpack.c.b16 %v2747, %v2746
        %v2884 = vpack.c.b16 %v2749, %v2748
        %v2885 = vpack.c.b16 %v2751, %v2750
        %v2886 = vpack.c.b16 %v2753, %v2752
        %v2887 = vpack.c.b16 %v2755, %v2754
        %v2888 = vpack.c.b16 %v2757, %v2756
        %v2889 = vpack.c.b16 %v2759, %v2758
        %v2890 = vpack.c.b16 %v2761, %v2760
        %v2891 = vpack.c.b16 %v2763, %v2762
        %v2892 = vpack.c.b16 %v2765, %v2764
        %v2893 = vpack.c.b16 %v2767, %v2766
        %v2894 = vpack.c.b16 %v2769, %v2768
        %v2895 = vpack.c.b16 %v2771, %v2770
        %v2896 = vpack.c.b16 %v2773, %v2772
        %v2897 = vpack.c.b16 %v2775, %v2774
        %v2898 = vpack.c.b16 %v2777, %v2776
        %v2899 = vpack.c.b16 %v2779, %v2778
        %v2900 = vpack.c.b16 %v2781, %v2780
        %v2901 = vpack.c.b16 %v2783, %v2782
        %v2902 = vpack.c.b16 %v2785, %v2784
        %v2903 = vpack.c.b16 %v2787, %v2786
        %v2904 = vpack.c.b16 %v2789, %v2788
        %v2905 = vpack.c.b16 %v2791, %v2790
        %v2906 = vpack.c.b16 %v2793, %v2792
        %v2907 = vpack.c.b16 %v2795, %v2794
        %v2908 = vpack.c.b16 %v2797, %v2796
        %v2909 = vpack.c.b16 %v2799, %v2798
        %v2910 = vpack.c.b16 %v2801, %v2800
        %v2911 = vpack.c.b16 %v2803, %v2802
        %v2912 = vpack.c.b16 %v2805, %v2804
        %v2913 = vpack.c.b16 %v2807, %v2806
        %v2914 = vpack.c.b16 %v2809, %v2808
        %v2915 = vpack.c.b16 %v2811, %v2810
        %v2916 = vpack.c.b16 %v2813, %v2812
        %v2917 = vpack.c.b16 %v2815, %v2814
        %v2918 = vpack.c.b16 %v2817, %v2816
        %v2919 = vpack.c.b16 %v2819, %v2818
        %v2920 = vpack.c.b16 %v2821, %v2820
        %v2921 = vpack.c.b16 %v2823, %v2822
        %v2922 = vpack.c.b16 %v2825, %v2824
        %v2923 = vpack.c.b16 %v2827, %v2826
        %v2924 = vpack.c.b16 %v2829, %v2828
        %v2925 = vpack.c.b16 %v2831, %v2830
        %v2926 = vpack.c.b16 %v2833, %v2832
        %v2927 = vpack.c.b16 %v2835, %v2834
        %v2928 = vpack.c.b16 %v2837, %v2836
        %v2929 = vpack.c.b16 %v2839, %v2838
        %v2930 = vpack.c.b16 %v2841, %v2840
        %v2931 = vpack.c.b16 %v2843, %v2842
        %v2932 = vpack.c.b16 %v2845, %v2844
        %v2933 = vpack.c.b16 %v2847, %v2846
        %v2934 = vpack.c.b16 %v2849, %v2848
        %v2935 = vpack.c.b16 %v2851, %v2850
        %v2936 = vpack.c.b16 %v2853, %v2852
        %v2937 = vpack.c.b16 %v2855, %v2854
        %v2938 = vpack.c.b16 %v2857, %v2856
        %v2939 = vpack.c.b16 %v2859, %v2858
        %v2940 = vpack.c.b16 %v2861, %v2860
        %v2941 = vpack.c.b16 %v2863, %v2862
        %v2942 = vpack.c.b16 %v2865, %v2864
        %v2943 = vpack.c.b16 %v2867, %v2866
        %v2944 = vpack.c.b16 %v2869, %v2868
        %v2945 = vpack.c.b16 %v2871, %v2870
        %v2946 = vpack.c.b16 %v2873, %v2872
        %v2947 = vpack.c.b16 %v2875, %v2874
        %3020 = vmatpush.bf16.msra.mxu0 %v2883
        %3021 = vmatpush.bf16.msra.mxu0 %v2882
        %3022 = vmatpush.bf16.msra.mxu0 %v2881
        %3023 = vmatpush.bf16.msra.mxu0 %v2880
        %3024 = vmatpush.bf16.msra.mxu0 %v2879
        %3025 = vmatpush.bf16.msra.mxu0 %v2878
        %3026 = vmatpush.bf16.msra.mxu0 %v2877
        %3027 = vmatpush.bf16.msra.mxu0 %v2876
        %3028 = vmatmul.bf16.gmra.mxu0 %v2570
        %v3029 = vpop.f32.mrf.mxu0
        %v3030 = vadd.f32 0.0, %v3029
        %v3031 = vpop.f32.mrf.mxu0
        %v3032 = vadd.f32 0.0, %v3031
        %3033 = vdwg.mxu0
        %3034 = vmatpush.bf16.msra.mxu0 %v2891
        %3035 = vmatpush.bf16.msra.mxu0 %v2890
        %3036 = vmatpush.bf16.msra.mxu0 %v2889
        %3037 = vmatpush.bf16.msra.mxu0 %v2888
        %3038 = vmatpush.bf16.msra.mxu0 %v2887
        %3039 = vmatpush.bf16.msra.mxu0 %v2886
        %3040 = vmatpush.bf16.msra.mxu0 %v2885
        %3041 = vmatpush.bf16.msra.mxu0 %v2884
        %3042 = vmatmul.bf16.gmra.mxu0 %v2571
        %v3043 = vpop.f32.mrf.mxu0
        %v3044 = vadd.f32 %v3030, %v3043
        %v3045 = vpop.f32.mrf.mxu0
        %v3046 = vadd.f32 %v3032, %v3045
        %3047 = vdwg.mxu0
        %3048 = vmatpush.bf16.msra.mxu0 %v2899
        %3049 = vmatpush.bf16.msra.mxu0 %v2898
        %3050 = vmatpush.bf16.msra.mxu0 %v2897
        %3051 = vmatpush.bf16.msra.mxu0 %v2896
        %3052 = vmatpush.bf16.msra.mxu0 %v2895
        %3053 = vmatpush.bf16.msra.mxu0 %v2894
        %3054 = vmatpush.bf16.msra.mxu0 %v2893
        %3055 = vmatpush.bf16.msra.mxu0 %v2892
        %3056 = vmatmul.bf16.gmra.mxu0 %v2572
        %v3057 = vpop.f32.mrf.mxu0
        %v3058 = vadd.f32 %v3044, %v3057
        %v3059 = vpop.f32.mrf.mxu0
        %v3060 = vadd.f32 %v3046, %v3059
        %3061 = vdwg.mxu0
        %3062 = vmatpush.bf16.msra.mxu0 %v2907
        %3063 = vmatpush.bf16.msra.mxu0 %v2906
        %3064 = vmatpush.bf16.msra.mxu0 %v2905
        %3065 = vmatpush.bf16.msra.mxu0 %v2904
        %3066 = vmatpush.bf16.msra.mxu0 %v2903
        %3067 = vmatpush.bf16.msra.mxu0 %v2902
        %3068 = vmatpush.bf16.msra.mxu0 %v2901
        %3069 = vmatpush.bf16.msra.mxu0 %v2900
        %3070 = vmatmul.bf16.gmra.mxu0 %v2573
        %v3071 = vpop.f32.mrf.mxu0
        %v3072 = vadd.f32 %v3058, %v3071
        %v3073 = vpop.f32.mrf.mxu0
        %v3074 = vadd.f32 %v3060, %v3073
        %3075 = vdwg.mxu0
        %3076 = vmatpush.bf16.msra.mxu0 %v2915
        %3077 = vmatpush.bf16.msra.mxu0 %v2914
        %3078 = vmatpush.bf16.msra.mxu0 %v2913
        %3079 = vmatpush.bf16.msra.mxu0 %v2912
        %3080 = vmatpush.bf16.msra.mxu0 %v2911
        %3081 = vmatpush.bf16.msra.mxu0 %v2910
        %3082 = vmatpush.bf16.msra.mxu0 %v2909
        %3083 = vmatpush.bf16.msra.mxu0 %v2908
        %3084 = vmatmul.bf16.gmra.mxu0 %v2574
        %v3085 = vpop.f32.mrf.mxu0
        %v3086 = vadd.f32 %v3072, %v3085
        %v3087 = vpop.f32.mrf.mxu0
        %v3088 = vadd.f32 %v3074, %v3087
        %3089 = vdwg.mxu0
        %3090 = vmatpush.bf16.msra.mxu0 %v2923
        %3091 = vmatpush.bf16.msra.mxu0 %v2922
        %3092 = vmatpush.bf16.msra.mxu0 %v2921
        %3093 = vmatpush.bf16.msra.mxu0 %v2920
        %3094 = vmatpush.bf16.msra.mxu0 %v2919
        %3095 = vmatpush.bf16.msra.mxu0 %v2918
        %3096 = vmatpush.bf16.msra.mxu0 %v2917
        %3097 = vmatpush.bf16.msra.mxu0 %v2916
        %3098 = vmatmul.bf16.gmra.mxu0 %v2575
        %v3099 = vpop.f32.mrf.mxu0
        %v3100 = vadd.f32 %v3086, %v3099
        %v3101 = vpop.f32.mrf.mxu0
        %v3102 = vadd.f32 %v3088, %v3101
        %3103 = vdwg.mxu0
        %3104 = vmatpush.bf16.msra.mxu0 %v2931
        %3105 = vmatpush.bf16.msra.mxu0 %v2930
        %3106 = vmatpush.bf16.msra.mxu0 %v2929
        %3107 = vmatpush.bf16.msra.mxu0 %v2928
        %3108 = vmatpush.bf16.msra.mxu0 %v2927
        %3109 = vmatpush.bf16.msra.mxu0 %v2926
        %3110 = vmatpush.bf16.msra.mxu0 %v2925
        %3111 = vmatpush.bf16.msra.mxu0 %v2924
        %3112 = vmatmul.bf16.gmra.mxu0 %v2576
        %v3113 = vpop.f32.mrf.mxu0
        %v3114 = vadd.f32 %v3100, %v3113
        %v3115 = vpop.f32.mrf.mxu0
        %v3116 = vadd.f32 %v3102, %v3115
        %3117 = vdwg.mxu0
        %3118 = vmatpush.bf16.msra.mxu0 %v2939
        %3119 = vmatpush.bf16.msra.mxu0 %v2938
        %3120 = vmatpush.bf16.msra.mxu0 %v2937
        %3121 = vmatpush.bf16.msra.mxu0 %v2936
        %3122 = vmatpush.bf16.msra.mxu0 %v2935
        %3123 = vmatpush.bf16.msra.mxu0 %v2934
        %3124 = vmatpush.bf16.msra.mxu0 %v2933
        %3125 = vmatpush.bf16.msra.mxu0 %v2932
        %3126 = vmatmul.bf16.gmra.mxu0 %v2577
        %v3127 = vpop.f32.mrf.mxu0
        %v3128 = vadd.f32 %v3114, %v3127
        %v3129 = vpop.f32.mrf.mxu0
        %v3130 = vadd.f32 %v3116, %v3129
        %3131 = vdwg.mxu0
        %3132 = vmatpush.bf16.msra.mxu0 %v2947
        %3133 = vmatpush.bf16.msra.mxu0 %v2946
        %3134 = vmatpush.bf16.msra.mxu0 %v2945
        %3135 = vmatpush.bf16.msra.mxu0 %v2944
        %3136 = vmatpush.bf16.msra.mxu0 %v2943
        %3137 = vmatpush.bf16.msra.mxu0 %v2942
        %3138 = vmatpush.bf16.msra.mxu0 %v2941
        %3139 = vmatpush.bf16.msra.mxu0 %v2940
        %3140 = vmatmul.bf16.gmra.mxu0 %v2578
        %v3141 = vpop.f32.mrf.mxu0
        %v3142 = vadd.f32 %v3128, %v3141
        %v3143 = vpop.f32.mrf.mxu0
        %v3144 = vadd.f32 %v3130, %v3143
        %3145 = vdwg.mxu0
        %v3146 = vmax.f32 %v3142, 0.0
        %v3147 = vmax.f32 %v3144, 0.0
        %v3148 = vld [vmem:[#allocation4] sm:$0xff]
        %v3149 = vld [vmem:[#allocation4 + $0x8] sm:$0xff]
        %v3150 = vpack.c.bf16 %v3147, %v3146
        %v3151 = vld [vmem:[%s4] sm:$0xf]
        %v3152 = vld [vmem:[%s4 + $0x4] sm:$0xf]
        %v3153 = vld [vmem:[%s4 + $0x8] sm:$0xf]
        %v3154 = vld [vmem:[%s4 + $0xc] sm:$0xf]
        %v3155 = vld [vmem:[%s4 + $0x10] sm:$0xf]
        %v3156 = vld [vmem:[%s4 + $0x14] sm:$0xf]
        %v3157 = vld [vmem:[%s4 + $0x18] sm:$0xf]
        %v3158 = vld [vmem:[%s4 + $0x1c] sm:$0xf]
        %v3159 = vld [vmem:[%s4 + $0x20] sm:$0xf]
        %v3160 = vld [vmem:[%s4 + $0x24] sm:$0xf]
        %v3161 = vld [vmem:[%s4 + $0x28] sm:$0xf]
        %v3162 = vld [vmem:[%s4 + $0x2c] sm:$0xf]
        %v3163 = vld [vmem:[%s4 + $0x30] sm:$0xf]
        %v3164 = vld [vmem:[%s4 + $0x34] sm:$0xf]
        %v3165 = vld [vmem:[%s4 + $0x38] sm:$0xf]
        %v3166 = vld [vmem:[%s4 + $0x3c] sm:$0xf]
        %v3183 = vunpack.c.l.b16 %v3151
        %v3184 = vunpack.c.l.b16 %v3152
        %v3185 = vunpack.c.l.b16 %v3153
        %v3186 = vunpack.c.l.b16 %v3154
        %v3187 = vunpack.c.l.b16 %v3155
        %v3188 = vunpack.c.l.b16 %v3156
        %v3189 = vunpack.c.l.b16 %v3157
        %v3190 = vunpack.c.l.b16 %v3158
        %v3191 = vunpack.c.l.b16 %v3159
        %v3192 = vunpack.c.l.b16 %v3160
        %v3193 = vunpack.c.l.b16 %v3161
        %v3194 = vunpack.c.l.b16 %v3162
        %v3195 = vunpack.c.l.b16 %v3163
        %v3196 = vunpack.c.l.b16 %v3164
        %v3197 = vunpack.c.l.b16 %v3165
        %v3198 = vunpack.c.l.b16 %v3166
        %v3199 = vpack.c.b16 %v3184, %v3183
        %v3200 = vpack.c.b16 %v3186, %v3185
        %v3201 = vpack.c.b16 %v3188, %v3187
        %v3202 = vpack.c.b16 %v3190, %v3189
        %v3203 = vpack.c.b16 %v3192, %v3191
        %v3204 = vpack.c.b16 %v3194, %v3193
        %v3205 = vpack.c.b16 %v3196, %v3195
        %v3206 = vpack.c.b16 %v3198, %v3197
        %3215 = vmatpush.bf16.msra.mxu0 %v3206
        %3216 = vmatpush.bf16.msra.mxu0 %v3205
        %3217 = vmatpush.bf16.msra.mxu0 %v3204
        %3218 = vmatpush.bf16.msra.mxu0 %v3203
        %3219 = vmatpush.bf16.msra.mxu0 %v3202
        %3220 = vmatpush.bf16.msra.mxu0 %v3201
        %3221 = vmatpush.bf16.msra.mxu0 %v3200
        %3222 = vmatpush.bf16.msra.mxu0 %v3199
        %3223 = vmatmul.bf16.gmra.mxu0 %v3150
        %v3224 = vpop.f32.mrf.mxu0
        %v3225 = vadd.f32 0.0, %v3224
        %v3226 = vpop.f32.mrf.mxu0
        %v3227 = vadd.f32 0.0, %v3226
        %3228 = vdwg.mxu0
        %v3229 = vadd.f32 %v3148, %v3225
        %v3230 = vadd.f32 %v3149, %v3227
        %3231 = vst [vmem:[#allocation4] sm:$0xff] %v3229
        %3232 = vst [vmem:[#allocation4 + $0x8] sm:$0xff] %v3230
      $region45: #{encoder_forward.5} parent=39 // loop_footer
        %s1715 = sadd.s32 1, %s1711
      $region46: #{encoder_forward.5} parent=39 // loop_footer_branch
        %1710 = sbr.rel target = $region42
      $region47: #{encoder_forward.5} parent=39 // loop_exit
        _
      %v3233 = vld [vmem:[#allocation4] sm:$0xff]
      %v3234 = vld [vmem:[#allocation4 + $0x8] sm:$0xff]
      %v3235 = vmax.f32 %v3233, 0.0
      %v3236 = vmax.f32 %v3234, 0.0
      %v3239 = vrot.slane %v3235, 4
      %v3240 = vrot.slane %v3236, 4
      %3243 = vst [vmem:[%s224] sm:$0xf] %v3235
      %3244 = vst [vmem:[%s224 + $0x4] sm:$0xf] %v3239
      %3245 = vst [vmem:[%s224 + $0x8] sm:$0xf] %v3236
      %3246 = vst [vmem:[%s224 + $0xc] sm:$0xf] %v3240
      %p3247 = scmp.lt.s32.totalorder %s16, 1
      %s3248 = scalar_select %p3247, %s16, 1
      %s3249 = smul.addr %s3248, 4
      %s3250 = smul.addr %s3249, 4
      %s3251 = scalar_lea.vmem %s5, %s3250
      // Predicated region
      $region48: #{encoder_forward.5} parent=39 // pred_check
        %p3252 = pneg %p144
      $region49: #{encoder_forward.5} parent=39 // pred_check_branch
        %3254 = sbr.rel (%p3252) target = $region51
      $region50: #{encoder_forward.5} parent=39 // pred_region
        _
      $region51: #{encoder_forward.5} parent=39 // pred_fallthru
        _
    $region40: #{encoder_forward.5} parent=5 // pred_fallthru
      _
    %p3255 = scmp.le.s32.totalorder 2, %s11
    // Predicated region
    $region52: #{encoder_forward.5} parent=5 // pred_check
      %p3256 = pneg %p3255
    $region53: #{encoder_forward.5} parent=5 // pred_check_branch
      %3258 = sbr.rel (%p3256) target = $region55
    $region54: #{encoder_forward.5} parent=5 // pred_region
      %s3259 = ssub.s32 %s11, 2
      // Predicated region
      $region56: #{encoder_forward.5} parent=54 // pred_check
        %p3260 = pneg %p150
      $region57: #{encoder_forward.5} parent=54 // pred_check_branch
        %3262 = sbr.rel (%p3260) target = $region59
      $region58: #{encoder_forward.5} parent=54 // pred_region
        %p3263 = scmp.lt.s32.totalorder %s17, 1
        %s3264 = scalar_select %p3263, %s17, 1
        %s3265 = smul.addr %s3264, 4
        %s3266 = smul.addr %s3265, 4
        %s3267 = scalar_lea.vmem %s5, %s3266
      $region59: #{encoder_forward.5} parent=54 // pred_fallthru
        _
    $region55: #{encoder_forward.5} parent=5 // pred_fallthru
      _
  $region6: #{encoder_forward.5} parent=0 // loop_footer
    %s15 = sadd.s32 1, %s11
  $region7: #{encoder_forward.5} parent=0 // loop_footer_branch
    %10 = sbr.rel target = $region3
  $region8: #{encoder_forward.5} parent=0 // loop_exit
    _

</llo_original>
